<compile_context>
chip_gen: v7x
topology: tpu7x:2x2x1
jax: 0.10.0
libtpu: 0.0.40
codegen_flags: <defaults>
</compile_context>

<pallas_src>
import functools

import jax
import jax.numpy as jnp
from jax import lax
from jax.experimental import pallas as pl
from jax.experimental.pallas import tpu as pltpu


_NT = (((1,), (1,)), ((), ()))     # dot_general dims for A @ B^T


# ---------------------------- fused Pallas kernel ----------------------------

def _fused_fm_kernel(t_ref, x1_ref, noise_ref, xp_ref, h0_ref, c_ref,
                     wih_ref, whh_ref, bih_ref, bhh_ref,
                     wt_ref, whc_ref, b1e_ref, w1_ref, w2_ref, b2_ref,
                     loss_ref, hnext_ref):
    B, CT, HW = x1_ref.shape
    Hg = h0_ref.shape[-1]
    T = xp_ref.shape[0] // B

    # ---------------- GRU history encoder ----------------
    # Input-to-hidden projection hoisted out of the recurrence: one
    # (T*B, F) @ (F, 3*Hg) bf16 matmul.  x_p arrives TIME-MAJOR, so each
    # recurrence step below reads one contiguous static (B, 3Hg) slice.
    gi_all = jnp.dot(xp_ref[...], wih_ref[...],
                     preferred_element_type=jnp.float32) + bih_ref[...]   # (T*B, 3Hg)

    h = h0_ref[...]                                                       # (B, Hg) f32
    for t in range(T):                        # static unroll (T small, LLO-visible)
        gi = gi_all[t * B:(t + 1) * B, :]                                 # contiguous
        gh = jnp.dot(h.astype(jnp.bfloat16), whh_ref[...],
                     preferred_element_type=jnp.float32) + bhh_ref[...]
        r = jax.nn.sigmoid(gi[:, 0:Hg] + gh[:, 0:Hg])
        z = jax.nn.sigmoid(gi[:, Hg:2 * Hg] + gh[:, Hg:2 * Hg])
        n = jnp.tanh(gi[:, 2 * Hg:3 * Hg] + r * gh[:, 2 * Hg:3 * Hg])
        h = (1.0 - z) * n + z * h
    hnext_ref[...] = h

    # ------- conditioning embedding: hoisted out of the per-b loop -------
    # [w_h | w_c] folded at init into whc (Dh, Hg+NC); b_emb + b1 folded into
    # b1e.  One small dot for all B instead of 2*B tiny N=1 dots.
    hc = jnp.concatenate([h, c_ref[...]], axis=-1)                        # (B, Hg+NC)
    emb_all = lax.dot_general(whc_ref[...], hc, _NT,
                              preferred_element_type=jnp.float32)         # (Dh, B)
    emb_all = emb_all + b1e_ref[...]                                      # + (b_emb+b1)

    # ------- flow interp + pointwise UNet + MSE (lane axis = HW) -------
    sse_vec = jnp.zeros((CT, HW), jnp.float32)
    for b in range(B):                        # static unroll over the tiny batch
        t_b = t_ref[b, 0]                     # SMEM scalar
        x1_b = x1_ref[b]                      # (CT, HW)
        nz_b = noise_ref[b]                   # (CT, HW)
        tgt_b = x1_b - nz_b                   # target, reused for the interp
        x_t_b = nz_b + t_b * tgt_b            # == (1-t)*noise + t*x_1

        # FiLM embedding column: t-projection = scalar * column (VPU) + the
        # hoisted class/GRU-feature column.
        emb_b = t_b * wt_ref[...] + emb_all[:, b:b + 1]                   # (Dh, 1)

        h1 = jnp.dot(w1_ref[...], x_t_b.astype(jnp.bfloat16),
                     preferred_element_type=jnp.float32)                  # (Dh, HW)
        h1 = jnp.maximum(h1 + emb_b, 0.0)                                 # ReLU (f32)
        pred = jnp.dot(w2_ref[...], h1.astype(jnp.bfloat16),
                       preferred_element_type=jnp.float32) + b2_ref[...]  # (CT, HW)

        d = pred - tgt_b
        sse_vec = sse_vec + d * d             # vector accumulate; one reduce at end

    # mse_loss(pred, x_1 - noise) with a compile-time reciprocal.
    loss_ref[0, 0] = jnp.sum(sse_vec) * (1.0 / float(B * CT * HW))


# ---------------------------- parameters ----------------------------

def init_params(key, *, cin, time_step, H, W, num_class, gru_hidden, unet_hidden):
    CT = cin * time_step
    F = cin * H * W
    ks = jax.random.split(key, 7)
    scale = 0.02

    def nrm(k, shape, dtype=jnp.float32):
        return (scale * jax.random.normal(k, shape, dtype=jnp.float32)).astype(dtype)

    # Large matmul weights stored bf16-at-rest (halves DMA bytes); biases and
    # small FiLM projections stay f32.
    gru = dict(
        w_ih=nrm(ks[0], (F, 3 * gru_hidden), jnp.bfloat16),
        w_hh=nrm(ks[1], (gru_hidden, 3 * gru_hidden), jnp.bfloat16),
        b_ih=jnp.zeros((1, 3 * gru_hidden), jnp.float32),
        b_hh=jnp.zeros((1, 3 * gru_hidden), jnp.float32),
    )
    # UNet weights pre-transposed so all in-kernel matmuls keep HW on the lane
    # axis; [w_h | w_c] fused into one matrix, b_emb+b1 fused into one column.
    unet = dict(
        w_t=nrm(ks[2], (unet_hidden, 1)),                                   # (Dh, 1)
        w_hc=jnp.concatenate([nrm(ks[3], (unet_hidden, gru_hidden)),        # (Dh, Hg+NC)
                              nrm(ks[4], (unet_hidden, num_class))], axis=1),
        b1e=jnp.zeros((unet_hidden, 1), jnp.float32),                       # b_emb + b1
        w1=nrm(ks[5], (unet_hidden, CT), jnp.bfloat16),                     # (Dh, CT)
        w2=nrm(ks[6], (CT, unet_hidden), jnp.bfloat16),                     # (CT, Dh)
        b2=jnp.zeros((CT, 1), jnp.float32),
    )
    return dict(gru=gru, unet=unet)


# ---------------------------- fm_forward ----------------------------

def flow_matching_forward(params, x, x_p, h, c, key, p_uncond,
                          *, channel_in=1, time_step=12):
    """Reproduces fm_forward: returns (scalar loss, h_next)."""
    B, CT, H, W = x.shape
    HW = H * W
    F = channel_in * H * W
    Hg = h.shape[-1]
    T = time_step
    k_noise, k_time, k_drop = jax.random.split(key, 3)

    noise = jax.random.normal(k_noise, x.shape, dtype=jnp.float32)
    time_sample = jax.random.uniform(k_time, (B, 1), dtype=jnp.float32)

    # classifier-free dropout of the condition with probability p_uncond
    # (host-side torch.rand(()).item() branch -> traced jnp.where; one draw
    # for the whole batch, as in the reference).
    drop = jax.random.uniform(k_drop, (), dtype=jnp.float32) < p_uncond
    c_masked = jnp.where(drop, jnp.zeros_like(c), c)

    # Time-major past trajectory for the GRU: (B, C*T, H, W) is (time, channel)
    # ordered along CT (matches chunk.view(B, T, C, H, W) in the reference), so
    # reshape to (B, T, F) is free and only the small (T, B) transpose copies.
    xp_tm = jnp.transpose(x_p.reshape(B, T, F), (1, 0, 2)) \
               .reshape(T * B, F).astype(jnp.bfloat16)

    gru, unet = params['gru'], params['unet']
    vmem = pl.BlockSpec(memory_space=pltpu.MemorySpace.VMEM)
    smem = pl.BlockSpec(memory_space=pltpu.MemorySpace.SMEM)

    # Single fused kernel: interp + GRU + pointwise UNet + MSE.  Gridless:
    # the ~0.4 MiB working set fits VMEM on every TPU generation (v7x 64 MiB
    # included); if B/H/W grow, grid over B x HW with "parallel" semantics and
    # >=512-wide lane blocks, budgeting tiles against v7x's 64 MiB first.
    loss, h_vec = pl.pallas_call(
        _fused_fm_kernel,
        out_shape=(jax.ShapeDtypeStruct((1, 1), jnp.float32),
                   jax.ShapeDtypeStruct((B, Hg), jnp.float32)),
        in_specs=[smem] + [vmem] * 15,
        out_specs=(smem, vmem),
    )(time_sample,
      x.reshape(B, CT, HW),                  # channel-major, lane = HW
      noise.reshape(B, CT, HW),
      xp_tm,                                 # time-major (T*B, F), bf16
      h[0], c_masked,
      gru['w_ih'], gru['w_hh'], gru['b_ih'], gru['b_hh'],
      unet['w_t'], unet['w_hc'], unet['b1e'],
      unet['w1'], unet['w2'], unet['b2'])

    return loss[0, 0], h_vec[None]


# ---------------------------- main ----------------------------

if __name__ == "__main__":
    B, channel_in, time_step, H, W = 2, 1, 12, 16, 16
    num_class, gru_layers, gru_hidden, unet_hidden = 10, 1, 128, 64
    CT = channel_in * time_step

    root = jax.random.PRNGKey(0)
    kp, kx, kxp, kc, kfwd = jax.random.split(root, 5)

    params = init_params(kp, cin=channel_in, time_step=time_step, H=H, W=W,
                         num_class=num_class, gru_hidden=gru_hidden,
                         unet_hidden=unet_hidden)

    x = jax.random.normal(kx, (B, CT, H, W), dtype=jnp.float32)
    x_p = jax.random.normal(kxp, (B, CT, H, W), dtype=jnp.float32)
    h = jnp.zeros((gru_layers, B, gru_hidden), jnp.float32)
    c_idx = jax.random.randint(kc, (B,), 0, num_class)
    c = jax.nn.one_hot(c_idx, num_class, dtype=jnp.float32)

    fwd = jax.jit(functools.partial(flow_matching_forward,
                                    channel_in=channel_in,
                                    time_step=time_step))
    loss, h_next = fwd(params, x, x_p, h, c, kfwd, 0.1)
    jax.block_until_ready((loss, h_next))

    assert loss.shape == ()
    assert h_next.shape == (gru_layers, B, gru_hidden)
    assert jnp.isfinite(loss)
    print("KERNEL_OK")
</pallas_src>

<mosaic_0001>
module attributes {stable_mosaic.version = 11 : i64} {
  func.func @_fused_fm_kernel(%arg0: memref<2x1xf32, #tpu.memory_space<smem>>, %arg1: memref<2x12x256xf32, #tpu.memory_space<vmem>>, %arg2: memref<2x12x256xf32, #tpu.memory_space<vmem>>, %arg3: memref<24x256xbf16, #tpu.memory_space<vmem>>, %arg4: memref<2x128xf32, #tpu.memory_space<vmem>>, %arg5: memref<2x10xf32, #tpu.memory_space<vmem>>, %arg6: memref<256x384xbf16, #tpu.memory_space<vmem>>, %arg7: memref<128x384xbf16, #tpu.memory_space<vmem>>, %arg8: memref<1x384xf32, #tpu.memory_space<vmem>>, %arg9: memref<1x384xf32, #tpu.memory_space<vmem>>, %arg10: memref<64x1xf32, #tpu.memory_space<vmem>>, %arg11: memref<64x138xf32, #tpu.memory_space<vmem>>, %arg12: memref<64x1xf32, #tpu.memory_space<vmem>>, %arg13: memref<64x12xbf16, #tpu.memory_space<vmem>>, %arg14: memref<12x64xbf16, #tpu.memory_space<vmem>>, %arg15: memref<12x1xf32, #tpu.memory_space<vmem>>, %arg16: memref<1x1xf32, #tpu.memory_space<smem>>, %arg17: memref<2x128xf32, #tpu.memory_space<vmem>>) attributes {dimension_semantics = [], scalar_prefetch = 0 : i64, scratch_operands = 0 : i64, tpu.core_type = #tpu.core_type<tc>} {
    %c0 = arith.constant 0 : index
    %c0_0 = arith.constant 0 : index
    %0 = vector.load %arg3[%c0, %c0_0] : memref<24x256xbf16, #tpu.memory_space<vmem>>, vector<24x256xbf16>
    %c0_1 = arith.constant 0 : index
    %c0_2 = arith.constant 0 : index
    %1 = vector.load %arg6[%c0_1, %c0_2] : memref<256x384xbf16, #tpu.memory_space<vmem>>, vector<256x384xbf16>
    %cst = arith.constant dense<0.000000e+00> : vector<24x384xf32>
    %2 = tpu.matmul %0, %1, %cst {dimension_numbers = #tpu.dot_dimension_numbers<[1], [0], [0], [1], [0, 0, 1, 1], [], []>} : vector<24x256xbf16>, vector<256x384xbf16>, vector<24x384xf32> -> vector<24x384xf32>
    %c0_3 = arith.constant 0 : index
    %c0_4 = arith.constant 0 : index
    %3 = vector.load %arg8[%c0_3, %c0_4] : memref<1x384xf32, #tpu.memory_space<vmem>>, vector<1x384xf32>
    %4 = vector.broadcast %3 : vector<1x384xf32> to vector<24x384xf32>
    %5 = arith.addf %2, %4 : vector<24x384xf32>
    %c0_5 = arith.constant 0 : index
    %c0_6 = arith.constant 0 : index
    %6 = vector.load %arg4[%c0_5, %c0_6] : memref<2x128xf32, #tpu.memory_space<vmem>>, vector<2x128xf32>
    %7 = vector.extract_strided_slice %5 {offsets = [0, 0], sizes = [2, 384], strides = [1, 1]} : vector<24x384xf32> to vector<2x384xf32>
    %8 = arith.truncf %6 : vector<2x128xf32> to vector<2x128xbf16>
    %c0_7 = arith.constant 0 : index
    %c0_8 = arith.constant 0 : index
    %9 = vector.load %arg7[%c0_7, %c0_8] : memref<128x384xbf16, #tpu.memory_space<vmem>>, vector<128x384xbf16>
    %cst_9 = arith.constant dense<0.000000e+00> : vector<2x384xf32>
    %10 = tpu.matmul %8, %9, %cst_9 {dimension_numbers = #tpu.dot_dimension_numbers<[1], [0], [0], [1], [0, 0, 1, 1], [], []>} : vector<2x128xbf16>, vector<128x384xbf16>, vector<2x384xf32> -> vector<2x384xf32>
    %c0_10 = arith.constant 0 : index
    %c0_11 = arith.constant 0 : index
    %11 = vector.load %arg9[%c0_10, %c0_11] : memref<1x384xf32, #tpu.memory_space<vmem>>, vector<1x384xf32>
    %12 = vector.broadcast %11 : vector<1x384xf32> to vector<2x384xf32>
    %13 = arith.addf %10, %12 : vector<2x384xf32>
    %14 = vector.extract_strided_slice %7 {offsets = [0, 0], sizes = [2, 128], strides = [1, 1]} : vector<2x384xf32> to vector<2x128xf32>
    %15 = vector.extract_strided_slice %13 {offsets = [0, 0], sizes = [2, 128], strides = [1, 1]} : vector<2x384xf32> to vector<2x128xf32>
    %16 = arith.addf %14, %15 : vector<2x128xf32>
    %17 = arith.negf %16 : vector<2x128xf32>
    %18 = math.exp %17 : vector<2x128xf32>
    %cst_12 = arith.constant 1.000000e+00 : f32
    %19 = vector.broadcast %cst_12 : f32 to vector<2x128xf32>
    %20 = arith.addf %19, %18 : vector<2x128xf32>
    %21 = arith.divf %19, %20 : vector<2x128xf32>
    %22 = vector.extract_strided_slice %7 {offsets = [0, 128], sizes = [2, 128], strides = [1, 1]} : vector<2x384xf32> to vector<2x128xf32>
    %23 = vector.extract_strided_slice %13 {offsets = [0, 128], sizes = [2, 128], strides = [1, 1]} : vector<2x384xf32> to vector<2x128xf32>
    %24 = arith.addf %22, %23 : vector<2x128xf32>
    %25 = arith.negf %24 : vector<2x128xf32>
    %26 = math.exp %25 : vector<2x128xf32>
    %cst_13 = arith.constant 1.000000e+00 : f32
    %27 = vector.broadcast %cst_13 : f32 to vector<2x128xf32>
    %28 = arith.addf %27, %26 : vector<2x128xf32>
    %29 = arith.divf %27, %28 : vector<2x128xf32>
    %30 = vector.extract_strided_slice %7 {offsets = [0, 256], sizes = [2, 128], strides = [1, 1]} : vector<2x384xf32> to vector<2x128xf32>
    %31 = vector.extract_strided_slice %13 {offsets = [0, 256], sizes = [2, 128], strides = [1, 1]} : vector<2x384xf32> to vector<2x128xf32>
    %32 = arith.mulf %21, %31 : vector<2x128xf32>
    %33 = arith.addf %30, %32 : vector<2x128xf32>
    %34 = math.tanh %33 : vector<2x128xf32>
    %cst_14 = arith.constant 1.000000e+00 : f32
    %35 = vector.broadcast %cst_14 : f32 to vector<2x128xf32>
    %36 = arith.subf %35, %29 : vector<2x128xf32>
    %37 = arith.mulf %36, %34 : vector<2x128xf32>
    %38 = arith.mulf %29, %6 : vector<2x128xf32>
    %39 = arith.addf %37, %38 : vector<2x128xf32>
    %40 = vector.extract_strided_slice %5 {offsets = [2, 0], sizes = [2, 384], strides = [1, 1]} : vector<24x384xf32> to vector<2x384xf32>
    %41 = arith.truncf %39 : vector<2x128xf32> to vector<2x128xbf16>
    %c0_15 = arith.constant 0 : index
    %c0_16 = arith.constant 0 : index
    %42 = vector.load %arg7[%c0_15, %c0_16] : memref<128x384xbf16, #tpu.memory_space<vmem>>, vector<128x384xbf16>
    %cst_17 = arith.constant dense<0.000000e+00> : vector<2x384xf32>
    %43 = tpu.matmul %41, %42, %cst_17 {dimension_numbers = #tpu.dot_dimension_numbers<[1], [0], [0], [1], [0, 0, 1, 1], [], []>} : vector<2x128xbf16>, vector<128x384xbf16>, vector<2x384xf32> -> vector<2x384xf32>
    %c0_18 = arith.constant 0 : index
    %c0_19 = arith.constant 0 : index
    %44 = vector.load %arg9[%c0_18, %c0_19] : memref<1x384xf32, #tpu.memory_space<vmem>>, vector<1x384xf32>
    %45 = vector.broadcast %44 : vector<1x384xf32> to vector<2x384xf32>
    %46 = arith.addf %43, %45 : vector<2x384xf32>
    %47 = vector.extract_strided_slice %40 {offsets = [0, 0], sizes = [2, 128], strides = [1, 1]} : vector<2x384xf32> to vector<2x128xf32>
    %48 = vector.extract_strided_slice %46 {offsets = [0, 0], sizes = [2, 128], strides = [1, 1]} : vector<2x384xf32> to vector<2x128xf32>
    %49 = arith.addf %47, %48 : vector<2x128xf32>
    %50 = arith.negf %49 : vector<2x128xf32>
    %51 = math.exp %50 : vector<2x128xf32>
    %cst_20 = arith.constant 1.000000e+00 : f32
    %52 = vector.broadcast %cst_20 : f32 to vector<2x128xf32>
    %53 = arith.addf %52, %51 : vector<2x128xf32>
    %54 = arith.divf %52, %53 : vector<2x128xf32>
    %55 = vector.extract_strided_slice %40 {offsets = [0, 128], sizes = [2, 128], strides = [1, 1]} : vector<2x384xf32> to vector<2x128xf32>
    %56 = vector.extract_strided_slice %46 {offsets = [0, 128], sizes = [2, 128], strides = [1, 1]} : vector<2x384xf32> to vector<2x128xf32>
    %57 = arith.addf %55, %56 : vector<2x128xf32>
    %58 = arith.negf %57 : vector<2x128xf32>
    %59 = math.exp %58 : vector<2x128xf32>
    %cst_21 = arith.constant 1.000000e+00 : f32
    %60 = vector.broadcast %cst_21 : f32 to vector<2x128xf32>
    %61 = arith.addf %60, %59 : vector<2x128xf32>
    %62 = arith.divf %60, %61 : vector<2x128xf32>
    %63 = vector.extract_strided_slice %40 {offsets = [0, 256], sizes = [2, 128], strides = [1, 1]} : vector<2x384xf32> to vector<2x128xf32>
    %64 = vector.extract_strided_slice %46 {offsets = [0, 256], sizes = [2, 128], strides = [1, 1]} : vector<2x384xf32> to vector<2x128xf32>
    %65 = arith.mulf %54, %64 : vector<2x128xf32>
    %66 = arith.addf %63, %65 : vector<2x128xf32>
    %67 = math.tanh %66 : vector<2x128xf32>
    %cst_22 = arith.constant 1.000000e+00 : f32
    %68 = vector.broadcast %cst_22 : f32 to vector<2x128xf32>
    %69 = arith.subf %68, %62 : vector<2x128xf32>
    %70 = arith.mulf %69, %67 : vector<2x128xf32>
    %71 = arith.mulf %62, %39 : vector<2x128xf32>
    %72 = arith.addf %70, %71 : vector<2x128xf32>
    %73 = vector.extract_strided_slice %5 {offsets = [4, 0], sizes = [2, 384], strides = [1, 1]} : vector<24x384xf32> to vector<2x384xf32>
    %74 = arith.truncf %72 : vector<2x128xf32> to vector<2x128xbf16>
    %c0_23 = arith.constant 0 : index
    %c0_24 = arith.constant 0 : index
    %75 = vector.load %arg7[%c0_23, %c0_24] : memref<128x384xbf16, #tpu.memory_space<vmem>>, vector<128x384xbf16>
    %cst_25 = arith.constant dense<0.000000e+00> : vector<2x384xf32>
    %76 = tpu.matmul %74, %75, %cst_25 {dimension_numbers = #tpu.dot_dimension_numbers<[1], [0], [0], [1], [0, 0, 1, 1], [], []>} : vector<2x128xbf16>, vector<128x384xbf16>, vector<2x384xf32> -> vector<2x384xf32>
    %c0_26 = arith.constant 0 : index
    %c0_27 = arith.constant 0 : index
    %77 = vector.load %arg9[%c0_26, %c0_27] : memref<1x384xf32, #tpu.memory_space<vmem>>, vector<1x384xf32>
    %78 = vector.broadcast %77 : vector<1x384xf32> to vector<2x384xf32>
    %79 = arith.addf %76, %78 : vector<2x384xf32>
    %80 = vector.extract_strided_slice %73 {offsets = [0, 0], sizes = [2, 128], strides = [1, 1]} : vector<2x384xf32> to vector<2x128xf32>
    %81 = vector.extract_strided_slice %79 {offsets = [0, 0], sizes = [2, 128], strides = [1, 1]} : vector<2x384xf32> to vector<2x128xf32>
    %82 = arith.addf %80, %81 : vector<2x128xf32>
    %83 = arith.negf %82 : vector<2x128xf32>
    %84 = math.exp %83 : vector<2x128xf32>
    %cst_28 = arith.constant 1.000000e+00 : f32
    %85 = vector.broadcast %cst_28 : f32 to vector<2x128xf32>
    %86 = arith.addf %85, %84 : vector<2x128xf32>
    %87 = arith.divf %85, %86 : vector<2x128xf32>
    %88 = vector.extract_strided_slice %73 {offsets = [0, 128], sizes = [2, 128], strides = [1, 1]} : vector<2x384xf32> to vector<2x128xf32>
    %89 = vector.extract_strided_slice %79 {offsets = [0, 128], sizes = [2, 128], strides = [1, 1]} : vector<2x384xf32> to vector<2x128xf32>
    %90 = arith.addf %88, %89 : vector<2x128xf32>
    %91 = arith.negf %90 : vector<2x128xf32>
    %92 = math.exp %91 : vector<2x128xf32>
    %cst_29 = arith.constant 1.000000e+00 : f32
    %93 = vector.broadcast %cst_29 : f32 to vector<2x128xf32>
    %94 = arith.addf %93, %92 : vector<2x128xf32>
    %95 = arith.divf %93, %94 : vector<2x128xf32>
    %96 = vector.extract_strided_slice %73 {offsets = [0, 256], sizes = [2, 128], strides = [1, 1]} : vector<2x384xf32> to vector<2x128xf32>
    %97 = vector.extract_strided_slice %79 {offsets = [0, 256], sizes = [2, 128], strides = [1, 1]} : vector<2x384xf32> to vector<2x128xf32>
    %98 = arith.mulf %87, %97 : vector<2x128xf32>
    %99 = arith.addf %96, %98 : vector<2x128xf32>
    %100 = math.tanh %99 : vector<2x128xf32>
    %cst_30 = arith.constant 1.000000e+00 : f32
    %101 = vector.broadcast %cst_30 : f32 to vector<2x128xf32>
    %102 = arith.subf %101, %95 : vector<2x128xf32>
    %103 = arith.mulf %102, %100 : vector<2x128xf32>
    %104 = arith.mulf %95, %72 : vector<2x128xf32>
    %105 = arith.addf %103, %104 : vector<2x128xf32>
    %106 = vector.extract_strided_slice %5 {offsets = [6, 0], sizes = [2, 384], strides = [1, 1]} : vector<24x384xf32> to vector<2x384xf32>
    %107 = arith.truncf %105 : vector<2x128xf32> to vector<2x128xbf16>
    %c0_31 = arith.constant 0 : index
    %c0_32 = arith.constant 0 : index
    %108 = vector.load %arg7[%c0_31, %c0_32] : memref<128x384xbf16, #tpu.memory_space<vmem>>, vector<128x384xbf16>
    %cst_33 = arith.constant dense<0.000000e+00> : vector<2x384xf32>
    %109 = tpu.matmul %107, %108, %cst_33 {dimension_numbers = #tpu.dot_dimension_numbers<[1], [0], [0], [1], [0, 0, 1, 1], [], []>} : vector<2x128xbf16>, vector<128x384xbf16>, vector<2x384xf32> -> vector<2x384xf32>
    %c0_34 = arith.constant 0 : index
    %c0_35 = arith.constant 0 : index
    %110 = vector.load %arg9[%c0_34, %c0_35] : memref<1x384xf32, #tpu.memory_space<vmem>>, vector<1x384xf32>
    %111 = vector.broadcast %110 : vector<1x384xf32> to vector<2x384xf32>
    %112 = arith.addf %109, %111 : vector<2x384xf32>
    %113 = vector.extract_strided_slice %106 {offsets = [0, 0], sizes = [2, 128], strides = [1, 1]} : vector<2x384xf32> to vector<2x128xf32>
    %114 = vector.extract_strided_slice %112 {offsets = [0, 0], sizes = [2, 128], strides = [1, 1]} : vector<2x384xf32> to vector<2x128xf32>
    %115 = arith.addf %113, %114 : vector<2x128xf32>
    %116 = arith.negf %115 : vector<2x128xf32>
    %117 = math.exp %116 : vector<2x128xf32>
    %cst_36 = arith.constant 1.000000e+00 : f32
    %118 = vector.broadcast %cst_36 : f32 to vector<2x128xf32>
    %119 = arith.addf %118, %117 : vector<2x128xf32>
    %120 = arith.divf %118, %119 : vector<2x128xf32>
    %121 = vector.extract_strided_slice %106 {offsets = [0, 128], sizes = [2, 128], strides = [1, 1]} : vector<2x384xf32> to vector<2x128xf32>
    %122 = vector.extract_strided_slice %112 {offsets = [0, 128], sizes = [2, 128], strides = [1, 1]} : vector<2x384xf32> to vector<2x128xf32>
    %123 = arith.addf %121, %122 : vector<2x128xf32>
    %124 = arith.negf %123 : vector<2x128xf32>
    %125 = math.exp %124 : vector<2x128xf32>
    %cst_37 = arith.constant 1.000000e+00 : f32
    %126 = vector.broadcast %cst_37 : f32 to vector<2x128xf32>
    %127 = arith.addf %126, %125 : vector<2x128xf32>
    %128 = arith.divf %126, %127 : vector<2x128xf32>
    %129 = vector.extract_strided_slice %106 {offsets = [0, 256], sizes = [2, 128], strides = [1, 1]} : vector<2x384xf32> to vector<2x128xf32>
    %130 = vector.extract_strided_slice %112 {offsets = [0, 256], sizes = [2, 128], strides = [1, 1]} : vector<2x384xf32> to vector<2x128xf32>
    %131 = arith.mulf %120, %130 : vector<2x128xf32>
    %132 = arith.addf %129, %131 : vector<2x128xf32>
    %133 = math.tanh %132 : vector<2x128xf32>
    %cst_38 = arith.constant 1.000000e+00 : f32
    %134 = vector.broadcast %cst_38 : f32 to vector<2x128xf32>
    %135 = arith.subf %134, %128 : vector<2x128xf32>
    %136 = arith.mulf %135, %133 : vector<2x128xf32>
    %137 = arith.mulf %128, %105 : vector<2x128xf32>
    %138 = arith.addf %136, %137 : vector<2x128xf32>
    %139 = vector.extract_strided_slice %5 {offsets = [8, 0], sizes = [2, 384], strides = [1, 1]} : vector<24x384xf32> to vector<2x384xf32>
    %140 = arith.truncf %138 : vector<2x128xf32> to vector<2x128xbf16>
    %c0_39 = arith.constant 0 : index
    %c0_40 = arith.constant 0 : index
    %141 = vector.load %arg7[%c0_39, %c0_40] : memref<128x384xbf16, #tpu.memory_space<vmem>>, vector<128x384xbf16>
    %cst_41 = arith.constant dense<0.000000e+00> : vector<2x384xf32>
    %142 = tpu.matmul %140, %141, %cst_41 {dimension_numbers = #tpu.dot_dimension_numbers<[1], [0], [0], [1], [0, 0, 1, 1], [], []>} : vector<2x128xbf16>, vector<128x384xbf16>, vector<2x384xf32> -> vector<2x384xf32>
    %c0_42 = arith.constant 0 : index
    %c0_43 = arith.constant 0 : index
    %143 = vector.load %arg9[%c0_42, %c0_43] : memref<1x384xf32, #tpu.memory_space<vmem>>, vector<1x384xf32>
    %144 = vector.broadcast %143 : vector<1x384xf32> to vector<2x384xf32>
    %145 = arith.addf %142, %144 : vector<2x384xf32>
    %146 = vector.extract_strided_slice %139 {offsets = [0, 0], sizes = [2, 128], strides = [1, 1]} : vector<2x384xf32> to vector<2x128xf32>
    %147 = vector.extract_strided_slice %145 {offsets = [0, 0], sizes = [2, 128], strides = [1, 1]} : vector<2x384xf32> to vector<2x128xf32>
    %148 = arith.addf %146, %147 : vector<2x128xf32>
    %149 = arith.negf %148 : vector<2x128xf32>
    %150 = math.exp %149 : vector<2x128xf32>
    %cst_44 = arith.constant 1.000000e+00 : f32
    %151 = vector.broadcast %cst_44 : f32 to vector<2x128xf32>
    %152 = arith.addf %151, %150 : vector<2x128xf32>
    %153 = arith.divf %151, %152 : vector<2x128xf32>
    %154 = vector.extract_strided_slice %139 {offsets = [0, 128], sizes = [2, 128], strides = [1, 1]} : vector<2x384xf32> to vector<2x128xf32>
    %155 = vector.extract_strided_slice %145 {offsets = [0, 128], sizes = [2, 128], strides = [1, 1]} : vector<2x384xf32> to vector<2x128xf32>
    %156 = arith.addf %154, %155 : vector<2x128xf32>
    %157 = arith.negf %156 : vector<2x128xf32>
    %158 = math.exp %157 : vector<2x128xf32>
    %cst_45 = arith.constant 1.000000e+00 : f32
    %159 = vector.broadcast %cst_45 : f32 to vector<2x128xf32>
    %160 = arith.addf %159, %158 : vector<2x128xf32>
    %161 = arith.divf %159, %160 : vector<2x128xf32>
    %162 = vector.extract_strided_slice %139 {offsets = [0, 256], sizes = [2, 128], strides = [1, 1]} : vector<2x384xf32> to vector<2x128xf32>
    %163 = vector.extract_strided_slice %145 {offsets = [0, 256], sizes = [2, 128], strides = [1, 1]} : vector<2x384xf32> to vector<2x128xf32>
    %164 = arith.mulf %153, %163 : vector<2x128xf32>
    %165 = arith.addf %162, %164 : vector<2x128xf32>
    %166 = math.tanh %165 : vector<2x128xf32>
    %cst_46 = arith.constant 1.000000e+00 : f32
    %167 = vector.broadcast %cst_46 : f32 to vector<2x128xf32>
    %168 = arith.subf %167, %161 : vector<2x128xf32>
    %169 = arith.mulf %168, %166 : vector<2x128xf32>
    %170 = arith.mulf %161, %138 : vector<2x128xf32>
    %171 = arith.addf %169, %170 : vector<2x128xf32>
    %172 = vector.extract_strided_slice %5 {offsets = [10, 0], sizes = [2, 384], strides = [1, 1]} : vector<24x384xf32> to vector<2x384xf32>
    %173 = arith.truncf %171 : vector<2x128xf32> to vector<2x128xbf16>
    %c0_47 = arith.constant 0 : index
    %c0_48 = arith.constant 0 : index
    %174 = vector.load %arg7[%c0_47, %c0_48] : memref<128x384xbf16, #tpu.memory_space<vmem>>, vector<128x384xbf16>
    %cst_49 = arith.constant dense<0.000000e+00> : vector<2x384xf32>
    %175 = tpu.matmul %173, %174, %cst_49 {dimension_numbers = #tpu.dot_dimension_numbers<[1], [0], [0], [1], [0, 0, 1, 1], [], []>} : vector<2x128xbf16>, vector<128x384xbf16>, vector<2x384xf32> -> vector<2x384xf32>
    %c0_50 = arith.constant 0 : index
    %c0_51 = arith.constant 0 : index
    %176 = vector.load %arg9[%c0_50, %c0_51] : memref<1x384xf32, #tpu.memory_space<vmem>>, vector<1x384xf32>
    %177 = vector.broadcast %176 : vector<1x384xf32> to vector<2x384xf32>
    %178 = arith.addf %175, %177 : vector<2x384xf32>
    %179 = vector.extract_strided_slice %172 {offsets = [0, 0], sizes = [2, 128], strides = [1, 1]} : vector<2x384xf32> to vector<2x128xf32>
    %180 = vector.extract_strided_slice %178 {offsets = [0, 0], sizes = [2, 128], strides = [1, 1]} : vector<2x384xf32> to vector<2x128xf32>
    %181 = arith.addf %179, %180 : vector<2x128xf32>
    %182 = arith.negf %181 : vector<2x128xf32>
    %183 = math.exp %182 : vector<2x128xf32>
    %cst_52 = arith.constant 1.000000e+00 : f32
    %184 = vector.broadcast %cst_52 : f32 to vector<2x128xf32>
    %185 = arith.addf %184, %183 : vector<2x128xf32>
    %186 = arith.divf %184, %185 : vector<2x128xf32>
    %187 = vector.extract_strided_slice %172 {offsets = [0, 128], sizes = [2, 128], strides = [1, 1]} : vector<2x384xf32> to vector<2x128xf32>
    %188 = vector.extract_strided_slice %178 {offsets = [0, 128], sizes = [2, 128], strides = [1, 1]} : vector<2x384xf32> to vector<2x128xf32>
    %189 = arith.addf %187, %188 : vector<2x128xf32>
    %190 = arith.negf %189 : vector<2x128xf32>
    %191 = math.exp %190 : vector<2x128xf32>
    %cst_53 = arith.constant 1.000000e+00 : f32
    %192 = vector.broadcast %cst_53 : f32 to vector<2x128xf32>
    %193 = arith.addf %192, %191 : vector<2x128xf32>
    %194 = arith.divf %192, %193 : vector<2x128xf32>
    %195 = vector.extract_strided_slice %172 {offsets = [0, 256], sizes = [2, 128], strides = [1, 1]} : vector<2x384xf32> to vector<2x128xf32>
    %196 = vector.extract_strided_slice %178 {offsets = [0, 256], sizes = [2, 128], strides = [1, 1]} : vector<2x384xf32> to vector<2x128xf32>
    %197 = arith.mulf %186, %196 : vector<2x128xf32>
    %198 = arith.addf %195, %197 : vector<2x128xf32>
    %199 = math.tanh %198 : vector<2x128xf32>
    %cst_54 = arith.constant 1.000000e+00 : f32
    %200 = vector.broadcast %cst_54 : f32 to vector<2x128xf32>
    %201 = arith.subf %200, %194 : vector<2x128xf32>
    %202 = arith.mulf %201, %199 : vector<2x128xf32>
    %203 = arith.mulf %194, %171 : vector<2x128xf32>
    %204 = arith.addf %202, %203 : vector<2x128xf32>
    %205 = vector.extract_strided_slice %5 {offsets = [12, 0], sizes = [2, 384], strides = [1, 1]} : vector<24x384xf32> to vector<2x384xf32>
    %206 = arith.truncf %204 : vector<2x128xf32> to vector<2x128xbf16>
    %c0_55 = arith.constant 0 : index
    %c0_56 = arith.constant 0 : index
    %207 = vector.load %arg7[%c0_55, %c0_56] : memref<128x384xbf16, #tpu.memory_space<vmem>>, vector<128x384xbf16>
    %cst_57 = arith.constant dense<0.000000e+00> : vector<2x384xf32>
    %208 = tpu.matmul %206, %207, %cst_57 {dimension_numbers = #tpu.dot_dimension_numbers<[1], [0], [0], [1], [0, 0, 1, 1], [], []>} : vector<2x128xbf16>, vector<128x384xbf16>, vector<2x384xf32> -> vector<2x384xf32>
    %c0_58 = arith.constant 0 : index
    %c0_59 = arith.constant 0 : index
    %209 = vector.load %arg9[%c0_58, %c0_59] : memref<1x384xf32, #tpu.memory_space<vmem>>, vector<1x384xf32>
    %210 = vector.broadcast %209 : vector<1x384xf32> to vector<2x384xf32>
    %211 = arith.addf %208, %210 : vector<2x384xf32>
    %212 = vector.extract_strided_slice %205 {offsets = [0, 0], sizes = [2, 128], strides = [1, 1]} : vector<2x384xf32> to vector<2x128xf32>
    %213 = vector.extract_strided_slice %211 {offsets = [0, 0], sizes = [2, 128], strides = [1, 1]} : vector<2x384xf32> to vector<2x128xf32>
    %214 = arith.addf %212, %213 : vector<2x128xf32>
    %215 = arith.negf %214 : vector<2x128xf32>
    %216 = math.exp %215 : vector<2x128xf32>
    %cst_60 = arith.constant 1.000000e+00 : f32
    %217 = vector.broadcast %cst_60 : f32 to vector<2x128xf32>
    %218 = arith.addf %217, %216 : vector<2x128xf32>
    %219 = arith.divf %217, %218 : vector<2x128xf32>
    %220 = vector.extract_strided_slice %205 {offsets = [0, 128], sizes = [2, 128], strides = [1, 1]} : vector<2x384xf32> to vector<2x128xf32>
    %221 = vector.extract_strided_slice %211 {offsets = [0, 128], sizes = [2, 128], strides = [1, 1]} : vector<2x384xf32> to vector<2x128xf32>
    %222 = arith.addf %220, %221 : vector<2x128xf32>
    %223 = arith.negf %222 : vector<2x128xf32>
    %224 = math.exp %223 : vector<2x128xf32>
    %cst_61 = arith.constant 1.000000e+00 : f32
    %225 = vector.broadcast %cst_61 : f32 to vector<2x128xf32>
    %226 = arith.addf %225, %224 : vector<2x128xf32>
    %227 = arith.divf %225, %226 : vector<2x128xf32>
    %228 = vector.extract_strided_slice %205 {offsets = [0, 256], sizes = [2, 128], strides = [1, 1]} : vector<2x384xf32> to vector<2x128xf32>
    %229 = vector.extract_strided_slice %211 {offsets = [0, 256], sizes = [2, 128], strides = [1, 1]} : vector<2x384xf32> to vector<2x128xf32>
    %230 = arith.mulf %219, %229 : vector<2x128xf32>
    %231 = arith.addf %228, %230 : vector<2x128xf32>
    %232 = math.tanh %231 : vector<2x128xf32>
    %cst_62 = arith.constant 1.000000e+00 : f32
    %233 = vector.broadcast %cst_62 : f32 to vector<2x128xf32>
    %234 = arith.subf %233, %227 : vector<2x128xf32>
    %235 = arith.mulf %234, %232 : vector<2x128xf32>
    %236 = arith.mulf %227, %204 : vector<2x128xf32>
    %237 = arith.addf %235, %236 : vector<2x128xf32>
    %238 = vector.extract_strided_slice %5 {offsets = [14, 0], sizes = [2, 384], strides = [1, 1]} : vector<24x384xf32> to vector<2x384xf32>
    %239 = arith.truncf %237 : vector<2x128xf32> to vector<2x128xbf16>
    %c0_63 = arith.constant 0 : index
    %c0_64 = arith.constant 0 : index
    %240 = vector.load %arg7[%c0_63, %c0_64] : memref<128x384xbf16, #tpu.memory_space<vmem>>, vector<128x384xbf16>
    %cst_65 = arith.constant dense<0.000000e+00> : vector<2x384xf32>
    %241 = tpu.matmul %239, %240, %cst_65 {dimension_numbers = #tpu.dot_dimension_numbers<[1], [0], [0], [1], [0, 0, 1, 1], [], []>} : vector<2x128xbf16>, vector<128x384xbf16>, vector<2x384xf32> -> vector<2x384xf32>
    %c0_66 = arith.constant 0 : index
    %c0_67 = arith.constant 0 : index
    %242 = vector.load %arg9[%c0_66, %c0_67] : memref<1x384xf32, #tpu.memory_space<vmem>>, vector<1x384xf32>
    %243 = vector.broadcast %242 : vector<1x384xf32> to vector<2x384xf32>
    %244 = arith.addf %241, %243 : vector<2x384xf32>
    %245 = vector.extract_strided_slice %238 {offsets = [0, 0], sizes = [2, 128], strides = [1, 1]} : vector<2x384xf32> to vector<2x128xf32>
    %246 = vector.extract_strided_slice %244 {offsets = [0, 0], sizes = [2, 128], strides = [1, 1]} : vector<2x384xf32> to vector<2x128xf32>
    %247 = arith.addf %245, %246 : vector<2x128xf32>
    %248 = arith.negf %247 : vector<2x128xf32>
    %249 = math.exp %248 : vector<2x128xf32>
    %cst_68 = arith.constant 1.000000e+00 : f32
    %250 = vector.broadcast %cst_68 : f32 to vector<2x128xf32>
    %251 = arith.addf %250, %249 : vector<2x128xf32>
    %252 = arith.divf %250, %251 : vector<2x128xf32>
    %253 = vector.extract_strided_slice %238 {offsets = [0, 128], sizes = [2, 128], strides = [1, 1]} : vector<2x384xf32> to vector<2x128xf32>
    %254 = vector.extract_strided_slice %244 {offsets = [0, 128], sizes = [2, 128], strides = [1, 1]} : vector<2x384xf32> to vector<2x128xf32>
    %255 = arith.addf %253, %254 : vector<2x128xf32>
    %256 = arith.negf %255 : vector<2x128xf32>
    %257 = math.exp %256 : vector<2x128xf32>
    %cst_69 = arith.constant 1.000000e+00 : f32
    %258 = vector.broadcast %cst_69 : f32 to vector<2x128xf32>
    %259 = arith.addf %258, %257 : vector<2x128xf32>
    %260 = arith.divf %258, %259 : vector<2x128xf32>
    %261 = vector.extract_strided_slice %238 {offsets = [0, 256], sizes = [2, 128], strides = [1, 1]} : vector<2x384xf32> to vector<2x128xf32>
    %262 = vector.extract_strided_slice %244 {offsets = [0, 256], sizes = [2, 128], strides = [1, 1]} : vector<2x384xf32> to vector<2x128xf32>
    %263 = arith.mulf %252, %262 : vector<2x128xf32>
    %264 = arith.addf %261, %263 : vector<2x128xf32>
    %265 = math.tanh %264 : vector<2x128xf32>
    %cst_70 = arith.constant 1.000000e+00 : f32
    %266 = vector.broadcast %cst_70 : f32 to vector<2x128xf32>
    %267 = arith.subf %266, %260 : vector<2x128xf32>
    %268 = arith.mulf %267, %265 : vector<2x128xf32>
    %269 = arith.mulf %260, %237 : vector<2x128xf32>
    %270 = arith.addf %268, %269 : vector<2x128xf32>
    %271 = vector.extract_strided_slice %5 {offsets = [16, 0], sizes = [2, 384], strides = [1, 1]} : vector<24x384xf32> to vector<2x384xf32>
    %272 = arith.truncf %270 : vector<2x128xf32> to vector<2x128xbf16>
    %c0_71 = arith.constant 0 : index
    %c0_72 = arith.constant 0 : index
    %273 = vector.load %arg7[%c0_71, %c0_72] : memref<128x384xbf16, #tpu.memory_space<vmem>>, vector<128x384xbf16>
    %cst_73 = arith.constant dense<0.000000e+00> : vector<2x384xf32>
    %274 = tpu.matmul %272, %273, %cst_73 {dimension_numbers = #tpu.dot_dimension_numbers<[1], [0], [0], [1], [0, 0, 1, 1], [], []>} : vector<2x128xbf16>, vector<128x384xbf16>, vector<2x384xf32> -> vector<2x384xf32>
    %c0_74 = arith.constant 0 : index
    %c0_75 = arith.constant 0 : index
    %275 = vector.load %arg9[%c0_74, %c0_75] : memref<1x384xf32, #tpu.memory_space<vmem>>, vector<1x384xf32>
    %276 = vector.broadcast %275 : vector<1x384xf32> to vector<2x384xf32>
    %277 = arith.addf %274, %276 : vector<2x384xf32>
    %278 = vector.extract_strided_slice %271 {offsets = [0, 0], sizes = [2, 128], strides = [1, 1]} : vector<2x384xf32> to vector<2x128xf32>
    %279 = vector.extract_strided_slice %277 {offsets = [0, 0], sizes = [2, 128], strides = [1, 1]} : vector<2x384xf32> to vector<2x128xf32>
    %280 = arith.addf %278, %279 : vector<2x128xf32>
    %281 = arith.negf %280 : vector<2x128xf32>
    %282 = math.exp %281 : vector<2x128xf32>
    %cst_76 = arith.constant 1.000000e+00 : f32
    %283 = vector.broadcast %cst_76 : f32 to vector<2x128xf32>
    %284 = arith.addf %283, %282 : vector<2x128xf32>
    %285 = arith.divf %283, %284 : vector<2x128xf32>
    %286 = vector.extract_strided_slice %271 {offsets = [0, 128], sizes = [2, 128], strides = [1, 1]} : vector<2x384xf32> to vector<2x128xf32>
    %287 = vector.extract_strided_slice %277 {offsets = [0, 128], sizes = [2, 128], strides = [1, 1]} : vector<2x384xf32> to vector<2x128xf32>
    %288 = arith.addf %286, %287 : vector<2x128xf32>
    %289 = arith.negf %288 : vector<2x128xf32>
    %290 = math.exp %289 : vector<2x128xf32>
    %cst_77 = arith.constant 1.000000e+00 : f32
    %291 = vector.broadcast %cst_77 : f32 to vector<2x128xf32>
    %292 = arith.addf %291, %290 : vector<2x128xf32>
    %293 = arith.divf %291, %292 : vector<2x128xf32>
    %294 = vector.extract_strided_slice %271 {offsets = [0, 256], sizes = [2, 128], strides = [1, 1]} : vector<2x384xf32> to vector<2x128xf32>
    %295 = vector.extract_strided_slice %277 {offsets = [0, 256], sizes = [2, 128], strides = [1, 1]} : vector<2x384xf32> to vector<2x128xf32>
    %296 = arith.mulf %285, %295 : vector<2x128xf32>
    %297 = arith.addf %294, %296 : vector<2x128xf32>
    %298 = math.tanh %297 : vector<2x128xf32>
    %cst_78 = arith.constant 1.000000e+00 : f32
    %299 = vector.broadcast %cst_78 : f32 to vector<2x128xf32>
    %300 = arith.subf %299, %293 : vector<2x128xf32>
    %301 = arith.mulf %300, %298 : vector<2x128xf32>
    %302 = arith.mulf %293, %270 : vector<2x128xf32>
    %303 = arith.addf %301, %302 : vector<2x128xf32>
    %304 = vector.extract_strided_slice %5 {offsets = [18, 0], sizes = [2, 384], strides = [1, 1]} : vector<24x384xf32> to vector<2x384xf32>
    %305 = arith.truncf %303 : vector<2x128xf32> to vector<2x128xbf16>
    %c0_79 = arith.constant 0 : index
    %c0_80 = arith.constant 0 : index
    %306 = vector.load %arg7[%c0_79, %c0_80] : memref<128x384xbf16, #tpu.memory_space<vmem>>, vector<128x384xbf16>
    %cst_81 = arith.constant dense<0.000000e+00> : vector<2x384xf32>
    %307 = tpu.matmul %305, %306, %cst_81 {dimension_numbers = #tpu.dot_dimension_numbers<[1], [0], [0], [1], [0, 0, 1, 1], [], []>} : vector<2x128xbf16>, vector<128x384xbf16>, vector<2x384xf32> -> vector<2x384xf32>
    %c0_82 = arith.constant 0 : index
    %c0_83 = arith.constant 0 : index
    %308 = vector.load %arg9[%c0_82, %c0_83] : memref<1x384xf32, #tpu.memory_space<vmem>>, vector<1x384xf32>
    %309 = vector.broadcast %308 : vector<1x384xf32> to vector<2x384xf32>
    %310 = arith.addf %307, %309 : vector<2x384xf32>
    %311 = vector.extract_strided_slice %304 {offsets = [0, 0], sizes = [2, 128], strides = [1, 1]} : vector<2x384xf32> to vector<2x128xf32>
    %312 = vector.extract_strided_slice %310 {offsets = [0, 0], sizes = [2, 128], strides = [1, 1]} : vector<2x384xf32> to vector<2x128xf32>
    %313 = arith.addf %311, %312 : vector<2x128xf32>
    %314 = arith.negf %313 : vector<2x128xf32>
    %315 = math.exp %314 : vector<2x128xf32>
    %cst_84 = arith.constant 1.000000e+00 : f32
    %316 = vector.broadcast %cst_84 : f32 to vector<2x128xf32>
    %317 = arith.addf %316, %315 : vector<2x128xf32>
    %318 = arith.divf %316, %317 : vector<2x128xf32>
    %319 = vector.extract_strided_slice %304 {offsets = [0, 128], sizes = [2, 128], strides = [1, 1]} : vector<2x384xf32> to vector<2x128xf32>
    %320 = vector.extract_strided_slice %310 {offsets = [0, 128], sizes = [2, 128], strides = [1, 1]} : vector<2x384xf32> to vector<2x128xf32>
    %321 = arith.addf %319, %320 : vector<2x128xf32>
    %322 = arith.negf %321 : vector<2x128xf32>
    %323 = math.exp %322 : vector<2x128xf32>
    %cst_85 = arith.constant 1.000000e+00 : f32
    %324 = vector.broadcast %cst_85 : f32 to vector<2x128xf32>
    %325 = arith.addf %324, %323 : vector<2x128xf32>
    %326 = arith.divf %324, %325 : vector<2x128xf32>
    %327 = vector.extract_strided_slice %304 {offsets = [0, 256], sizes = [2, 128], strides = [1, 1]} : vector<2x384xf32> to vector<2x128xf32>
    %328 = vector.extract_strided_slice %310 {offsets = [0, 256], sizes = [2, 128], strides = [1, 1]} : vector<2x384xf32> to vector<2x128xf32>
    %329 = arith.mulf %318, %328 : vector<2x128xf32>
    %330 = arith.addf %327, %329 : vector<2x128xf32>
    %331 = math.tanh %330 : vector<2x128xf32>
    %cst_86 = arith.constant 1.000000e+00 : f32
    %332 = vector.broadcast %cst_86 : f32 to vector<2x128xf32>
    %333 = arith.subf %332, %326 : vector<2x128xf32>
    %334 = arith.mulf %333, %331 : vector<2x128xf32>
    %335 = arith.mulf %326, %303 : vector<2x128xf32>
    %336 = arith.addf %334, %335 : vector<2x128xf32>
    %337 = vector.extract_strided_slice %5 {offsets = [20, 0], sizes = [2, 384], strides = [1, 1]} : vector<24x384xf32> to vector<2x384xf32>
    %338 = arith.truncf %336 : vector<2x128xf32> to vector<2x128xbf16>
    %c0_87 = arith.constant 0 : index
    %c0_88 = arith.constant 0 : index
    %339 = vector.load %arg7[%c0_87, %c0_88] : memref<128x384xbf16, #tpu.memory_space<vmem>>, vector<128x384xbf16>
    %cst_89 = arith.constant dense<0.000000e+00> : vector<2x384xf32>
    %340 = tpu.matmul %338, %339, %cst_89 {dimension_numbers = #tpu.dot_dimension_numbers<[1], [0], [0], [1], [0, 0, 1, 1], [], []>} : vector<2x128xbf16>, vector<128x384xbf16>, vector<2x384xf32> -> vector<2x384xf32>
    %c0_90 = arith.constant 0 : index
    %c0_91 = arith.constant 0 : index
    %341 = vector.load %arg9[%c0_90, %c0_91] : memref<1x384xf32, #tpu.memory_space<vmem>>, vector<1x384xf32>
    %342 = vector.broadcast %341 : vector<1x384xf32> to vector<2x384xf32>
    %343 = arith.addf %340, %342 : vector<2x384xf32>
    %344 = vector.extract_strided_slice %337 {offsets = [0, 0], sizes = [2, 128], strides = [1, 1]} : vector<2x384xf32> to vector<2x128xf32>
    %345 = vector.extract_strided_slice %343 {offsets = [0, 0], sizes = [2, 128], strides = [1, 1]} : vector<2x384xf32> to vector<2x128xf32>
    %346 = arith.addf %344, %345 : vector<2x128xf32>
    %347 = arith.negf %346 : vector<2x128xf32>
    %348 = math.exp %347 : vector<2x128xf32>
    %cst_92 = arith.constant 1.000000e+00 : f32
    %349 = vector.broadcast %cst_92 : f32 to vector<2x128xf32>
    %350 = arith.addf %349, %348 : vector<2x128xf32>
    %351 = arith.divf %349, %350 : vector<2x128xf32>
    %352 = vector.extract_strided_slice %337 {offsets = [0, 128], sizes = [2, 128], strides = [1, 1]} : vector<2x384xf32> to vector<2x128xf32>
    %353 = vector.extract_strided_slice %343 {offsets = [0, 128], sizes = [2, 128], strides = [1, 1]} : vector<2x384xf32> to vector<2x128xf32>
    %354 = arith.addf %352, %353 : vector<2x128xf32>
    %355 = arith.negf %354 : vector<2x128xf32>
    %356 = math.exp %355 : vector<2x128xf32>
    %cst_93 = arith.constant 1.000000e+00 : f32
    %357 = vector.broadcast %cst_93 : f32 to vector<2x128xf32>
    %358 = arith.addf %357, %356 : vector<2x128xf32>
    %359 = arith.divf %357, %358 : vector<2x128xf32>
    %360 = vector.extract_strided_slice %337 {offsets = [0, 256], sizes = [2, 128], strides = [1, 1]} : vector<2x384xf32> to vector<2x128xf32>
    %361 = vector.extract_strided_slice %343 {offsets = [0, 256], sizes = [2, 128], strides = [1, 1]} : vector<2x384xf32> to vector<2x128xf32>
    %362 = arith.mulf %351, %361 : vector<2x128xf32>
    %363 = arith.addf %360, %362 : vector<2x128xf32>
    %364 = math.tanh %363 : vector<2x128xf32>
    %cst_94 = arith.constant 1.000000e+00 : f32
    %365 = vector.broadcast %cst_94 : f32 to vector<2x128xf32>
    %366 = arith.subf %365, %359 : vector<2x128xf32>
    %367 = arith.mulf %366, %364 : vector<2x128xf32>
    %368 = arith.mulf %359, %336 : vector<2x128xf32>
    %369 = arith.addf %367, %368 : vector<2x128xf32>
    %370 = vector.extract_strided_slice %5 {offsets = [22, 0], sizes = [2, 384], strides = [1, 1]} : vector<24x384xf32> to vector<2x384xf32>
    %371 = arith.truncf %369 : vector<2x128xf32> to vector<2x128xbf16>
    %c0_95 = arith.constant 0 : index
    %c0_96 = arith.constant 0 : index
    %372 = vector.load %arg7[%c0_95, %c0_96] : memref<128x384xbf16, #tpu.memory_space<vmem>>, vector<128x384xbf16>
    %cst_97 = arith.constant dense<0.000000e+00> : vector<2x384xf32>
    %373 = tpu.matmul %371, %372, %cst_97 {dimension_numbers = #tpu.dot_dimension_numbers<[1], [0], [0], [1], [0, 0, 1, 1], [], []>} : vector<2x128xbf16>, vector<128x384xbf16>, vector<2x384xf32> -> vector<2x384xf32>
    %c0_98 = arith.constant 0 : index
    %c0_99 = arith.constant 0 : index
    %374 = vector.load %arg9[%c0_98, %c0_99] : memref<1x384xf32, #tpu.memory_space<vmem>>, vector<1x384xf32>
    %375 = vector.broadcast %374 : vector<1x384xf32> to vector<2x384xf32>
    %376 = arith.addf %373, %375 : vector<2x384xf32>
    %377 = vector.extract_strided_slice %370 {offsets = [0, 0], sizes = [2, 128], strides = [1, 1]} : vector<2x384xf32> to vector<2x128xf32>
    %378 = vector.extract_strided_slice %376 {offsets = [0, 0], sizes = [2, 128], strides = [1, 1]} : vector<2x384xf32> to vector<2x128xf32>
    %379 = arith.addf %377, %378 : vector<2x128xf32>
    %380 = arith.negf %379 : vector<2x128xf32>
    %381 = math.exp %380 : vector<2x128xf32>
    %cst_100 = arith.constant 1.000000e+00 : f32
    %382 = vector.broadcast %cst_100 : f32 to vector<2x128xf32>
    %383 = arith.addf %382, %381 : vector<2x128xf32>
    %384 = arith.divf %382, %383 : vector<2x128xf32>
    %385 = vector.extract_strided_slice %370 {offsets = [0, 128], sizes = [2, 128], strides = [1, 1]} : vector<2x384xf32> to vector<2x128xf32>
    %386 = vector.extract_strided_slice %376 {offsets = [0, 128], sizes = [2, 128], strides = [1, 1]} : vector<2x384xf32> to vector<2x128xf32>
    %387 = arith.addf %385, %386 : vector<2x128xf32>
    %388 = arith.negf %387 : vector<2x128xf32>
    %389 = math.exp %388 : vector<2x128xf32>
    %cst_101 = arith.constant 1.000000e+00 : f32
    %390 = vector.broadcast %cst_101 : f32 to vector<2x128xf32>
    %391 = arith.addf %390, %389 : vector<2x128xf32>
    %392 = arith.divf %390, %391 : vector<2x128xf32>
    %393 = vector.extract_strided_slice %370 {offsets = [0, 256], sizes = [2, 128], strides = [1, 1]} : vector<2x384xf32> to vector<2x128xf32>
    %394 = vector.extract_strided_slice %376 {offsets = [0, 256], sizes = [2, 128], strides = [1, 1]} : vector<2x384xf32> to vector<2x128xf32>
    %395 = arith.mulf %384, %394 : vector<2x128xf32>
    %396 = arith.addf %393, %395 : vector<2x128xf32>
    %397 = math.tanh %396 : vector<2x128xf32>
    %cst_102 = arith.constant 1.000000e+00 : f32
    %398 = vector.broadcast %cst_102 : f32 to vector<2x128xf32>
    %399 = arith.subf %398, %392 : vector<2x128xf32>
    %400 = arith.mulf %399, %397 : vector<2x128xf32>
    %401 = arith.mulf %392, %369 : vector<2x128xf32>
    %402 = arith.addf %400, %401 : vector<2x128xf32>
    %c0_103 = arith.constant 0 : index
    %c0_104 = arith.constant 0 : index
    %403 = vector.load %arg17[%c0_103, %c0_104] : memref<2x128xf32, #tpu.memory_space<vmem>>, vector<2x128xf32>
    tpu.vector_store %arg17[%c0_103, %c0_104], %402 {strides = array<i32>} : memref<2x128xf32, #tpu.memory_space<vmem>>, vector<2x128xf32>,
    %c0_105 = arith.constant 0 : index
    %c0_106 = arith.constant 0 : index
    %404 = vector.load %arg5[%c0_105, %c0_106] : memref<2x10xf32, #tpu.memory_space<vmem>>, vector<2x10xf32>
    %405 = tpu.concatenate %402, %404 in 1 : vector<2x128xf32>, vector<2x10xf32> -> vector<2x138xf32>
    %c0_107 = arith.constant 0 : index
    %c0_108 = arith.constant 0 : index
    %406 = vector.load %arg11[%c0_107, %c0_108] : memref<64x138xf32, #tpu.memory_space<vmem>>, vector<64x138xf32>
    %cst_109 = arith.constant dense<0.000000e+00> : vector<64x2xf32>
    %407 = tpu.matmul %406, %405, %cst_109 {dimension_numbers = #tpu.dot_dimension_numbers<[1], [1], [0], [0], [0, 0, 1, 0], [], []>} : vector<64x138xf32>, vector<2x138xf32>, vector<64x2xf32> -> vector<64x2xf32>
    %c0_110 = arith.constant 0 : index
    %c0_111 = arith.constant 0 : index
    %408 = vector.load %arg12[%c0_110, %c0_111] : memref<64x1xf32, #tpu.memory_space<vmem>>, vector<64x1xf32>
    %409 = vector.broadcast %408 : vector<64x1xf32> to vector<64x2xf32>
    %410 = arith.addf %407, %409 : vector<64x2xf32>
    %cst_112 = arith.constant 0.000000e+00 : f32
    %411 = vector.broadcast %cst_112 : f32 to vector<12x256xf32>
    %c0_113 = arith.constant 0 : index
    %c0_114 = arith.constant 0 : index
    %412 = memref.load %arg0[%c0_113, %c0_114] : memref<2x1xf32, #tpu.memory_space<smem>>
    %c0_115 = arith.constant 0 : index
    %c0_116 = arith.constant 0 : index
    %c0_117 = arith.constant 0 : index
    %413 = vector.load %arg1[%c0_115, %c0_116, %c0_117] : memref<2x12x256xf32, #tpu.memory_space<vmem>>, vector<1x12x256xf32>
    %414 = vector.shape_cast %413 : vector<1x12x256xf32> to vector<12x256xf32>
    %c0_118 = arith.constant 0 : index
    %c0_119 = arith.constant 0 : index
    %c0_120 = arith.constant 0 : index
    %415 = vector.load %arg2[%c0_118, %c0_119, %c0_120] : memref<2x12x256xf32, #tpu.memory_space<vmem>>, vector<1x12x256xf32>
    %416 = vector.shape_cast %415 : vector<1x12x256xf32> to vector<12x256xf32>
    %417 = arith.subf %414, %416 : vector<12x256xf32>
    %418 = vector.broadcast %412 : f32 to vector<12x256xf32>
    %419 = arith.mulf %418, %417 : vector<12x256xf32>
    %420 = arith.addf %416, %419 : vector<12x256xf32>
    %c0_121 = arith.constant 0 : index
    %c0_122 = arith.constant 0 : index
    %421 = vector.load %arg10[%c0_121, %c0_122] : memref<64x1xf32, #tpu.memory_space<vmem>>, vector<64x1xf32>
    %422 = vector.broadcast %412 : f32 to vector<64x1xf32>
    %423 = arith.mulf %422, %421 : vector<64x1xf32>
    %424 = vector.extract_strided_slice %410 {offsets = [0, 0], sizes = [64, 1], strides = [1, 1]} : vector<64x2xf32> to vector<64x1xf32>
    %425 = arith.addf %423, %424 : vector<64x1xf32>
    %c0_123 = arith.constant 0 : index
    %c0_124 = arith.constant 0 : index
    %426 = vector.load %arg13[%c0_123, %c0_124] : memref<64x12xbf16, #tpu.memory_space<vmem>>, vector<64x12xbf16>
    %427 = arith.truncf %420 : vector<12x256xf32> to vector<12x256xbf16>
    %cst_125 = arith.constant dense<0.000000e+00> : vector<64x256xf32>
    %428 = tpu.matmul %426, %427, %cst_125 {dimension_numbers = #tpu.dot_dimension_numbers<[1], [0], [0], [1], [0, 0, 1, 1], [], []>} : vector<64x12xbf16>, vector<12x256xbf16>, vector<64x256xf32> -> vector<64x256xf32>
    %429 = vector.broadcast %425 : vector<64x1xf32> to vector<64x256xf32>
    %430 = arith.addf %428, %429 : vector<64x256xf32>
    %cst_126 = arith.constant 0.000000e+00 : f32
    %431 = vector.broadcast %cst_126 : f32 to vector<64x256xf32>
    %432 = arith.maximumf %430, %431 : vector<64x256xf32>
    %c0_127 = arith.constant 0 : index
    %c0_128 = arith.constant 0 : index
    %433 = vector.load %arg14[%c0_127, %c0_128] : memref<12x64xbf16, #tpu.memory_space<vmem>>, vector<12x64xbf16>
    %434 = arith.truncf %432 : vector<64x256xf32> to vector<64x256xbf16>
    %cst_129 = arith.constant dense<0.000000e+00> : vector<12x256xf32>
    %435 = tpu.matmul %433, %434, %cst_129 {dimension_numbers = #tpu.dot_dimension_numbers<[1], [0], [0], [1], [0, 0, 1, 1], [], []>} : vector<12x64xbf16>, vector<64x256xbf16>, vector<12x256xf32> -> vector<12x256xf32>
    %c0_130 = arith.constant 0 : index
    %c0_131 = arith.constant 0 : index
    %436 = vector.load %arg15[%c0_130, %c0_131] : memref<12x1xf32, #tpu.memory_space<vmem>>, vector<12x1xf32>
    %437 = vector.broadcast %436 : vector<12x1xf32> to vector<12x256xf32>
    %438 = arith.addf %435, %437 : vector<12x256xf32>
    %439 = arith.subf %438, %417 : vector<12x256xf32>
    %440 = arith.mulf %439, %439 : vector<12x256xf32>
    %441 = arith.addf %411, %440 : vector<12x256xf32>
    %c1 = arith.constant 1 : index
    %c0_132 = arith.constant 0 : index
    %442 = memref.load %arg0[%c1, %c0_132] : memref<2x1xf32, #tpu.memory_space<smem>>
    %c1_133 = arith.constant 1 : index
    %c0_134 = arith.constant 0 : index
    %c0_135 = arith.constant 0 : index
    %443 = vector.load %arg1[%c1_133, %c0_134, %c0_135] : memref<2x12x256xf32, #tpu.memory_space<vmem>>, vector<1x12x256xf32>
    %444 = vector.shape_cast %443 : vector<1x12x256xf32> to vector<12x256xf32>
    %c1_136 = arith.constant 1 : index
    %c0_137 = arith.constant 0 : index
    %c0_138 = arith.constant 0 : index
    %445 = vector.load %arg2[%c1_136, %c0_137, %c0_138] : memref<2x12x256xf32, #tpu.memory_space<vmem>>, vector<1x12x256xf32>
    %446 = vector.shape_cast %445 : vector<1x12x256xf32> to vector<12x256xf32>
    %447 = arith.subf %444, %446 : vector<12x256xf32>
    %448 = vector.broadcast %442 : f32 to vector<12x256xf32>
    %449 = arith.mulf %448, %447 : vector<12x256xf32>
    %450 = arith.addf %446, %449 : vector<12x256xf32>
    %c0_139 = arith.constant 0 : index
    %c0_140 = arith.constant 0 : index
    %451 = vector.load %arg10[%c0_139, %c0_140] : memref<64x1xf32, #tpu.memory_space<vmem>>, vector<64x1xf32>
    %452 = vector.broadcast %442 : f32 to vector<64x1xf32>
    %453 = arith.mulf %452, %451 : vector<64x1xf32>
    %454 = vector.extract_strided_slice %410 {offsets = [0, 1], sizes = [64, 1], strides = [1, 1]} : vector<64x2xf32> to vector<64x1xf32>
    %455 = arith.addf %453, %454 : vector<64x1xf32>
    %c0_141 = arith.constant 0 : index
    %c0_142 = arith.constant 0 : index
    %456 = vector.load %arg13[%c0_141, %c0_142] : memref<64x12xbf16, #tpu.memory_space<vmem>>, vector<64x12xbf16>
    %457 = arith.truncf %450 : vector<12x256xf32> to vector<12x256xbf16>
    %cst_143 = arith.constant dense<0.000000e+00> : vector<64x256xf32>
    %458 = tpu.matmul %456, %457, %cst_143 {dimension_numbers = #tpu.dot_dimension_numbers<[1], [0], [0], [1], [0, 0, 1, 1], [], []>} : vector<64x12xbf16>, vector<12x256xbf16>, vector<64x256xf32> -> vector<64x256xf32>
    %459 = vector.broadcast %455 : vector<64x1xf32> to vector<64x256xf32>
    %460 = arith.addf %458, %459 : vector<64x256xf32>
    %cst_144 = arith.constant 0.000000e+00 : f32
    %461 = vector.broadcast %cst_144 : f32 to vector<64x256xf32>
    %462 = arith.maximumf %460, %461 : vector<64x256xf32>
    %c0_145 = arith.constant 0 : index
    %c0_146 = arith.constant 0 : index
    %463 = vector.load %arg14[%c0_145, %c0_146] : memref<12x64xbf16, #tpu.memory_space<vmem>>, vector<12x64xbf16>
    %464 = arith.truncf %462 : vector<64x256xf32> to vector<64x256xbf16>
    %cst_147 = arith.constant dense<0.000000e+00> : vector<12x256xf32>
    %465 = tpu.matmul %463, %464, %cst_147 {dimension_numbers = #tpu.dot_dimension_numbers<[1], [0], [0], [1], [0, 0, 1, 1], [], []>} : vector<12x64xbf16>, vector<64x256xbf16>, vector<12x256xf32> -> vector<12x256xf32>
    %c0_148 = arith.constant 0 : index
    %c0_149 = arith.constant 0 : index
    %466 = vector.load %arg15[%c0_148, %c0_149] : memref<12x1xf32, #tpu.memory_space<vmem>>, vector<12x1xf32>
    %467 = vector.broadcast %466 : vector<12x1xf32> to vector<12x256xf32>
    %468 = arith.addf %465, %467 : vector<12x256xf32>
    %469 = arith.subf %468, %447 : vector<12x256xf32>
    %470 = arith.mulf %469, %469 : vector<12x256xf32>
    %471 = arith.addf %441, %470 : vector<12x256xf32>
    %472 = vector.shape_cast %471 : vector<12x256xf32> to vector<1x12x256xf32>
    %cst_150 = arith.constant dense<0.000000e+00> : vector<1xf32>
    %473 = vector.multi_reduction <add>, %472, %cst_150 [1, 2] : vector<1x12x256xf32> to vector<1xf32>
    %474 = vector.shape_cast %473 : vector<1xf32> to vector<1x1x1xf32>
    %475 = vector.extract %474[0, 0, 0] : f32 from vector<1x1x1xf32>
    %cst_151 = arith.constant 1.62760422E-4 : f32
    %476 = arith.mulf %475, %cst_151 : f32
    %c0_152 = arith.constant 0 : index
    %c0_153 = arith.constant 0 : index
    %477 = memref.load %arg16[%c0_152, %c0_153] : memref<1x1xf32, #tpu.memory_space<smem>>
    memref.store %476, %arg16[%c0_152, %c0_153] : memref<1x1xf32, #tpu.memory_space<smem>>
    return
  }
}

</mosaic_0001>

<llo_original>
// kernel: flow_matching_forward.3
$region0: #{flow_matching_forward.3}
  #allocation0 [shape = 'u32[]', space=smem, size = 0x4, offset = 0x4, fixed_abs, tag = 'smem constant byte address 0x4 - core index']
  #allocation1 [shape = 'u32[144,128]{1,0:T(1,128)}', space=vmem, size = 0x12000, scoped, tag = 'internal scratch']
  %s0 = inlined_call_operand.vmem [shape: f32[2,1], index: 0, kind: input, shape index: {}]
  %s1 = inlined_call_operand.vmem [shape: f32[2,12,256], index: 1, kind: input, shape index: {}]
  %s2 = inlined_call_operand.vmem [shape: f32[2,12,256], index: 2, kind: input, shape index: {}]
  %s3 = inlined_call_operand.vmem [shape: bf16[24,256], index: 3, kind: input, shape index: {}]
  %s4 = inlined_call_operand.vmem [shape: f32[2,128], index: 4, kind: input, shape index: {}]
  %s5 = inlined_call_operand.vmem [shape: f32[2,10], index: 5, kind: input, shape index: {}]
  %s6 = inlined_call_operand.vmem [shape: bf16[256,384], index: 6, kind: input, shape index: {}]
  %s7 = inlined_call_operand.vmem [shape: bf16[128,384], index: 7, kind: input, shape index: {}]
  %s8 = inlined_call_operand.vmem [shape: f32[1,384], index: 8, kind: input, shape index: {}]
  %s9 = inlined_call_operand.vmem [shape: f32[1,384], index: 9, kind: input, shape index: {}]
  %s10 = inlined_call_operand.vmem [shape: f32[64,1], index: 10, kind: input, shape index: {}]
  %s11 = inlined_call_operand.vmem [shape: f32[64,138], index: 11, kind: input, shape index: {}]
  %s12 = inlined_call_operand.vmem [shape: f32[64,1], index: 12, kind: input, shape index: {}]
  %s13 = inlined_call_operand.vmem [shape: bf16[64,12], index: 13, kind: input, shape index: {}]
  %s14 = inlined_call_operand.vmem [shape: bf16[12,64], index: 14, kind: input, shape index: {}]
  %s15 = inlined_call_operand.vmem [shape: f32[12,1], index: 15, kind: input, shape index: {}]
  %s16 = inlined_call_operand.hbm [shape: f32[1,1], index: 16, kind: output, shape index: {0}]
  %s17 = inlined_call_operand.hbm [shape: f32[2,128], index: 17, kind: output, shape index: {1}]
  %18 = xla_tuple %s16, %s17
  %s19 = sld [smem:[#allocation0]]
  $region86: #{flow_matching_forward.3} parent=0
    _
  %s21 = ssub.s32 1, %s19
  %s22 = scalar_select 0, %s21, %s19
  $region1: #{flow_matching_forward.3} parent=0
    #allocation2 [shape = 'u8[1024]{0}', space=smem, size = 0x400, scoped, tag = 'input window, operand 0, single buffered']
    #allocation3 [shape = 's32[1]{0}', space=sflag, size = 0x4, scoped, tag = 'scoped memory for flow_matching_forward.3']
    #allocation4 [shape = 's32[1]{0}', space=sflag, size = 0x4, scoped, tag = 'scoped memory for flow_matching_forward.3']
    #allocation5 [shape = 's32[1]{0}', space=sflag, size = 0x4, scoped, tag = 'scoped memory for flow_matching_forward.3']
    #allocation6 [shape = 'u8[512]{0}', space=smem, size = 0x200, scoped, tag = 'output window, operand 0, single buffered']
    #allocation7 [shape = 'u8[1024]{0}', space=vmem, size = 0x400, scoped, tag = 'output window, operand 1, single buffered']
    %23 = vsyncpa [#allocation5], 0
    %24 = vsyncpa [#allocation4], 0
    %25 = vsyncpa [#allocation3], 0
    // Predicated region
    $region2: #{flow_matching_forward.3} parent=1 // pred_check
      _
    $region3: #{flow_matching_forward.3} parent=1 // pred_check_branch
      %27 = sbr.rel (0) target = $region5
    $region4: #{flow_matching_forward.3} parent=1 // pred_region
      %s29 = ssub.s32 32, 32
      %30 = vsyncadd [#allocation5], %s29
      %s32 = sshll.u32 %s0, 4
      %s33 = int_to_ptr.vmem [resolvable:$true] %s32
      %35 = dma.vmem_to_smem %s33, 32, [#allocation2], [#allocation5]
    $region5: #{flow_matching_forward.3} parent=1 // pred_fallthru
      _
    // Predicated region
    $region6: #{flow_matching_forward.3} parent=1 // pred_check
      _
    $region7: #{flow_matching_forward.3} parent=1 // pred_check_branch
      %37 = sbr.rel (0) target = $region9
    $region8: #{flow_matching_forward.3} parent=1 // pred_region
      _
    $region9: #{flow_matching_forward.3} parent=1 // pred_fallthru
      _
    // Predicated region
    $region10: #{flow_matching_forward.3} parent=1 // pred_check
      _
    $region11: #{flow_matching_forward.3} parent=1 // pred_check_branch
      %39 = sbr.rel (0) target = $region13
    $region12: #{flow_matching_forward.3} parent=1 // pred_region
      _
    $region13: #{flow_matching_forward.3} parent=1 // pred_fallthru
      _
    // Predicated region
    $region14: #{flow_matching_forward.3} parent=1 // pred_check
      _
    $region15: #{flow_matching_forward.3} parent=1 // pred_check_branch
      %41 = sbr.rel (0) target = $region17
    $region16: #{flow_matching_forward.3} parent=1 // pred_region
      _
    $region17: #{flow_matching_forward.3} parent=1 // pred_fallthru
      _
    // Predicated region
    $region18: #{flow_matching_forward.3} parent=1 // pred_check
      _
    $region19: #{flow_matching_forward.3} parent=1 // pred_check_branch
      %43 = sbr.rel (0) target = $region21
    $region20: #{flow_matching_forward.3} parent=1 // pred_region
      _
    $region21: #{flow_matching_forward.3} parent=1 // pred_fallthru
      _
    // Predicated region
    $region22: #{flow_matching_forward.3} parent=1 // pred_check
      _
    $region23: #{flow_matching_forward.3} parent=1 // pred_check_branch
      %45 = sbr.rel (0) target = $region25
    $region24: #{flow_matching_forward.3} parent=1 // pred_region
      _
    $region25: #{flow_matching_forward.3} parent=1 // pred_fallthru
      _
    // Predicated region
    $region26: #{flow_matching_forward.3} parent=1 // pred_check
      _
    $region27: #{flow_matching_forward.3} parent=1 // pred_check_branch
      %47 = sbr.rel (0) target = $region29
    $region28: #{flow_matching_forward.3} parent=1 // pred_region
      _
    $region29: #{flow_matching_forward.3} parent=1 // pred_fallthru
      _
    // Predicated region
    $region30: #{flow_matching_forward.3} parent=1 // pred_check
      _
    $region31: #{flow_matching_forward.3} parent=1 // pred_check_branch
      %49 = sbr.rel (0) target = $region33
    $region32: #{flow_matching_forward.3} parent=1 // pred_region
      _
    $region33: #{flow_matching_forward.3} parent=1 // pred_fallthru
      _
    // Predicated region
    $region34: #{flow_matching_forward.3} parent=1 // pred_check
      _
    $region35: #{flow_matching_forward.3} parent=1 // pred_check_branch
      %51 = sbr.rel (0) target = $region37
    $region36: #{flow_matching_forward.3} parent=1 // pred_region
      _
    $region37: #{flow_matching_forward.3} parent=1 // pred_fallthru
      _
    // Predicated region
    $region38: #{flow_matching_forward.3} parent=1 // pred_check
      _
    $region39: #{flow_matching_forward.3} parent=1 // pred_check_branch
      %53 = sbr.rel (0) target = $region41
    $region40: #{flow_matching_forward.3} parent=1 // pred_region
      _
    $region41: #{flow_matching_forward.3} parent=1 // pred_fallthru
      _
    // Predicated region
    $region42: #{flow_matching_forward.3} parent=1 // pred_check
      _
    $region43: #{flow_matching_forward.3} parent=1 // pred_check_branch
      %55 = sbr.rel (0) target = $region45
    $region44: #{flow_matching_forward.3} parent=1 // pred_region
      _
    $region45: #{flow_matching_forward.3} parent=1 // pred_fallthru
      _
    // Predicated region
    $region46: #{flow_matching_forward.3} parent=1 // pred_check
      _
    $region47: #{flow_matching_forward.3} parent=1 // pred_check_branch
      %57 = sbr.rel (0) target = $region49
    $region48: #{flow_matching_forward.3} parent=1 // pred_region
      _
    $region49: #{flow_matching_forward.3} parent=1 // pred_fallthru
      _
    // Predicated region
    $region50: #{flow_matching_forward.3} parent=1 // pred_check
      _
    $region51: #{flow_matching_forward.3} parent=1 // pred_check_branch
      %59 = sbr.rel (0) target = $region53
    $region52: #{flow_matching_forward.3} parent=1 // pred_region
      _
    $region53: #{flow_matching_forward.3} parent=1 // pred_fallthru
      _
    // Predicated region
    $region54: #{flow_matching_forward.3} parent=1 // pred_check
      _
    $region55: #{flow_matching_forward.3} parent=1 // pred_check_branch
      %61 = sbr.rel (0) target = $region57
    $region56: #{flow_matching_forward.3} parent=1 // pred_region
      _
    $region57: #{flow_matching_forward.3} parent=1 // pred_fallthru
      _
    // Predicated region
    $region58: #{flow_matching_forward.3} parent=1 // pred_check
      _
    $region59: #{flow_matching_forward.3} parent=1 // pred_check_branch
      %63 = sbr.rel (0) target = $region61
    $region60: #{flow_matching_forward.3} parent=1 // pred_region
      _
    $region61: #{flow_matching_forward.3} parent=1 // pred_fallthru
      _
    // Predicated region
    $region62: #{flow_matching_forward.3} parent=1 // pred_check
      _
    $region63: #{flow_matching_forward.3} parent=1 // pred_check_branch
      %65 = sbr.rel (0) target = $region65
    $region64: #{flow_matching_forward.3} parent=1 // pred_region
      _
    $region65: #{flow_matching_forward.3} parent=1 // pred_fallthru
      _
    // Predicated region
    $region66: #{flow_matching_forward.3} parent=1 // pred_check
      _
    $region67: #{flow_matching_forward.3} parent=1 // pred_check_branch
      %67 = sbr.rel (0) target = $region69
    $region68: #{flow_matching_forward.3} parent=1 // pred_region
      %68 = dma.done [#allocation5], 32
    $region69: #{flow_matching_forward.3} parent=1 // pred_fallthru
      _
    %69 = sfence
    %v71 = vld [vmem:[%s3] sm:$0xff]
    %v72 = vld [vmem:[%s3 + $0x8] sm:$0xff]
    %v73 = vld [vmem:[%s3 + $0x10] sm:$0xff]
    %v74 = vld [vmem:[%s6] sm:$0xff]
    %v75 = vld [vmem:[%s6 + $0x8] sm:$0xf]
    %v76 = vld [vmem:[%s6 + $0xc] sm:$0xff]
    %v77 = vld [vmem:[%s6 + $0x14] sm:$0xf]
    %v78 = vld [vmem:[%s6 + $0x18] sm:$0xff]
    %v79 = vld [vmem:[%s6 + $0x20] sm:$0xf]
    %v80 = vld [vmem:[%s6 + $0x24] sm:$0xff]
    %v81 = vld [vmem:[%s6 + $0x2c] sm:$0xf]
    %v82 = vld [vmem:[%s6 + $0x30] sm:$0xff]
    %v83 = vld [vmem:[%s6 + $0x38] sm:$0xf]
    %v84 = vld [vmem:[%s6 + $0x3c] sm:$0xff]
    %v85 = vld [vmem:[%s6 + $0x44] sm:$0xf]
    %v86 = vld [vmem:[%s6 + $0x48] sm:$0xff]
    %v87 = vld [vmem:[%s6 + $0x50] sm:$0xf]
    %v88 = vld [vmem:[%s6 + $0x54] sm:$0xff]
    %v89 = vld [vmem:[%s6 + $0x5c] sm:$0xf]
    %v90 = vld [vmem:[%s6 + $0x60] sm:$0xff]
    %v91 = vld [vmem:[%s6 + $0x68] sm:$0xf]
    %v92 = vld [vmem:[%s6 + $0x6c] sm:$0xff]
    %v93 = vld [vmem:[%s6 + $0x74] sm:$0xf]
    %v94 = vld [vmem:[%s6 + $0x78] sm:$0xff]
    %v95 = vld [vmem:[%s6 + $0x80] sm:$0xf]
    %v96 = vld [vmem:[%s6 + $0x84] sm:$0xff]
    %v97 = vld [vmem:[%s6 + $0x8c] sm:$0xf]
    %v98 = vld [vmem:[%s6 + $0x90] sm:$0xff]
    %v99 = vld [vmem:[%s6 + $0x98] sm:$0xf]
    %v100 = vld [vmem:[%s6 + $0x9c] sm:$0xff]
    %v101 = vld [vmem:[%s6 + $0xa4] sm:$0xf]
    %v102 = vld [vmem:[%s6 + $0xa8] sm:$0xff]
    %v103 = vld [vmem:[%s6 + $0xb0] sm:$0xf]
    %v104 = vld [vmem:[%s6 + $0xb4] sm:$0xff]
    %v105 = vld [vmem:[%s6 + $0xbc] sm:$0xf]
    %v106 = vld [vmem:[%s6 + $0xc0] sm:$0xff]
    %v107 = vld [vmem:[%s6 + $0xc8] sm:$0xf]
    %v108 = vld [vmem:[%s6 + $0xcc] sm:$0xff]
    %v109 = vld [vmem:[%s6 + $0xd4] sm:$0xf]
    %v110 = vld [vmem:[%s6 + $0xd8] sm:$0xff]
    %v111 = vld [vmem:[%s6 + $0xe0] sm:$0xf]
    %v112 = vld [vmem:[%s6 + $0xe4] sm:$0xff]
    %v113 = vld [vmem:[%s6 + $0xec] sm:$0xf]
    %v114 = vld [vmem:[%s6 + $0xf0] sm:$0xff]
    %v115 = vld [vmem:[%s6 + $0xf8] sm:$0xf]
    %v116 = vld [vmem:[%s6 + $0xfc] sm:$0xff]
    %v117 = vld [vmem:[%s6 + $0x104] sm:$0xf]
    %v118 = vld [vmem:[%s6 + $0x108] sm:$0xff]
    %v119 = vld [vmem:[%s6 + $0x110] sm:$0xf]
    %v120 = vld [vmem:[%s6 + $0x114] sm:$0xff]
    %v121 = vld [vmem:[%s6 + $0x11c] sm:$0xf]
    %v122 = vld [vmem:[%s6 + $0x120] sm:$0xff]
    %v123 = vld [vmem:[%s6 + $0x128] sm:$0xf]
    %v124 = vld [vmem:[%s6 + $0x12c] sm:$0xff]
    %v125 = vld [vmem:[%s6 + $0x134] sm:$0xf]
    %v126 = vld [vmem:[%s6 + $0x138] sm:$0xff]
    %v127 = vld [vmem:[%s6 + $0x140] sm:$0xf]
    %v128 = vld [vmem:[%s6 + $0x144] sm:$0xff]
    %v129 = vld [vmem:[%s6 + $0x14c] sm:$0xf]
    %v130 = vld [vmem:[%s6 + $0x150] sm:$0xff]
    %v131 = vld [vmem:[%s6 + $0x158] sm:$0xf]
    %v132 = vld [vmem:[%s6 + $0x15c] sm:$0xff]
    %v133 = vld [vmem:[%s6 + $0x164] sm:$0xf]
    %v134 = vld [vmem:[%s6 + $0x168] sm:$0xff]
    %v135 = vld [vmem:[%s6 + $0x170] sm:$0xf]
    %v136 = vld [vmem:[%s6 + $0x174] sm:$0xff]
    %v137 = vld [vmem:[%s6 + $0x17c] sm:$0xf]
    %v138 = vld [vmem:[%s8] sm:$0x7]
    %v140 = vlaneseq
    %v141 = vshrl.u32 %v140, 7
    %v142 = vsub.s32 0, %v141
    %v143 = vrot.slane %v138, %v142
    %v144 = vlaneseq
    %v145 = vshrl.u32 %v144, 7
    %v146 = vsub.s32 1, %v145
    %v147 = vrot.slane %v138, %v146
    %v148 = vlaneseq
    %v149 = vshrl.u32 %v148, 7
    %v150 = vsub.s32 2, %v149
    %v151 = vrot.slane %v138, %v150
    %v158 = vunpack.c.l.b16 %v71
    %v159 = vunpack.c.h.b16 %v71
    %v160 = vunpack.c.l.b16 %v72
    %v161 = vunpack.c.h.b16 %v72
    %v162 = vunpack.c.l.b16 %v73
    %v163 = vunpack.c.h.b16 %v73
    %v164 = vpack.c.b16 %v160, %v158
    %v165 = vpack.c.b16 %v161, %v159
    %v166 = vpack.c.b16 %v162, %v162
    %v167 = vpack.c.b16 %v163, %v163
    %v236 = vunpack.c.l.b16 %v74
    %v237 = vunpack.c.h.b16 %v74
    %v238 = vunpack.c.l.b16 %v75
    %v239 = vunpack.c.l.b16 %v76
    %v240 = vunpack.c.h.b16 %v76
    %v241 = vunpack.c.l.b16 %v77
    %v242 = vunpack.c.l.b16 %v78
    %v243 = vunpack.c.h.b16 %v78
    %v244 = vunpack.c.l.b16 %v79
    %v245 = vunpack.c.l.b16 %v80
    %v246 = vunpack.c.h.b16 %v80
    %v247 = vunpack.c.l.b16 %v81
    %v248 = vunpack.c.l.b16 %v82
    %v249 = vunpack.c.h.b16 %v82
    %v250 = vunpack.c.l.b16 %v83
    %v251 = vunpack.c.l.b16 %v84
    %v252 = vunpack.c.h.b16 %v84
    %v253 = vunpack.c.l.b16 %v85
    %v254 = vunpack.c.l.b16 %v86
    %v255 = vunpack.c.h.b16 %v86
    %v256 = vunpack.c.l.b16 %v87
    %v257 = vunpack.c.l.b16 %v88
    %v258 = vunpack.c.h.b16 %v88
    %v259 = vunpack.c.l.b16 %v89
    %v260 = vunpack.c.l.b16 %v90
    %v261 = vunpack.c.h.b16 %v90
    %v262 = vunpack.c.l.b16 %v91
    %v263 = vunpack.c.l.b16 %v92
    %v264 = vunpack.c.h.b16 %v92
    %v265 = vunpack.c.l.b16 %v93
    %v266 = vunpack.c.l.b16 %v94
    %v267 = vunpack.c.h.b16 %v94
    %v268 = vunpack.c.l.b16 %v95
    %v269 = vunpack.c.l.b16 %v96
    %v270 = vunpack.c.h.b16 %v96
    %v271 = vunpack.c.l.b16 %v97
    %v272 = vunpack.c.l.b16 %v98
    %v273 = vunpack.c.h.b16 %v98
    %v274 = vunpack.c.l.b16 %v99
    %v275 = vunpack.c.l.b16 %v100
    %v276 = vunpack.c.h.b16 %v100
    %v277 = vunpack.c.l.b16 %v101
    %v278 = vunpack.c.l.b16 %v102
    %v279 = vunpack.c.h.b16 %v102
    %v280 = vunpack.c.l.b16 %v103
    %v281 = vunpack.c.l.b16 %v104
    %v282 = vunpack.c.h.b16 %v104
    %v283 = vunpack.c.l.b16 %v105
    %v284 = vunpack.c.l.b16 %v106
    %v285 = vunpack.c.h.b16 %v106
    %v286 = vunpack.c.l.b16 %v107
    %v287 = vunpack.c.l.b16 %v108
    %v288 = vunpack.c.h.b16 %v108
    %v289 = vunpack.c.l.b16 %v109
    %v290 = vunpack.c.l.b16 %v110
    %v291 = vunpack.c.h.b16 %v110
    %v292 = vunpack.c.l.b16 %v111
    %v293 = vunpack.c.l.b16 %v112
    %v294 = vunpack.c.h.b16 %v112
    %v295 = vunpack.c.l.b16 %v113
    %v296 = vunpack.c.l.b16 %v114
    %v297 = vunpack.c.h.b16 %v114
    %v298 = vunpack.c.l.b16 %v115
    %v299 = vunpack.c.l.b16 %v116
    %v300 = vunpack.c.h.b16 %v116
    %v301 = vunpack.c.l.b16 %v117
    %v302 = vunpack.c.l.b16 %v118
    %v303 = vunpack.c.h.b16 %v118
    %v304 = vunpack.c.l.b16 %v119
    %v305 = vunpack.c.l.b16 %v120
    %v306 = vunpack.c.h.b16 %v120
    %v307 = vunpack.c.l.b16 %v121
    %v308 = vunpack.c.l.b16 %v122
    %v309 = vunpack.c.h.b16 %v122
    %v310 = vunpack.c.l.b16 %v123
    %v311 = vunpack.c.l.b16 %v124
    %v312 = vunpack.c.h.b16 %v124
    %v313 = vunpack.c.l.b16 %v125
    %v314 = vunpack.c.l.b16 %v126
    %v315 = vunpack.c.h.b16 %v126
    %v316 = vunpack.c.l.b16 %v127
    %v317 = vunpack.c.l.b16 %v128
    %v318 = vunpack.c.h.b16 %v128
    %v319 = vunpack.c.l.b16 %v129
    %v320 = vunpack.c.l.b16 %v130
    %v321 = vunpack.c.h.b16 %v130
    %v322 = vunpack.c.l.b16 %v131
    %v323 = vunpack.c.l.b16 %v132
    %v324 = vunpack.c.h.b16 %v132
    %v325 = vunpack.c.l.b16 %v133
    %v326 = vunpack.c.l.b16 %v134
    %v327 = vunpack.c.h.b16 %v134
    %v328 = vunpack.c.l.b16 %v135
    %v329 = vunpack.c.l.b16 %v136
    %v330 = vunpack.c.h.b16 %v136
    %v331 = vunpack.c.l.b16 %v137
    %v332 = vpack.c.b16 %v239, %v236
    %v333 = vpack.c.b16 %v240, %v237
    %v334 = vpack.c.b16 %v241, %v238
    %v335 = vpack.c.b16 %v245, %v242
    %v336 = vpack.c.b16 %v246, %v243
    %v337 = vpack.c.b16 %v247, %v244
    %v338 = vpack.c.b16 %v251, %v248
    %v339 = vpack.c.b16 %v252, %v249
    %v340 = vpack.c.b16 %v253, %v250
    %v341 = vpack.c.b16 %v257, %v254
    %v342 = vpack.c.b16 %v258, %v255
    %v343 = vpack.c.b16 %v259, %v256
    %v344 = vpack.c.b16 %v263, %v260
    %v345 = vpack.c.b16 %v264, %v261
    %v346 = vpack.c.b16 %v265, %v262
    %v347 = vpack.c.b16 %v269, %v266
    %v348 = vpack.c.b16 %v270, %v267
    %v349 = vpack.c.b16 %v271, %v268
    %v350 = vpack.c.b16 %v275, %v272
    %v351 = vpack.c.b16 %v276, %v273
    %v352 = vpack.c.b16 %v277, %v274
    %v353 = vpack.c.b16 %v281, %v278
    %v354 = vpack.c.b16 %v282, %v279
    %v355 = vpack.c.b16 %v283, %v280
    %v356 = vpack.c.b16 %v287, %v284
    %v357 = vpack.c.b16 %v288, %v285
    %v358 = vpack.c.b16 %v289, %v286
    %v359 = vpack.c.b16 %v293, %v290
    %v360 = vpack.c.b16 %v294, %v291
    %v361 = vpack.c.b16 %v295, %v292
    %v362 = vpack.c.b16 %v299, %v296
    %v363 = vpack.c.b16 %v300, %v297
    %v364 = vpack.c.b16 %v301, %v298
    %v365 = vpack.c.b16 %v305, %v302
    %v366 = vpack.c.b16 %v306, %v303
    %v367 = vpack.c.b16 %v307, %v304
    %v368 = vpack.c.b16 %v311, %v308
    %v369 = vpack.c.b16 %v312, %v309
    %v370 = vpack.c.b16 %v313, %v310
    %v371 = vpack.c.b16 %v317, %v314
    %v372 = vpack.c.b16 %v318, %v315
    %v373 = vpack.c.b16 %v319, %v316
    %v374 = vpack.c.b16 %v323, %v320
    %v375 = vpack.c.b16 %v324, %v321
    %v376 = vpack.c.b16 %v325, %v322
    %v377 = vpack.c.b16 %v329, %v326
    %v378 = vpack.c.b16 %v330, %v327
    %v379 = vpack.c.b16 %v331, %v328
    %428 = vmatprep.subr.bf16.mxu0 %v333
    %429 = vmatpush1.bf16.msra.mxu0 %v332
    %430 = vmatprep.subr.bf16.mxu0 %v336
    %431 = vmatpush1.bf16.msra.mxu0 %v335
    %432 = vmatprep.subr.bf16.mxu0 %v339
    %433 = vmatpush1.bf16.msra.mxu0 %v338
    %434 = vmatprep.subr.bf16.mxu0 %v342
    %435 = vmatpush1.bf16.msra.mxu0 %v341
    %436 = vmatprep.subr.bf16.mxu0 %v345
    %437 = vmatpush1.bf16.msra.mxu0 %v344
    %438 = vmatprep.subr.bf16.mxu0 %v348
    %439 = vmatpush1.bf16.msra.mxu0 %v347
    %440 = vmatprep.subr.bf16.mxu0 %v351
    %441 = vmatpush1.bf16.msra.mxu0 %v350
    %442 = vmatprep.subr.bf16.mxu0 %v354
    %443 = vmatpush1.bf16.msra.mxu0 %v353
    %444 = vmatprep.subr.bf16.mxu0 %v357
    %445 = vmatpush1.bf16.msra.mxu0 %v356
    %446 = vmatprep.subr.bf16.mxu0 %v360
    %447 = vmatpush1.bf16.msra.mxu0 %v359
    %448 = vmatprep.subr.bf16.mxu0 %v363
    %449 = vmatpush1.bf16.msra.mxu0 %v362
    %450 = vmatprep.subr.bf16.mxu0 %v366
    %451 = vmatpush1.bf16.msra.mxu0 %v365
    %452 = vmatprep.subr.bf16.mxu0 %v369
    %453 = vmatpush1.bf16.msra.mxu0 %v368
    %454 = vmatprep.subr.bf16.mxu0 %v372
    %455 = vmatpush1.bf16.msra.mxu0 %v371
    %456 = vmatprep.subr.bf16.mxu0 %v375
    %457 = vmatpush1.bf16.msra.mxu0 %v374
    %458 = vmatprep.subr.bf16.mxu0 %v378
    %459 = vmatpush1.bf16.msra.mxu0 %v377
    %460 = vmatprep.mubr.bf16.mxu0 %v165
    %461 = vmatmul.mubr.bf16.gmra.mrb[0].mxu0 %v164
    %v462 = vpop.f32.mrb[0].mxu0
    %v463 = vadd.f32 %v143, %v462
    %v464 = vpop.f32.mrb[0].mxu0
    %v465 = vadd.f32 %v147, %v464
    %v466 = vpop.f32.mrb[0].mxu0
    %v467 = vadd.f32 %v143, %v466
    %v468 = vpop.f32.mrb[0].mxu0
    %v469 = vadd.f32 %v147, %v468
    %470 = vmatprep.mubr.bf16.mxu0 %v167
    %471 = vmatmul.mubr.bf16.gmra.mrb[0].mxu0 %v166
    %v472 = vpop.f32.mrb[0].mxu0
    %v473 = vadd.f32 %v143, %v472
    %v474 = vpop.f32.mrb[0].mxu0
    %v475 = vadd.f32 %v147, %v474
    %v476 = vpop.f32.mrb[0].mxu0
    %v477 = vpop.f32.mrb[0].mxu0
    %478 = vdwg.mxu0
    %479 = vmatprep.subr.bf16.mxu0 0
    %480 = vmatpush1.bf16.msra.mxu0 %v334
    %481 = vmatprep.subr.bf16.mxu0 0
    %482 = vmatpush1.bf16.msra.mxu0 %v337
    %483 = vmatprep.subr.bf16.mxu0 0
    %484 = vmatpush1.bf16.msra.mxu0 %v340
    %485 = vmatprep.subr.bf16.mxu0 0
    %486 = vmatpush1.bf16.msra.mxu0 %v343
    %487 = vmatprep.subr.bf16.mxu0 0
    %488 = vmatpush1.bf16.msra.mxu0 %v346
    %489 = vmatprep.subr.bf16.mxu0 0
    %490 = vmatpush1.bf16.msra.mxu0 %v349
    %491 = vmatprep.subr.bf16.mxu0 0
    %492 = vmatpush1.bf16.msra.mxu0 %v352
    %493 = vmatprep.subr.bf16.mxu0 0
    %494 = vmatpush1.bf16.msra.mxu0 %v355
    %495 = vmatprep.subr.bf16.mxu0 0
    %496 = vmatpush1.bf16.msra.mxu0 %v358
    %497 = vmatprep.subr.bf16.mxu0 0
    %498 = vmatpush1.bf16.msra.mxu0 %v361
    %499 = vmatprep.subr.bf16.mxu0 0
    %500 = vmatpush1.bf16.msra.mxu0 %v364
    %501 = vmatprep.subr.bf16.mxu0 0
    %502 = vmatpush1.bf16.msra.mxu0 %v367
    %503 = vmatprep.subr.bf16.mxu0 0
    %504 = vmatpush1.bf16.msra.mxu0 %v370
    %505 = vmatprep.subr.bf16.mxu0 0
    %506 = vmatpush1.bf16.msra.mxu0 %v373
    %507 = vmatprep.subr.bf16.mxu0 0
    %508 = vmatpush1.bf16.msra.mxu0 %v376
    %509 = vmatprep.subr.bf16.mxu0 0
    %510 = vmatpush1.bf16.msra.mxu0 %v379
    %511 = vmatprep.mubr.bf16.mxu0 %v165
    %512 = vmatmul.mubr.bf16.gmra.mrb[0].mxu0 %v164
    %v513 = vpop.f32.mrb[0].mxu0
    %v514 = vadd.f32 %v151, %v513
    %v515 = vpop.f32.mrb[0].mxu0
    %v516 = vpop.f32.mrb[0].mxu0
    %v517 = vadd.f32 %v151, %v516
    %v518 = vpop.f32.mrb[0].mxu0
    %519 = vmatprep.mubr.bf16.mxu0 %v167
    %520 = vmatmul.mubr.bf16.gmra.mrb[0].mxu0 %v166
    %v521 = vpop.f32.mrb[0].mxu0
    %v522 = vadd.f32 %v151, %v521
    %v523 = vpop.f32.mrb[0].mxu0
    %v524 = vpop.f32.mrb[0].mxu0
    %v525 = vpop.f32.mrb[0].mxu0
    %526 = vdwg.mxu0
    %v527 = vld [vmem:[%s4] sm:$0x3]
    %v528 = vpack.c.bf16 %v527, %v527
    %v529 = vld [vmem:[%s7] sm:$0xff]
    %v530 = vld [vmem:[%s7 + $0x8] sm:$0xf]
    %v531 = vld [vmem:[%s7 + $0xc] sm:$0xff]
    %v532 = vld [vmem:[%s7 + $0x14] sm:$0xf]
    %v533 = vld [vmem:[%s7 + $0x18] sm:$0xff]
    %v534 = vld [vmem:[%s7 + $0x20] sm:$0xf]
    %v535 = vld [vmem:[%s7 + $0x24] sm:$0xff]
    %v536 = vld [vmem:[%s7 + $0x2c] sm:$0xf]
    %v537 = vld [vmem:[%s7 + $0x30] sm:$0xff]
    %v538 = vld [vmem:[%s7 + $0x38] sm:$0xf]
    %v539 = vld [vmem:[%s7 + $0x3c] sm:$0xff]
    %v540 = vld [vmem:[%s7 + $0x44] sm:$0xf]
    %v541 = vld [vmem:[%s7 + $0x48] sm:$0xff]
    %v542 = vld [vmem:[%s7 + $0x50] sm:$0xf]
    %v543 = vld [vmem:[%s7 + $0x54] sm:$0xff]
    %v544 = vld [vmem:[%s7 + $0x5c] sm:$0xf]
    %v545 = vld [vmem:[%s7 + $0x60] sm:$0xff]
    %v546 = vld [vmem:[%s7 + $0x68] sm:$0xf]
    %v547 = vld [vmem:[%s7 + $0x6c] sm:$0xff]
    %v548 = vld [vmem:[%s7 + $0x74] sm:$0xf]
    %v549 = vld [vmem:[%s7 + $0x78] sm:$0xff]
    %v550 = vld [vmem:[%s7 + $0x80] sm:$0xf]
    %v551 = vld [vmem:[%s7 + $0x84] sm:$0xff]
    %v552 = vld [vmem:[%s7 + $0x8c] sm:$0xf]
    %v553 = vld [vmem:[%s7 + $0x90] sm:$0xff]
    %v554 = vld [vmem:[%s7 + $0x98] sm:$0xf]
    %v555 = vld [vmem:[%s7 + $0x9c] sm:$0xff]
    %v556 = vld [vmem:[%s7 + $0xa4] sm:$0xf]
    %v557 = vld [vmem:[%s7 + $0xa8] sm:$0xff]
    %v558 = vld [vmem:[%s7 + $0xb0] sm:$0xf]
    %v559 = vld [vmem:[%s7 + $0xb4] sm:$0xff]
    %v560 = vld [vmem:[%s7 + $0xbc] sm:$0xf]
    %v561 = vld [vmem:[%s9] sm:$0x7]
    %v563 = vlaneseq
    %v564 = vshrl.u32 %v563, 7
    %v565 = vsub.s32 0, %v564
    %v566 = vrot.slane %v561, %v565
    %v567 = vlaneseq
    %v568 = vshrl.u32 %v567, 7
    %v569 = vsub.s32 1, %v568
    %v570 = vrot.slane %v561, %v569
    %v571 = vlaneseq
    %v572 = vshrl.u32 %v571, 7
    %v573 = vsub.s32 2, %v572
    %v574 = vrot.slane %v561, %v573
    %v610 = vunpack.c.l.b16 %v529
    %v611 = vunpack.c.h.b16 %v529
    %v612 = vunpack.c.l.b16 %v530
    %v613 = vunpack.c.l.b16 %v531
    %v614 = vunpack.c.h.b16 %v531
    %v615 = vunpack.c.l.b16 %v532
    %v616 = vunpack.c.l.b16 %v533
    %v617 = vunpack.c.h.b16 %v533
    %v618 = vunpack.c.l.b16 %v534
    %v619 = vunpack.c.l.b16 %v535
    %v620 = vunpack.c.h.b16 %v535
    %v621 = vunpack.c.l.b16 %v536
    %v622 = vunpack.c.l.b16 %v537
    %v623 = vunpack.c.h.b16 %v537
    %v624 = vunpack.c.l.b16 %v538
    %v625 = vunpack.c.l.b16 %v539
    %v626 = vunpack.c.h.b16 %v539
    %v627 = vunpack.c.l.b16 %v540
    %v628 = vunpack.c.l.b16 %v541
    %v629 = vunpack.c.h.b16 %v541
    %v630 = vunpack.c.l.b16 %v542
    %v631 = vunpack.c.l.b16 %v543
    %v632 = vunpack.c.h.b16 %v543
    %v633 = vunpack.c.l.b16 %v544
    %v634 = vunpack.c.l.b16 %v545
    %v635 = vunpack.c.h.b16 %v545
    %v636 = vunpack.c.l.b16 %v546
    %v637 = vunpack.c.l.b16 %v547
    %v638 = vunpack.c.h.b16 %v547
    %v639 = vunpack.c.l.b16 %v548
    %v640 = vunpack.c.l.b16 %v549
    %v641 = vunpack.c.h.b16 %v549
    %v642 = vunpack.c.l.b16 %v550
    %v643 = vunpack.c.l.b16 %v551
    %v644 = vunpack.c.h.b16 %v551
    %v645 = vunpack.c.l.b16 %v552
    %v646 = vunpack.c.l.b16 %v553
    %v647 = vunpack.c.h.b16 %v553
    %v648 = vunpack.c.l.b16 %v554
    %v649 = vunpack.c.l.b16 %v555
    %v650 = vunpack.c.h.b16 %v555
    %v651 = vunpack.c.l.b16 %v556
    %v652 = vunpack.c.l.b16 %v557
    %v653 = vunpack.c.h.b16 %v557
    %v654 = vunpack.c.l.b16 %v558
    %v655 = vunpack.c.l.b16 %v559
    %v656 = vunpack.c.h.b16 %v559
    %v657 = vunpack.c.l.b16 %v560
    %v658 = vpack.c.b16 %v613, %v610
    %v659 = vpack.c.b16 %v614, %v611
    %v660 = vpack.c.b16 %v615, %v612
    %v661 = vpack.c.b16 %v619, %v616
    %v662 = vpack.c.b16 %v620, %v617
    %v663 = vpack.c.b16 %v621, %v618
    %v664 = vpack.c.b16 %v625, %v622
    %v665 = vpack.c.b16 %v626, %v623
    %v666 = vpack.c.b16 %v627, %v624
    %v667 = vpack.c.b16 %v631, %v628
    %v668 = vpack.c.b16 %v632, %v629
    %v669 = vpack.c.b16 %v633, %v630
    %v670 = vpack.c.b16 %v637, %v634
    %v671 = vpack.c.b16 %v638, %v635
    %v672 = vpack.c.b16 %v639, %v636
    %v673 = vpack.c.b16 %v643, %v640
    %v674 = vpack.c.b16 %v644, %v641
    %v675 = vpack.c.b16 %v645, %v642
    %v676 = vpack.c.b16 %v649, %v646
    %v677 = vpack.c.b16 %v650, %v647
    %v678 = vpack.c.b16 %v651, %v648
    %v679 = vpack.c.b16 %v655, %v652
    %v680 = vpack.c.b16 %v656, %v653
    %v681 = vpack.c.b16 %v657, %v654
    %706 = vmatprep.subr.bf16.mxu0 %v659
    %707 = vmatpush1.bf16.msra.mxu0 %v658
    %708 = vmatprep.subr.bf16.mxu0 %v662
    %709 = vmatpush1.bf16.msra.mxu0 %v661
    %710 = vmatprep.subr.bf16.mxu0 %v665
    %711 = vmatpush1.bf16.msra.mxu0 %v664
    %712 = vmatprep.subr.bf16.mxu0 %v668
    %713 = vmatpush1.bf16.msra.mxu0 %v667
    %714 = vmatprep.subr.bf16.mxu0 %v671
    %715 = vmatpush1.bf16.msra.mxu0 %v670
    %716 = vmatprep.subr.bf16.mxu0 %v674
    %717 = vmatpush1.bf16.msra.mxu0 %v673
    %718 = vmatprep.subr.bf16.mxu0 %v677
    %719 = vmatpush1.bf16.msra.mxu0 %v676
    %720 = vmatprep.subr.bf16.mxu0 %v680
    %721 = vmatpush1.bf16.msra.mxu0 %v679
    %722 = vmatprep.subr.bf16.mxu0 0
    %723 = vmatpush1.bf16.msra.mxu0 0
    %724 = vmatprep.subr.bf16.mxu0 0
    %725 = vmatpush1.bf16.msra.mxu0 0
    %726 = vmatprep.subr.bf16.mxu0 0
    %727 = vmatpush1.bf16.msra.mxu0 0
    %728 = vmatprep.subr.bf16.mxu0 0
    %729 = vmatpush1.bf16.msra.mxu0 0
    %730 = vmatprep.subr.bf16.mxu0 0
    %731 = vmatpush1.bf16.msra.mxu0 0
    %732 = vmatprep.subr.bf16.mxu0 0
    %733 = vmatpush1.bf16.msra.mxu0 0
    %734 = vmatprep.subr.bf16.mxu0 0
    %735 = vmatpush1.bf16.msra.mxu0 0
    %736 = vmatprep.subr.bf16.mxu0 0
    %737 = vmatpush1.bf16.msra.mxu0 0
    %738 = vmatprep.mubr.bf16.mxu0 0
    %739 = vmatmul.mubr.bf16.gmra.mrb[0].mxu0 %v528
    %v740 = vpop.f32.mrb[0].mxu0
    %v741 = vadd.f32 %v566, %v740
    %v742 = vpop.f32.mrb[0].mxu0
    %v743 = vadd.f32 %v570, %v742
    %v744 = vpop.f32.mrb[0].mxu0
    %v745 = vpop.f32.mrb[0].mxu0
    %746 = vdwg.mxu0
    %747 = vmatprep.subr.bf16.mxu0 0
    %748 = vmatpush1.bf16.msra.mxu0 %v660
    %749 = vmatprep.subr.bf16.mxu0 0
    %750 = vmatpush1.bf16.msra.mxu0 %v663
    %751 = vmatprep.subr.bf16.mxu0 0
    %752 = vmatpush1.bf16.msra.mxu0 %v666
    %753 = vmatprep.subr.bf16.mxu0 0
    %754 = vmatpush1.bf16.msra.mxu0 %v669
    %755 = vmatprep.subr.bf16.mxu0 0
    %756 = vmatpush1.bf16.msra.mxu0 %v672
    %757 = vmatprep.subr.bf16.mxu0 0
    %758 = vmatpush1.bf16.msra.mxu0 %v675
    %759 = vmatprep.subr.bf16.mxu0 0
    %760 = vmatpush1.bf16.msra.mxu0 %v678
    %761 = vmatprep.subr.bf16.mxu0 0
    %762 = vmatpush1.bf16.msra.mxu0 %v681
    %763 = vmatprep.subr.bf16.mxu0 0
    %764 = vmatpush1.bf16.msra.mxu0 0
    %765 = vmatprep.subr.bf16.mxu0 0
    %766 = vmatpush1.bf16.msra.mxu0 0
    %767 = vmatprep.subr.bf16.mxu0 0
    %768 = vmatpush1.bf16.msra.mxu0 0
    %769 = vmatprep.subr.bf16.mxu0 0
    %770 = vmatpush1.bf16.msra.mxu0 0
    %771 = vmatprep.subr.bf16.mxu0 0
    %772 = vmatpush1.bf16.msra.mxu0 0
    %773 = vmatprep.subr.bf16.mxu0 0
    %774 = vmatpush1.bf16.msra.mxu0 0
    %775 = vmatprep.subr.bf16.mxu0 0
    %776 = vmatpush1.bf16.msra.mxu0 0
    %777 = vmatprep.subr.bf16.mxu0 0
    %778 = vmatpush1.bf16.msra.mxu0 0
    %779 = vmatprep.mubr.bf16.mxu0 0
    %780 = vmatmul.mubr.bf16.gmra.mrb[0].mxu0 %v528
    %v781 = vpop.f32.mrb[0].mxu0
    %v782 = vadd.f32 %v574, %v781
    %v783 = vpop.f32.mrb[0].mxu0
    %v784 = vpop.f32.mrb[0].mxu0
    %v785 = vpop.f32.mrb[0].mxu0
    %786 = vdwg.mxu0
    %v787 = vadd.f32 %v463, %v741
    %v788 = vxor.u32 %v787, 2147483648
    %v789 = vmul.f32 %v788, 1.442695
    %v790 = vpow.pop %v789
    %v791 = vadd.f32 %v790, 1.0
    %v792 = vrcp.pop %v791
    %v793 = vmul.f32 1.0, %v792
    %v794 = vadd.f32 %v465, %v743
    %v795 = vxor.u32 %v794, 2147483648
    %v796 = vmul.f32 %v795, 1.442695
    %v797 = vpow.pop %v796
    %v798 = vadd.f32 %v797, 1.0
    %v799 = vrcp.pop %v798
    %v800 = vmul.f32 1.0, %v799
    %v801 = vmul.f32 %v793, %v782
    %v802 = vadd.f32 %v514, %v801
    %v803 = vtanh.pop %v802
    %v804 = vsub.f32 1.0, %v800
    %v805 = vmul.f32 %v804, %v803
    %v806 = vmul.f32 %v800, %v527
    %v807 = vadd.f32 %v805, %v806
    %v808 = vpack.c.bf16 %v807, %v807
    %809 = vmatprep.subr.bf16.mxu0 %v659
    %810 = vmatpush1.bf16.msra.mxu0 %v658
    %811 = vmatprep.subr.bf16.mxu0 %v662
    %812 = vmatpush1.bf16.msra.mxu0 %v661
    %813 = vmatprep.subr.bf16.mxu0 %v665
    %814 = vmatpush1.bf16.msra.mxu0 %v664
    %815 = vmatprep.subr.bf16.mxu0 %v668
    %816 = vmatpush1.bf16.msra.mxu0 %v667
    %817 = vmatprep.subr.bf16.mxu0 %v671
    %818 = vmatpush1.bf16.msra.mxu0 %v670
    %819 = vmatprep.subr.bf16.mxu0 %v674
    %820 = vmatpush1.bf16.msra.mxu0 %v673
    %821 = vmatprep.subr.bf16.mxu0 %v677
    %822 = vmatpush1.bf16.msra.mxu0 %v676
    %823 = vmatprep.subr.bf16.mxu0 %v680
    %824 = vmatpush1.bf16.msra.mxu0 %v679
    %825 = vmatprep.subr.bf16.mxu0 0
    %826 = vmatpush1.bf16.msra.mxu0 0
    %827 = vmatprep.subr.bf16.mxu0 0
    %828 = vmatpush1.bf16.msra.mxu0 0
    %829 = vmatprep.subr.bf16.mxu0 0
    %830 = vmatpush1.bf16.msra.mxu0 0
    %831 = vmatprep.subr.bf16.mxu0 0
    %832 = vmatpush1.bf16.msra.mxu0 0
    %833 = vmatprep.subr.bf16.mxu0 0
    %834 = vmatpush1.bf16.msra.mxu0 0
    %835 = vmatprep.subr.bf16.mxu0 0
    %836 = vmatpush1.bf16.msra.mxu0 0
    %837 = vmatprep.subr.bf16.mxu0 0
    %838 = vmatpush1.bf16.msra.mxu0 0
    %839 = vmatprep.subr.bf16.mxu0 0
    %840 = vmatpush1.bf16.msra.mxu0 0
    %841 = vmatprep.mubr.bf16.mxu0 0
    %842 = vmatmul.mubr.bf16.gmra.mrb[0].mxu0 %v808
    %v843 = vpop.f32.mrb[0].mxu0
    %v844 = vadd.f32 %v566, %v843
    %v845 = vpop.f32.mrb[0].mxu0
    %v846 = vadd.f32 %v570, %v845
    %v847 = vpop.f32.mrb[0].mxu0
    %v848 = vpop.f32.mrb[0].mxu0
    %849 = vdwg.mxu0
    %850 = vmatprep.subr.bf16.mxu0 0
    %851 = vmatpush1.bf16.msra.mxu0 %v660
    %852 = vmatprep.subr.bf16.mxu0 0
    %853 = vmatpush1.bf16.msra.mxu0 %v663
    %854 = vmatprep.subr.bf16.mxu0 0
    %855 = vmatpush1.bf16.msra.mxu0 %v666
    %856 = vmatprep.subr.bf16.mxu0 0
    %857 = vmatpush1.bf16.msra.mxu0 %v669
    %858 = vmatprep.subr.bf16.mxu0 0
    %859 = vmatpush1.bf16.msra.mxu0 %v672
    %860 = vmatprep.subr.bf16.mxu0 0
    %861 = vmatpush1.bf16.msra.mxu0 %v675
    %862 = vmatprep.subr.bf16.mxu0 0
    %863 = vmatpush1.bf16.msra.mxu0 %v678
    %864 = vmatprep.subr.bf16.mxu0 0
    %865 = vmatpush1.bf16.msra.mxu0 %v681
    %866 = vmatprep.subr.bf16.mxu0 0
    %867 = vmatpush1.bf16.msra.mxu0 0
    %868 = vmatprep.subr.bf16.mxu0 0
    %869 = vmatpush1.bf16.msra.mxu0 0
    %870 = vmatprep.subr.bf16.mxu0 0
    %871 = vmatpush1.bf16.msra.mxu0 0
    %872 = vmatprep.subr.bf16.mxu0 0
    %873 = vmatpush1.bf16.msra.mxu0 0
    %874 = vmatprep.subr.bf16.mxu0 0
    %875 = vmatpush1.bf16.msra.mxu0 0
    %876 = vmatprep.subr.bf16.mxu0 0
    %877 = vmatpush1.bf16.msra.mxu0 0
    %878 = vmatprep.subr.bf16.mxu0 0
    %879 = vmatpush1.bf16.msra.mxu0 0
    %880 = vmatprep.subr.bf16.mxu0 0
    %881 = vmatpush1.bf16.msra.mxu0 0
    %882 = vmatprep.mubr.bf16.mxu0 0
    %883 = vmatmul.mubr.bf16.gmra.mrb[0].mxu0 %v808
    %v884 = vpop.f32.mrb[0].mxu0
    %v885 = vadd.f32 %v574, %v884
    %v886 = vpop.f32.mrb[0].mxu0
    %v887 = vpop.f32.mrb[0].mxu0
    %v888 = vpop.f32.mrb[0].mxu0
    %889 = vdwg.mxu0
    %v891 = vrot.slane %v844, 6
    %v893 = vadd.f32 %v463, %v891
    %v894 = vxor.u32 %v893, 2147483648
    %v895 = vmul.f32 %v894, 1.442695
    %v896 = vpow.pop %v895
    %v897 = vadd.f32 %v896, 1.0
    %v898 = vrcp.pop %v897
    %v899 = vmul.f32 1.0, %v898
    %v901 = vrot.slane %v846, 6
    %v903 = vadd.f32 %v465, %v901
    %v904 = vxor.u32 %v903, 2147483648
    %v905 = vmul.f32 %v904, 1.442695
    %v906 = vpow.pop %v905
    %v907 = vadd.f32 %v906, 1.0
    %v908 = vrcp.pop %v907
    %v909 = vmul.f32 1.0, %v908
    %v911 = vrot.slane %v885, 6
    %v913 = vmul.f32 %v899, %v911
    %v914 = vadd.f32 %v514, %v913
    %v915 = vtanh.pop %v914
    %v916 = vsub.f32 1.0, %v909
    %v917 = vmul.f32 %v916, %v915
    %v919 = vrot.slane %v807, 6
    %v921 = vmul.f32 %v909, %v919
    %v922 = vadd.f32 %v917, %v921
    %v923 = vpack.c.bf16 %v922, %v922
    %v925 = vrot.slane %v923, 1
    %927 = vmatprep.subr.bf16.mxu0 %v659
    %928 = vmatpush1.bf16.msra.mxu0 %v658
    %929 = vmatprep.subr.bf16.mxu0 %v662
    %930 = vmatpush1.bf16.msra.mxu0 %v661
    %931 = vmatprep.subr.bf16.mxu0 %v665
    %932 = vmatpush1.bf16.msra.mxu0 %v664
    %933 = vmatprep.subr.bf16.mxu0 %v668
    %934 = vmatpush1.bf16.msra.mxu0 %v667
    %935 = vmatprep.subr.bf16.mxu0 %v671
    %936 = vmatpush1.bf16.msra.mxu0 %v670
    %937 = vmatprep.subr.bf16.mxu0 %v674
    %938 = vmatpush1.bf16.msra.mxu0 %v673
    %939 = vmatprep.subr.bf16.mxu0 %v677
    %940 = vmatpush1.bf16.msra.mxu0 %v676
    %941 = vmatprep.subr.bf16.mxu0 %v680
    %942 = vmatpush1.bf16.msra.mxu0 %v679
    %943 = vmatprep.subr.bf16.mxu0 0
    %944 = vmatpush1.bf16.msra.mxu0 0
    %945 = vmatprep.subr.bf16.mxu0 0
    %946 = vmatpush1.bf16.msra.mxu0 0
    %947 = vmatprep.subr.bf16.mxu0 0
    %948 = vmatpush1.bf16.msra.mxu0 0
    %949 = vmatprep.subr.bf16.mxu0 0
    %950 = vmatpush1.bf16.msra.mxu0 0
    %951 = vmatprep.subr.bf16.mxu0 0
    %952 = vmatpush1.bf16.msra.mxu0 0
    %953 = vmatprep.subr.bf16.mxu0 0
    %954 = vmatpush1.bf16.msra.mxu0 0
    %955 = vmatprep.subr.bf16.mxu0 0
    %956 = vmatpush1.bf16.msra.mxu0 0
    %957 = vmatprep.subr.bf16.mxu0 0
    %958 = vmatpush1.bf16.msra.mxu0 0
    %959 = vmatprep.mubr.bf16.mxu0 0
    %960 = vmatmul.mubr.bf16.gmra.mrb[0].mxu0 %v925
    %v961 = vpop.f32.mrb[0].mxu0
    %v962 = vadd.f32 %v566, %v961
    %v963 = vpop.f32.mrb[0].mxu0
    %v964 = vadd.f32 %v570, %v963
    %v965 = vpop.f32.mrb[0].mxu0
    %v966 = vpop.f32.mrb[0].mxu0
    %967 = vdwg.mxu0
    %968 = vmatprep.subr.bf16.mxu0 0
    %969 = vmatpush1.bf16.msra.mxu0 %v660
    %970 = vmatprep.subr.bf16.mxu0 0
    %971 = vmatpush1.bf16.msra.mxu0 %v663
    %972 = vmatprep.subr.bf16.mxu0 0
    %973 = vmatpush1.bf16.msra.mxu0 %v666
    %974 = vmatprep.subr.bf16.mxu0 0
    %975 = vmatpush1.bf16.msra.mxu0 %v669
    %976 = vmatprep.subr.bf16.mxu0 0
    %977 = vmatpush1.bf16.msra.mxu0 %v672
    %978 = vmatprep.subr.bf16.mxu0 0
    %979 = vmatpush1.bf16.msra.mxu0 %v675
    %980 = vmatprep.subr.bf16.mxu0 0
    %981 = vmatpush1.bf16.msra.mxu0 %v678
    %982 = vmatprep.subr.bf16.mxu0 0
    %983 = vmatpush1.bf16.msra.mxu0 %v681
    %984 = vmatprep.subr.bf16.mxu0 0
    %985 = vmatpush1.bf16.msra.mxu0 0
    %986 = vmatprep.subr.bf16.mxu0 0
    %987 = vmatpush1.bf16.msra.mxu0 0
    %988 = vmatprep.subr.bf16.mxu0 0
    %989 = vmatpush1.bf16.msra.mxu0 0
    %990 = vmatprep.subr.bf16.mxu0 0
    %991 = vmatpush1.bf16.msra.mxu0 0
    %992 = vmatprep.subr.bf16.mxu0 0
    %993 = vmatpush1.bf16.msra.mxu0 0
    %994 = vmatprep.subr.bf16.mxu0 0
    %995 = vmatpush1.bf16.msra.mxu0 0
    %996 = vmatprep.subr.bf16.mxu0 0
    %997 = vmatpush1.bf16.msra.mxu0 0
    %998 = vmatprep.subr.bf16.mxu0 0
    %999 = vmatpush1.bf16.msra.mxu0 0
    %1000 = vmatprep.mubr.bf16.mxu0 0
    %1001 = vmatmul.mubr.bf16.gmra.mrb[0].mxu0 %v925
    %v1002 = vpop.f32.mrb[0].mxu0
    %v1003 = vadd.f32 %v574, %v1002
    %v1004 = vpop.f32.mrb[0].mxu0
    %v1005 = vpop.f32.mrb[0].mxu0
    %v1006 = vpop.f32.mrb[0].mxu0
    %1007 = vdwg.mxu0
    %v1009 = vrot.slane %v962, 4
    %v1011 = vadd.f32 %v463, %v1009
    %v1012 = vxor.u32 %v1011, 2147483648
    %v1013 = vmul.f32 %v1012, 1.442695
    %v1014 = vpow.pop %v1013
    %v1015 = vadd.f32 %v1014, 1.0
    %v1016 = vrcp.pop %v1015
    %v1017 = vmul.f32 1.0, %v1016
    %v1019 = vrot.slane %v964, 4
    %v1021 = vadd.f32 %v465, %v1019
    %v1022 = vxor.u32 %v1021, 2147483648
    %v1023 = vmul.f32 %v1022, 1.442695
    %v1024 = vpow.pop %v1023
    %v1025 = vadd.f32 %v1024, 1.0
    %v1026 = vrcp.pop %v1025
    %v1027 = vmul.f32 1.0, %v1026
    %v1029 = vrot.slane %v1003, 4
    %v1031 = vmul.f32 %v1017, %v1029
    %v1032 = vadd.f32 %v514, %v1031
    %v1033 = vtanh.pop %v1032
    %v1034 = vsub.f32 1.0, %v1027
    %v1035 = vmul.f32 %v1034, %v1033
    %v1037 = vrot.slane %v922, 6
    %v1039 = vmul.f32 %v1027, %v1037
    %v1040 = vadd.f32 %v1035, %v1039
    %v1041 = vpack.c.bf16 %v1040, %v1040
    %v1043 = vrot.slane %v1041, 2
    %1045 = vmatprep.subr.bf16.mxu0 %v659
    %1046 = vmatpush1.bf16.msra.mxu0 %v658
    %1047 = vmatprep.subr.bf16.mxu0 %v662
    %1048 = vmatpush1.bf16.msra.mxu0 %v661
    %1049 = vmatprep.subr.bf16.mxu0 %v665
    %1050 = vmatpush1.bf16.msra.mxu0 %v664
    %1051 = vmatprep.subr.bf16.mxu0 %v668
    %1052 = vmatpush1.bf16.msra.mxu0 %v667
    %1053 = vmatprep.subr.bf16.mxu0 %v671
    %1054 = vmatpush1.bf16.msra.mxu0 %v670
    %1055 = vmatprep.subr.bf16.mxu0 %v674
    %1056 = vmatpush1.bf16.msra.mxu0 %v673
    %1057 = vmatprep.subr.bf16.mxu0 %v677
    %1058 = vmatpush1.bf16.msra.mxu0 %v676
    %1059 = vmatprep.subr.bf16.mxu0 %v680
    %1060 = vmatpush1.bf16.msra.mxu0 %v679
    %1061 = vmatprep.subr.bf16.mxu0 0
    %1062 = vmatpush1.bf16.msra.mxu0 0
    %1063 = vmatprep.subr.bf16.mxu0 0
    %1064 = vmatpush1.bf16.msra.mxu0 0
    %1065 = vmatprep.subr.bf16.mxu0 0
    %1066 = vmatpush1.bf16.msra.mxu0 0
    %1067 = vmatprep.subr.bf16.mxu0 0
    %1068 = vmatpush1.bf16.msra.mxu0 0
    %1069 = vmatprep.subr.bf16.mxu0 0
    %1070 = vmatpush1.bf16.msra.mxu0 0
    %1071 = vmatprep.subr.bf16.mxu0 0
    %1072 = vmatpush1.bf16.msra.mxu0 0
    %1073 = vmatprep.subr.bf16.mxu0 0
    %1074 = vmatpush1.bf16.msra.mxu0 0
    %1075 = vmatprep.subr.bf16.mxu0 0
    %1076 = vmatpush1.bf16.msra.mxu0 0
    %1077 = vmatprep.mubr.bf16.mxu0 0
    %1078 = vmatmul.mubr.bf16.gmra.mrb[0].mxu0 %v1043
    %v1079 = vpop.f32.mrb[0].mxu0
    %v1080 = vadd.f32 %v566, %v1079
    %v1081 = vpop.f32.mrb[0].mxu0
    %v1082 = vadd.f32 %v570, %v1081
    %v1083 = vpop.f32.mrb[0].mxu0
    %v1084 = vpop.f32.mrb[0].mxu0
    %1085 = vdwg.mxu0
    %1086 = vmatprep.subr.bf16.mxu0 0
    %1087 = vmatpush1.bf16.msra.mxu0 %v660
    %1088 = vmatprep.subr.bf16.mxu0 0
    %1089 = vmatpush1.bf16.msra.mxu0 %v663
    %1090 = vmatprep.subr.bf16.mxu0 0
    %1091 = vmatpush1.bf16.msra.mxu0 %v666
    %1092 = vmatprep.subr.bf16.mxu0 0
    %1093 = vmatpush1.bf16.msra.mxu0 %v669
    %1094 = vmatprep.subr.bf16.mxu0 0
    %1095 = vmatpush1.bf16.msra.mxu0 %v672
    %1096 = vmatprep.subr.bf16.mxu0 0
    %1097 = vmatpush1.bf16.msra.mxu0 %v675
    %1098 = vmatprep.subr.bf16.mxu0 0
    %1099 = vmatpush1.bf16.msra.mxu0 %v678
    %1100 = vmatprep.subr.bf16.mxu0 0
    %1101 = vmatpush1.bf16.msra.mxu0 %v681
    %1102 = vmatprep.subr.bf16.mxu0 0
    %1103 = vmatpush1.bf16.msra.mxu0 0
    %1104 = vmatprep.subr.bf16.mxu0 0
    %1105 = vmatpush1.bf16.msra.mxu0 0
    %1106 = vmatprep.subr.bf16.mxu0 0
    %1107 = vmatpush1.bf16.msra.mxu0 0
    %1108 = vmatprep.subr.bf16.mxu0 0
    %1109 = vmatpush1.bf16.msra.mxu0 0
    %1110 = vmatprep.subr.bf16.mxu0 0
    %1111 = vmatpush1.bf16.msra.mxu0 0
    %1112 = vmatprep.subr.bf16.mxu0 0
    %1113 = vmatpush1.bf16.msra.mxu0 0
    %1114 = vmatprep.subr.bf16.mxu0 0
    %1115 = vmatpush1.bf16.msra.mxu0 0
    %1116 = vmatprep.subr.bf16.mxu0 0
    %1117 = vmatpush1.bf16.msra.mxu0 0
    %1118 = vmatprep.mubr.bf16.mxu0 0
    %1119 = vmatmul.mubr.bf16.gmra.mrb[0].mxu0 %v1043
    %v1120 = vpop.f32.mrb[0].mxu0
    %v1121 = vadd.f32 %v574, %v1120
    %v1122 = vpop.f32.mrb[0].mxu0
    %v1123 = vpop.f32.mrb[0].mxu0
    %v1124 = vpop.f32.mrb[0].mxu0
    %1125 = vdwg.mxu0
    %v1127 = vrot.slane %v1080, 2
    %v1129 = vadd.f32 %v463, %v1127
    %v1130 = vxor.u32 %v1129, 2147483648
    %v1131 = vmul.f32 %v1130, 1.442695
    %v1132 = vpow.pop %v1131
    %v1133 = vadd.f32 %v1132, 1.0
    %v1134 = vrcp.pop %v1133
    %v1135 = vmul.f32 1.0, %v1134
    %v1137 = vrot.slane %v1082, 2
    %v1139 = vadd.f32 %v465, %v1137
    %v1140 = vxor.u32 %v1139, 2147483648
    %v1141 = vmul.f32 %v1140, 1.442695
    %v1142 = vpow.pop %v1141
    %v1143 = vadd.f32 %v1142, 1.0
    %v1144 = vrcp.pop %v1143
    %v1145 = vmul.f32 1.0, %v1144
    %v1147 = vrot.slane %v1121, 2
    %v1149 = vmul.f32 %v1135, %v1147
    %v1150 = vadd.f32 %v514, %v1149
    %v1151 = vtanh.pop %v1150
    %v1152 = vsub.f32 1.0, %v1145
    %v1153 = vmul.f32 %v1152, %v1151
    %v1155 = vrot.slane %v1040, 6
    %v1157 = vmul.f32 %v1145, %v1155
    %v1158 = vadd.f32 %v1153, %v1157
    %v1159 = vpack.c.bf16 %v1158, %v1158
    %v1161 = vrot.slane %v1159, 3
    %1163 = vmatprep.subr.bf16.mxu0 %v659
    %1164 = vmatpush1.bf16.msra.mxu0 %v658
    %1165 = vmatprep.subr.bf16.mxu0 %v662
    %1166 = vmatpush1.bf16.msra.mxu0 %v661
    %1167 = vmatprep.subr.bf16.mxu0 %v665
    %1168 = vmatpush1.bf16.msra.mxu0 %v664
    %1169 = vmatprep.subr.bf16.mxu0 %v668
    %1170 = vmatpush1.bf16.msra.mxu0 %v667
    %1171 = vmatprep.subr.bf16.mxu0 %v671
    %1172 = vmatpush1.bf16.msra.mxu0 %v670
    %1173 = vmatprep.subr.bf16.mxu0 %v674
    %1174 = vmatpush1.bf16.msra.mxu0 %v673
    %1175 = vmatprep.subr.bf16.mxu0 %v677
    %1176 = vmatpush1.bf16.msra.mxu0 %v676
    %1177 = vmatprep.subr.bf16.mxu0 %v680
    %1178 = vmatpush1.bf16.msra.mxu0 %v679
    %1179 = vmatprep.subr.bf16.mxu0 0
    %1180 = vmatpush1.bf16.msra.mxu0 0
    %1181 = vmatprep.subr.bf16.mxu0 0
    %1182 = vmatpush1.bf16.msra.mxu0 0
    %1183 = vmatprep.subr.bf16.mxu0 0
    %1184 = vmatpush1.bf16.msra.mxu0 0
    %1185 = vmatprep.subr.bf16.mxu0 0
    %1186 = vmatpush1.bf16.msra.mxu0 0
    %1187 = vmatprep.subr.bf16.mxu0 0
    %1188 = vmatpush1.bf16.msra.mxu0 0
    %1189 = vmatprep.subr.bf16.mxu0 0
    %1190 = vmatpush1.bf16.msra.mxu0 0
    %1191 = vmatprep.subr.bf16.mxu0 0
    %1192 = vmatpush1.bf16.msra.mxu0 0
    %1193 = vmatprep.subr.bf16.mxu0 0
    %1194 = vmatpush1.bf16.msra.mxu0 0
    %1195 = vmatprep.mubr.bf16.mxu0 0
    %1196 = vmatmul.mubr.bf16.gmra.mrb[0].mxu0 %v1161
    %v1197 = vpop.f32.mrb[0].mxu0
    %v1198 = vadd.f32 %v566, %v1197
    %v1199 = vpop.f32.mrb[0].mxu0
    %v1200 = vadd.f32 %v570, %v1199
    %v1201 = vpop.f32.mrb[0].mxu0
    %v1202 = vpop.f32.mrb[0].mxu0
    %1203 = vdwg.mxu0
    %1204 = vmatprep.subr.bf16.mxu0 0
    %1205 = vmatpush1.bf16.msra.mxu0 %v660
    %1206 = vmatprep.subr.bf16.mxu0 0
    %1207 = vmatpush1.bf16.msra.mxu0 %v663
    %1208 = vmatprep.subr.bf16.mxu0 0
    %1209 = vmatpush1.bf16.msra.mxu0 %v666
    %1210 = vmatprep.subr.bf16.mxu0 0
    %1211 = vmatpush1.bf16.msra.mxu0 %v669
    %1212 = vmatprep.subr.bf16.mxu0 0
    %1213 = vmatpush1.bf16.msra.mxu0 %v672
    %1214 = vmatprep.subr.bf16.mxu0 0
    %1215 = vmatpush1.bf16.msra.mxu0 %v675
    %1216 = vmatprep.subr.bf16.mxu0 0
    %1217 = vmatpush1.bf16.msra.mxu0 %v678
    %1218 = vmatprep.subr.bf16.mxu0 0
    %1219 = vmatpush1.bf16.msra.mxu0 %v681
    %1220 = vmatprep.subr.bf16.mxu0 0
    %1221 = vmatpush1.bf16.msra.mxu0 0
    %1222 = vmatprep.subr.bf16.mxu0 0
    %1223 = vmatpush1.bf16.msra.mxu0 0
    %1224 = vmatprep.subr.bf16.mxu0 0
    %1225 = vmatpush1.bf16.msra.mxu0 0
    %1226 = vmatprep.subr.bf16.mxu0 0
    %1227 = vmatpush1.bf16.msra.mxu0 0
    %1228 = vmatprep.subr.bf16.mxu0 0
    %1229 = vmatpush1.bf16.msra.mxu0 0
    %1230 = vmatprep.subr.bf16.mxu0 0
    %1231 = vmatpush1.bf16.msra.mxu0 0
    %1232 = vmatprep.subr.bf16.mxu0 0
    %1233 = vmatpush1.bf16.msra.mxu0 0
    %1234 = vmatprep.subr.bf16.mxu0 0
    %1235 = vmatpush1.bf16.msra.mxu0 0
    %1236 = vmatprep.mubr.bf16.mxu0 0
    %1237 = vmatmul.mubr.bf16.gmra.mrb[0].mxu0 %v1161
    %v1238 = vpop.f32.mrb[0].mxu0
    %v1239 = vadd.f32 %v574, %v1238
    %v1240 = vpop.f32.mrb[0].mxu0
    %v1241 = vpop.f32.mrb[0].mxu0
    %v1242 = vpop.f32.mrb[0].mxu0
    %1243 = vdwg.mxu0
    %v1244 = vadd.f32 %v467, %v1198
    %v1245 = vxor.u32 %v1244, 2147483648
    %v1246 = vmul.f32 %v1245, 1.442695
    %v1247 = vpow.pop %v1246
    %v1248 = vadd.f32 %v1247, 1.0
    %v1249 = vrcp.pop %v1248
    %v1250 = vmul.f32 1.0, %v1249
    %v1251 = vadd.f32 %v469, %v1200
    %v1252 = vxor.u32 %v1251, 2147483648
    %v1253 = vmul.f32 %v1252, 1.442695
    %v1254 = vpow.pop %v1253
    %v1255 = vadd.f32 %v1254, 1.0
    %v1256 = vrcp.pop %v1255
    %v1257 = vmul.f32 1.0, %v1256
    %v1258 = vmul.f32 %v1250, %v1239
    %v1259 = vadd.f32 %v517, %v1258
    %v1260 = vtanh.pop %v1259
    %v1261 = vsub.f32 1.0, %v1257
    %v1262 = vmul.f32 %v1261, %v1260
    %v1264 = vrot.slane %v1158, 6
    %v1266 = vmul.f32 %v1257, %v1264
    %v1267 = vadd.f32 %v1262, %v1266
    %v1268 = vpack.c.bf16 %v1267, %v1267
    %1269 = vmatprep.subr.bf16.mxu0 %v659
    %1270 = vmatpush1.bf16.msra.mxu0 %v658
    %1271 = vmatprep.subr.bf16.mxu0 %v662
    %1272 = vmatpush1.bf16.msra.mxu0 %v661
    %1273 = vmatprep.subr.bf16.mxu0 %v665
    %1274 = vmatpush1.bf16.msra.mxu0 %v664
    %1275 = vmatprep.subr.bf16.mxu0 %v668
    %1276 = vmatpush1.bf16.msra.mxu0 %v667
    %1277 = vmatprep.subr.bf16.mxu0 %v671
    %1278 = vmatpush1.bf16.msra.mxu0 %v670
    %1279 = vmatprep.subr.bf16.mxu0 %v674
    %1280 = vmatpush1.bf16.msra.mxu0 %v673
    %1281 = vmatprep.subr.bf16.mxu0 %v677
    %1282 = vmatpush1.bf16.msra.mxu0 %v676
    %1283 = vmatprep.subr.bf16.mxu0 %v680
    %1284 = vmatpush1.bf16.msra.mxu0 %v679
    %1285 = vmatprep.subr.bf16.mxu0 0
    %1286 = vmatpush1.bf16.msra.mxu0 0
    %1287 = vmatprep.subr.bf16.mxu0 0
    %1288 = vmatpush1.bf16.msra.mxu0 0
    %1289 = vmatprep.subr.bf16.mxu0 0
    %1290 = vmatpush1.bf16.msra.mxu0 0
    %1291 = vmatprep.subr.bf16.mxu0 0
    %1292 = vmatpush1.bf16.msra.mxu0 0
    %1293 = vmatprep.subr.bf16.mxu0 0
    %1294 = vmatpush1.bf16.msra.mxu0 0
    %1295 = vmatprep.subr.bf16.mxu0 0
    %1296 = vmatpush1.bf16.msra.mxu0 0
    %1297 = vmatprep.subr.bf16.mxu0 0
    %1298 = vmatpush1.bf16.msra.mxu0 0
    %1299 = vmatprep.subr.bf16.mxu0 0
    %1300 = vmatpush1.bf16.msra.mxu0 0
    %1301 = vmatprep.mubr.bf16.mxu0 0
    %1302 = vmatmul.mubr.bf16.gmra.mrb[0].mxu0 %v1268
    %v1303 = vpop.f32.mrb[0].mxu0
    %v1304 = vadd.f32 %v566, %v1303
    %v1305 = vpop.f32.mrb[0].mxu0
    %v1306 = vadd.f32 %v570, %v1305
    %v1307 = vpop.f32.mrb[0].mxu0
    %v1308 = vpop.f32.mrb[0].mxu0
    %1309 = vdwg.mxu0
    %1310 = vmatprep.subr.bf16.mxu0 0
    %1311 = vmatpush1.bf16.msra.mxu0 %v660
    %1312 = vmatprep.subr.bf16.mxu0 0
    %1313 = vmatpush1.bf16.msra.mxu0 %v663
    %1314 = vmatprep.subr.bf16.mxu0 0
    %1315 = vmatpush1.bf16.msra.mxu0 %v666
    %1316 = vmatprep.subr.bf16.mxu0 0
    %1317 = vmatpush1.bf16.msra.mxu0 %v669
    %1318 = vmatprep.subr.bf16.mxu0 0
    %1319 = vmatpush1.bf16.msra.mxu0 %v672
    %1320 = vmatprep.subr.bf16.mxu0 0
    %1321 = vmatpush1.bf16.msra.mxu0 %v675
    %1322 = vmatprep.subr.bf16.mxu0 0
    %1323 = vmatpush1.bf16.msra.mxu0 %v678
    %1324 = vmatprep.subr.bf16.mxu0 0
    %1325 = vmatpush1.bf16.msra.mxu0 %v681
    %1326 = vmatprep.subr.bf16.mxu0 0
    %1327 = vmatpush1.bf16.msra.mxu0 0
    %1328 = vmatprep.subr.bf16.mxu0 0
    %1329 = vmatpush1.bf16.msra.mxu0 0
    %1330 = vmatprep.subr.bf16.mxu0 0
    %1331 = vmatpush1.bf16.msra.mxu0 0
    %1332 = vmatprep.subr.bf16.mxu0 0
    %1333 = vmatpush1.bf16.msra.mxu0 0
    %1334 = vmatprep.subr.bf16.mxu0 0
    %1335 = vmatpush1.bf16.msra.mxu0 0
    %1336 = vmatprep.subr.bf16.mxu0 0
    %1337 = vmatpush1.bf16.msra.mxu0 0
    %1338 = vmatprep.subr.bf16.mxu0 0
    %1339 = vmatpush1.bf16.msra.mxu0 0
    %1340 = vmatprep.subr.bf16.mxu0 0
    %1341 = vmatpush1.bf16.msra.mxu0 0
    %1342 = vmatprep.mubr.bf16.mxu0 0
    %1343 = vmatmul.mubr.bf16.gmra.mrb[0].mxu0 %v1268
    %v1344 = vpop.f32.mrb[0].mxu0
    %v1345 = vadd.f32 %v574, %v1344
    %v1346 = vpop.f32.mrb[0].mxu0
    %v1347 = vpop.f32.mrb[0].mxu0
    %v1348 = vpop.f32.mrb[0].mxu0
    %1349 = vdwg.mxu0
    %v1351 = vrot.slane %v1304, 6
    %v1353 = vadd.f32 %v467, %v1351
    %v1354 = vxor.u32 %v1353, 2147483648
    %v1355 = vmul.f32 %v1354, 1.442695
    %v1356 = vpow.pop %v1355
    %v1357 = vadd.f32 %v1356, 1.0
    %v1358 = vrcp.pop %v1357
    %v1359 = vmul.f32 1.0, %v1358
    %v1361 = vrot.slane %v1306, 6
    %v1363 = vadd.f32 %v469, %v1361
    %v1364 = vxor.u32 %v1363, 2147483648
    %v1365 = vmul.f32 %v1364, 1.442695
    %v1366 = vpow.pop %v1365
    %v1367 = vadd.f32 %v1366, 1.0
    %v1368 = vrcp.pop %v1367
    %v1369 = vmul.f32 1.0, %v1368
    %v1371 = vrot.slane %v1345, 6
    %v1373 = vmul.f32 %v1359, %v1371
    %v1374 = vadd.f32 %v517, %v1373
    %v1375 = vtanh.pop %v1374
    %v1376 = vsub.f32 1.0, %v1369
    %v1377 = vmul.f32 %v1376, %v1375
    %v1379 = vrot.slane %v1267, 6
    %v1381 = vmul.f32 %v1369, %v1379
    %v1382 = vadd.f32 %v1377, %v1381
    %v1383 = vpack.c.bf16 %v1382, %v1382
    %v1385 = vrot.slane %v1383, 1
    %1387 = vmatprep.subr.bf16.mxu0 %v659
    %1388 = vmatpush1.bf16.msra.mxu0 %v658
    %1389 = vmatprep.subr.bf16.mxu0 %v662
    %1390 = vmatpush1.bf16.msra.mxu0 %v661
    %1391 = vmatprep.subr.bf16.mxu0 %v665
    %1392 = vmatpush1.bf16.msra.mxu0 %v664
    %1393 = vmatprep.subr.bf16.mxu0 %v668
    %1394 = vmatpush1.bf16.msra.mxu0 %v667
    %1395 = vmatprep.subr.bf16.mxu0 %v671
    %1396 = vmatpush1.bf16.msra.mxu0 %v670
    %1397 = vmatprep.subr.bf16.mxu0 %v674
    %1398 = vmatpush1.bf16.msra.mxu0 %v673
    %1399 = vmatprep.subr.bf16.mxu0 %v677
    %1400 = vmatpush1.bf16.msra.mxu0 %v676
    %1401 = vmatprep.subr.bf16.mxu0 %v680
    %1402 = vmatpush1.bf16.msra.mxu0 %v679
    %1403 = vmatprep.subr.bf16.mxu0 0
    %1404 = vmatpush1.bf16.msra.mxu0 0
    %1405 = vmatprep.subr.bf16.mxu0 0
    %1406 = vmatpush1.bf16.msra.mxu0 0
    %1407 = vmatprep.subr.bf16.mxu0 0
    %1408 = vmatpush1.bf16.msra.mxu0 0
    %1409 = vmatprep.subr.bf16.mxu0 0
    %1410 = vmatpush1.bf16.msra.mxu0 0
    %1411 = vmatprep.subr.bf16.mxu0 0
    %1412 = vmatpush1.bf16.msra.mxu0 0
    %1413 = vmatprep.subr.bf16.mxu0 0
    %1414 = vmatpush1.bf16.msra.mxu0 0
    %1415 = vmatprep.subr.bf16.mxu0 0
    %1416 = vmatpush1.bf16.msra.mxu0 0
    %1417 = vmatprep.subr.bf16.mxu0 0
    %1418 = vmatpush1.bf16.msra.mxu0 0
    %1419 = vmatprep.mubr.bf16.mxu0 0
    %1420 = vmatmul.mubr.bf16.gmra.mrb[0].mxu0 %v1385
    %v1421 = vpop.f32.mrb[0].mxu0
    %v1422 = vadd.f32 %v566, %v1421
    %v1423 = vpop.f32.mrb[0].mxu0
    %v1424 = vadd.f32 %v570, %v1423
    %v1425 = vpop.f32.mrb[0].mxu0
    %v1426 = vpop.f32.mrb[0].mxu0
    %1427 = vdwg.mxu0
    %1428 = vmatprep.subr.bf16.mxu0 0
    %1429 = vmatpush1.bf16.msra.mxu0 %v660
    %1430 = vmatprep.subr.bf16.mxu0 0
    %1431 = vmatpush1.bf16.msra.mxu0 %v663
    %1432 = vmatprep.subr.bf16.mxu0 0
    %1433 = vmatpush1.bf16.msra.mxu0 %v666
    %1434 = vmatprep.subr.bf16.mxu0 0
    %1435 = vmatpush1.bf16.msra.mxu0 %v669
    %1436 = vmatprep.subr.bf16.mxu0 0
    %1437 = vmatpush1.bf16.msra.mxu0 %v672
    %1438 = vmatprep.subr.bf16.mxu0 0
    %1439 = vmatpush1.bf16.msra.mxu0 %v675
    %1440 = vmatprep.subr.bf16.mxu0 0
    %1441 = vmatpush1.bf16.msra.mxu0 %v678
    %1442 = vmatprep.subr.bf16.mxu0 0
    %1443 = vmatpush1.bf16.msra.mxu0 %v681
    %1444 = vmatprep.subr.bf16.mxu0 0
    %1445 = vmatpush1.bf16.msra.mxu0 0
    %1446 = vmatprep.subr.bf16.mxu0 0
    %1447 = vmatpush1.bf16.msra.mxu0 0
    %1448 = vmatprep.subr.bf16.mxu0 0
    %1449 = vmatpush1.bf16.msra.mxu0 0
    %1450 = vmatprep.subr.bf16.mxu0 0
    %1451 = vmatpush1.bf16.msra.mxu0 0
    %1452 = vmatprep.subr.bf16.mxu0 0
    %1453 = vmatpush1.bf16.msra.mxu0 0
    %1454 = vmatprep.subr.bf16.mxu0 0
    %1455 = vmatpush1.bf16.msra.mxu0 0
    %1456 = vmatprep.subr.bf16.mxu0 0
    %1457 = vmatpush1.bf16.msra.mxu0 0
    %1458 = vmatprep.subr.bf16.mxu0 0
    %1459 = vmatpush1.bf16.msra.mxu0 0
    %1460 = vmatprep.mubr.bf16.mxu0 0
    %1461 = vmatmul.mubr.bf16.gmra.mrb[0].mxu0 %v1385
    %v1462 = vpop.f32.mrb[0].mxu0
    %v1463 = vadd.f32 %v574, %v1462
    %v1464 = vpop.f32.mrb[0].mxu0
    %v1465 = vpop.f32.mrb[0].mxu0
    %v1466 = vpop.f32.mrb[0].mxu0
    %1467 = vdwg.mxu0
    %v1469 = vrot.slane %v1422, 4
    %v1471 = vadd.f32 %v467, %v1469
    %v1472 = vxor.u32 %v1471, 2147483648
    %v1473 = vmul.f32 %v1472, 1.442695
    %v1474 = vpow.pop %v1473
    %v1475 = vadd.f32 %v1474, 1.0
    %v1476 = vrcp.pop %v1475
    %v1477 = vmul.f32 1.0, %v1476
    %v1479 = vrot.slane %v1424, 4
    %v1481 = vadd.f32 %v469, %v1479
    %v1482 = vxor.u32 %v1481, 2147483648
    %v1483 = vmul.f32 %v1482, 1.442695
    %v1484 = vpow.pop %v1483
    %v1485 = vadd.f32 %v1484, 1.0
    %v1486 = vrcp.pop %v1485
    %v1487 = vmul.f32 1.0, %v1486
    %v1489 = vrot.slane %v1463, 4
    %v1491 = vmul.f32 %v1477, %v1489
    %v1492 = vadd.f32 %v517, %v1491
    %v1493 = vtanh.pop %v1492
    %v1494 = vsub.f32 1.0, %v1487
    %v1495 = vmul.f32 %v1494, %v1493
    %v1497 = vrot.slane %v1382, 6
    %v1499 = vmul.f32 %v1487, %v1497
    %v1500 = vadd.f32 %v1495, %v1499
    %v1501 = vpack.c.bf16 %v1500, %v1500
    %v1503 = vrot.slane %v1501, 2
    %1505 = vmatprep.subr.bf16.mxu0 %v659
    %1506 = vmatpush1.bf16.msra.mxu0 %v658
    %1507 = vmatprep.subr.bf16.mxu0 %v662
    %1508 = vmatpush1.bf16.msra.mxu0 %v661
    %1509 = vmatprep.subr.bf16.mxu0 %v665
    %1510 = vmatpush1.bf16.msra.mxu0 %v664
    %1511 = vmatprep.subr.bf16.mxu0 %v668
    %1512 = vmatpush1.bf16.msra.mxu0 %v667
    %1513 = vmatprep.subr.bf16.mxu0 %v671
    %1514 = vmatpush1.bf16.msra.mxu0 %v670
    %1515 = vmatprep.subr.bf16.mxu0 %v674
    %1516 = vmatpush1.bf16.msra.mxu0 %v673
    %1517 = vmatprep.subr.bf16.mxu0 %v677
    %1518 = vmatpush1.bf16.msra.mxu0 %v676
    %1519 = vmatprep.subr.bf16.mxu0 %v680
    %1520 = vmatpush1.bf16.msra.mxu0 %v679
    %1521 = vmatprep.subr.bf16.mxu0 0
    %1522 = vmatpush1.bf16.msra.mxu0 0
    %1523 = vmatprep.subr.bf16.mxu0 0
    %1524 = vmatpush1.bf16.msra.mxu0 0
    %1525 = vmatprep.subr.bf16.mxu0 0
    %1526 = vmatpush1.bf16.msra.mxu0 0
    %1527 = vmatprep.subr.bf16.mxu0 0
    %1528 = vmatpush1.bf16.msra.mxu0 0
    %1529 = vmatprep.subr.bf16.mxu0 0
    %1530 = vmatpush1.bf16.msra.mxu0 0
    %1531 = vmatprep.subr.bf16.mxu0 0
    %1532 = vmatpush1.bf16.msra.mxu0 0
    %1533 = vmatprep.subr.bf16.mxu0 0
    %1534 = vmatpush1.bf16.msra.mxu0 0
    %1535 = vmatprep.subr.bf16.mxu0 0
    %1536 = vmatpush1.bf16.msra.mxu0 0
    %1537 = vmatprep.mubr.bf16.mxu0 0
    %1538 = vmatmul.mubr.bf16.gmra.mrb[0].mxu0 %v1503
    %v1539 = vpop.f32.mrb[0].mxu0
    %v1540 = vadd.f32 %v566, %v1539
    %v1541 = vpop.f32.mrb[0].mxu0
    %v1542 = vadd.f32 %v570, %v1541
    %v1543 = vpop.f32.mrb[0].mxu0
    %v1544 = vpop.f32.mrb[0].mxu0
    %1545 = vdwg.mxu0
    %1546 = vmatprep.subr.bf16.mxu0 0
    %1547 = vmatpush1.bf16.msra.mxu0 %v660
    %1548 = vmatprep.subr.bf16.mxu0 0
    %1549 = vmatpush1.bf16.msra.mxu0 %v663
    %1550 = vmatprep.subr.bf16.mxu0 0
    %1551 = vmatpush1.bf16.msra.mxu0 %v666
    %1552 = vmatprep.subr.bf16.mxu0 0
    %1553 = vmatpush1.bf16.msra.mxu0 %v669
    %1554 = vmatprep.subr.bf16.mxu0 0
    %1555 = vmatpush1.bf16.msra.mxu0 %v672
    %1556 = vmatprep.subr.bf16.mxu0 0
    %1557 = vmatpush1.bf16.msra.mxu0 %v675
    %1558 = vmatprep.subr.bf16.mxu0 0
    %1559 = vmatpush1.bf16.msra.mxu0 %v678
    %1560 = vmatprep.subr.bf16.mxu0 0
    %1561 = vmatpush1.bf16.msra.mxu0 %v681
    %1562 = vmatprep.subr.bf16.mxu0 0
    %1563 = vmatpush1.bf16.msra.mxu0 0
    %1564 = vmatprep.subr.bf16.mxu0 0
    %1565 = vmatpush1.bf16.msra.mxu0 0
    %1566 = vmatprep.subr.bf16.mxu0 0
    %1567 = vmatpush1.bf16.msra.mxu0 0
    %1568 = vmatprep.subr.bf16.mxu0 0
    %1569 = vmatpush1.bf16.msra.mxu0 0
    %1570 = vmatprep.subr.bf16.mxu0 0
    %1571 = vmatpush1.bf16.msra.mxu0 0
    %1572 = vmatprep.subr.bf16.mxu0 0
    %1573 = vmatpush1.bf16.msra.mxu0 0
    %1574 = vmatprep.subr.bf16.mxu0 0
    %1575 = vmatpush1.bf16.msra.mxu0 0
    %1576 = vmatprep.subr.bf16.mxu0 0
    %1577 = vmatpush1.bf16.msra.mxu0 0
    %1578 = vmatprep.mubr.bf16.mxu0 0
    %1579 = vmatmul.mubr.bf16.gmra.mrb[0].mxu0 %v1503
    %v1580 = vpop.f32.mrb[0].mxu0
    %v1581 = vadd.f32 %v574, %v1580
    %v1582 = vpop.f32.mrb[0].mxu0
    %v1583 = vpop.f32.mrb[0].mxu0
    %v1584 = vpop.f32.mrb[0].mxu0
    %1585 = vdwg.mxu0
    %v1587 = vrot.slane %v1540, 2
    %v1589 = vadd.f32 %v467, %v1587
    %v1590 = vxor.u32 %v1589, 2147483648
    %v1591 = vmul.f32 %v1590, 1.442695
    %v1592 = vpow.pop %v1591
    %v1593 = vadd.f32 %v1592, 1.0
    %v1594 = vrcp.pop %v1593
    %v1595 = vmul.f32 1.0, %v1594
    %v1597 = vrot.slane %v1542, 2
    %v1599 = vadd.f32 %v469, %v1597
    %v1600 = vxor.u32 %v1599, 2147483648
    %v1601 = vmul.f32 %v1600, 1.442695
    %v1602 = vpow.pop %v1601
    %v1603 = vadd.f32 %v1602, 1.0
    %v1604 = vrcp.pop %v1603
    %v1605 = vmul.f32 1.0, %v1604
    %v1607 = vrot.slane %v1581, 2
    %v1609 = vmul.f32 %v1595, %v1607
    %v1610 = vadd.f32 %v517, %v1609
    %v1611 = vtanh.pop %v1610
    %v1612 = vsub.f32 1.0, %v1605
    %v1613 = vmul.f32 %v1612, %v1611
    %v1615 = vrot.slane %v1500, 6
    %v1617 = vmul.f32 %v1605, %v1615
    %v1618 = vadd.f32 %v1613, %v1617
    %v1619 = vpack.c.bf16 %v1618, %v1618
    %v1621 = vrot.slane %v1619, 3
    %1623 = vmatprep.subr.bf16.mxu0 %v659
    %1624 = vmatpush1.bf16.msra.mxu0 %v658
    %1625 = vmatprep.subr.bf16.mxu0 %v662
    %1626 = vmatpush1.bf16.msra.mxu0 %v661
    %1627 = vmatprep.subr.bf16.mxu0 %v665
    %1628 = vmatpush1.bf16.msra.mxu0 %v664
    %1629 = vmatprep.subr.bf16.mxu0 %v668
    %1630 = vmatpush1.bf16.msra.mxu0 %v667
    %1631 = vmatprep.subr.bf16.mxu0 %v671
    %1632 = vmatpush1.bf16.msra.mxu0 %v670
    %1633 = vmatprep.subr.bf16.mxu0 %v674
    %1634 = vmatpush1.bf16.msra.mxu0 %v673
    %1635 = vmatprep.subr.bf16.mxu0 %v677
    %1636 = vmatpush1.bf16.msra.mxu0 %v676
    %1637 = vmatprep.subr.bf16.mxu0 %v680
    %1638 = vmatpush1.bf16.msra.mxu0 %v679
    %1639 = vmatprep.subr.bf16.mxu0 0
    %1640 = vmatpush1.bf16.msra.mxu0 0
    %1641 = vmatprep.subr.bf16.mxu0 0
    %1642 = vmatpush1.bf16.msra.mxu0 0
    %1643 = vmatprep.subr.bf16.mxu0 0
    %1644 = vmatpush1.bf16.msra.mxu0 0
    %1645 = vmatprep.subr.bf16.mxu0 0
    %1646 = vmatpush1.bf16.msra.mxu0 0
    %1647 = vmatprep.subr.bf16.mxu0 0
    %1648 = vmatpush1.bf16.msra.mxu0 0
    %1649 = vmatprep.subr.bf16.mxu0 0
    %1650 = vmatpush1.bf16.msra.mxu0 0
    %1651 = vmatprep.subr.bf16.mxu0 0
    %1652 = vmatpush1.bf16.msra.mxu0 0
    %1653 = vmatprep.subr.bf16.mxu0 0
    %1654 = vmatpush1.bf16.msra.mxu0 0
    %1655 = vmatprep.mubr.bf16.mxu0 0
    %1656 = vmatmul.mubr.bf16.gmra.mrb[0].mxu0 %v1621
    %v1657 = vpop.f32.mrb[0].mxu0
    %v1658 = vadd.f32 %v566, %v1657
    %v1659 = vpop.f32.mrb[0].mxu0
    %v1660 = vadd.f32 %v570, %v1659
    %v1661 = vpop.f32.mrb[0].mxu0
    %v1662 = vpop.f32.mrb[0].mxu0
    %1663 = vdwg.mxu0
    %1664 = vmatprep.subr.bf16.mxu0 0
    %1665 = vmatpush1.bf16.msra.mxu0 %v660
    %1666 = vmatprep.subr.bf16.mxu0 0
    %1667 = vmatpush1.bf16.msra.mxu0 %v663
    %1668 = vmatprep.subr.bf16.mxu0 0
    %1669 = vmatpush1.bf16.msra.mxu0 %v666
    %1670 = vmatprep.subr.bf16.mxu0 0
    %1671 = vmatpush1.bf16.msra.mxu0 %v669
    %1672 = vmatprep.subr.bf16.mxu0 0
    %1673 = vmatpush1.bf16.msra.mxu0 %v672
    %1674 = vmatprep.subr.bf16.mxu0 0
    %1675 = vmatpush1.bf16.msra.mxu0 %v675
    %1676 = vmatprep.subr.bf16.mxu0 0
    %1677 = vmatpush1.bf16.msra.mxu0 %v678
    %1678 = vmatprep.subr.bf16.mxu0 0
    %1679 = vmatpush1.bf16.msra.mxu0 %v681
    %1680 = vmatprep.subr.bf16.mxu0 0
    %1681 = vmatpush1.bf16.msra.mxu0 0
    %1682 = vmatprep.subr.bf16.mxu0 0
    %1683 = vmatpush1.bf16.msra.mxu0 0
    %1684 = vmatprep.subr.bf16.mxu0 0
    %1685 = vmatpush1.bf16.msra.mxu0 0
    %1686 = vmatprep.subr.bf16.mxu0 0
    %1687 = vmatpush1.bf16.msra.mxu0 0
    %1688 = vmatprep.subr.bf16.mxu0 0
    %1689 = vmatpush1.bf16.msra.mxu0 0
    %1690 = vmatprep.subr.bf16.mxu0 0
    %1691 = vmatpush1.bf16.msra.mxu0 0
    %1692 = vmatprep.subr.bf16.mxu0 0
    %1693 = vmatpush1.bf16.msra.mxu0 0
    %1694 = vmatprep.subr.bf16.mxu0 0
    %1695 = vmatpush1.bf16.msra.mxu0 0
    %1696 = vmatprep.mubr.bf16.mxu0 0
    %1697 = vmatmul.mubr.bf16.gmra.mrb[0].mxu0 %v1621
    %v1698 = vpop.f32.mrb[0].mxu0
    %v1699 = vadd.f32 %v574, %v1698
    %v1700 = vpop.f32.mrb[0].mxu0
    %v1701 = vpop.f32.mrb[0].mxu0
    %v1702 = vpop.f32.mrb[0].mxu0
    %1703 = vdwg.mxu0
    %v1704 = vadd.f32 %v473, %v1658
    %v1705 = vxor.u32 %v1704, 2147483648
    %v1706 = vmul.f32 %v1705, 1.442695
    %v1707 = vpow.pop %v1706
    %v1708 = vadd.f32 %v1707, 1.0
    %v1709 = vrcp.pop %v1708
    %v1710 = vmul.f32 1.0, %v1709
    %v1711 = vadd.f32 %v475, %v1660
    %v1712 = vxor.u32 %v1711, 2147483648
    %v1713 = vmul.f32 %v1712, 1.442695
    %v1714 = vpow.pop %v1713
    %v1715 = vadd.f32 %v1714, 1.0
    %v1716 = vrcp.pop %v1715
    %v1717 = vmul.f32 1.0, %v1716
    %v1718 = vmul.f32 %v1710, %v1699
    %v1719 = vadd.f32 %v522, %v1718
    %v1720 = vtanh.pop %v1719
    %v1721 = vsub.f32 1.0, %v1717
    %v1722 = vmul.f32 %v1721, %v1720
    %v1724 = vrot.slane %v1618, 6
    %v1726 = vmul.f32 %v1717, %v1724
    %v1727 = vadd.f32 %v1722, %v1726
    %v1728 = vpack.c.bf16 %v1727, %v1727
    %1729 = vmatprep.subr.bf16.mxu0 %v659
    %1730 = vmatpush1.bf16.msra.mxu0 %v658
    %1731 = vmatprep.subr.bf16.mxu0 %v662
    %1732 = vmatpush1.bf16.msra.mxu0 %v661
    %1733 = vmatprep.subr.bf16.mxu0 %v665
    %1734 = vmatpush1.bf16.msra.mxu0 %v664
    %1735 = vmatprep.subr.bf16.mxu0 %v668
    %1736 = vmatpush1.bf16.msra.mxu0 %v667
    %1737 = vmatprep.subr.bf16.mxu0 %v671
    %1738 = vmatpush1.bf16.msra.mxu0 %v670
    %1739 = vmatprep.subr.bf16.mxu0 %v674
    %1740 = vmatpush1.bf16.msra.mxu0 %v673
    %1741 = vmatprep.subr.bf16.mxu0 %v677
    %1742 = vmatpush1.bf16.msra.mxu0 %v676
    %1743 = vmatprep.subr.bf16.mxu0 %v680
    %1744 = vmatpush1.bf16.msra.mxu0 %v679
    %1745 = vmatprep.subr.bf16.mxu0 0
    %1746 = vmatpush1.bf16.msra.mxu0 0
    %1747 = vmatprep.subr.bf16.mxu0 0
    %1748 = vmatpush1.bf16.msra.mxu0 0
    %1749 = vmatprep.subr.bf16.mxu0 0
    %1750 = vmatpush1.bf16.msra.mxu0 0
    %1751 = vmatprep.subr.bf16.mxu0 0
    %1752 = vmatpush1.bf16.msra.mxu0 0
    %1753 = vmatprep.subr.bf16.mxu0 0
    %1754 = vmatpush1.bf16.msra.mxu0 0
    %1755 = vmatprep.subr.bf16.mxu0 0
    %1756 = vmatpush1.bf16.msra.mxu0 0
    %1757 = vmatprep.subr.bf16.mxu0 0
    %1758 = vmatpush1.bf16.msra.mxu0 0
    %1759 = vmatprep.subr.bf16.mxu0 0
    %1760 = vmatpush1.bf16.msra.mxu0 0
    %1761 = vmatprep.mubr.bf16.mxu0 0
    %1762 = vmatmul.mubr.bf16.gmra.mrb[0].mxu0 %v1728
    %v1763 = vpop.f32.mrb[0].mxu0
    %v1764 = vadd.f32 %v566, %v1763
    %v1765 = vpop.f32.mrb[0].mxu0
    %v1766 = vadd.f32 %v570, %v1765
    %v1767 = vpop.f32.mrb[0].mxu0
    %v1768 = vpop.f32.mrb[0].mxu0
    %1769 = vdwg.mxu0
    %1770 = vmatprep.subr.bf16.mxu0 0
    %1771 = vmatpush1.bf16.msra.mxu0 %v660
    %1772 = vmatprep.subr.bf16.mxu0 0
    %1773 = vmatpush1.bf16.msra.mxu0 %v663
    %1774 = vmatprep.subr.bf16.mxu0 0
    %1775 = vmatpush1.bf16.msra.mxu0 %v666
    %1776 = vmatprep.subr.bf16.mxu0 0
    %1777 = vmatpush1.bf16.msra.mxu0 %v669
    %1778 = vmatprep.subr.bf16.mxu0 0
    %1779 = vmatpush1.bf16.msra.mxu0 %v672
    %1780 = vmatprep.subr.bf16.mxu0 0
    %1781 = vmatpush1.bf16.msra.mxu0 %v675
    %1782 = vmatprep.subr.bf16.mxu0 0
    %1783 = vmatpush1.bf16.msra.mxu0 %v678
    %1784 = vmatprep.subr.bf16.mxu0 0
    %1785 = vmatpush1.bf16.msra.mxu0 %v681
    %1786 = vmatprep.subr.bf16.mxu0 0
    %1787 = vmatpush1.bf16.msra.mxu0 0
    %1788 = vmatprep.subr.bf16.mxu0 0
    %1789 = vmatpush1.bf16.msra.mxu0 0
    %1790 = vmatprep.subr.bf16.mxu0 0
    %1791 = vmatpush1.bf16.msra.mxu0 0
    %1792 = vmatprep.subr.bf16.mxu0 0
    %1793 = vmatpush1.bf16.msra.mxu0 0
    %1794 = vmatprep.subr.bf16.mxu0 0
    %1795 = vmatpush1.bf16.msra.mxu0 0
    %1796 = vmatprep.subr.bf16.mxu0 0
    %1797 = vmatpush1.bf16.msra.mxu0 0
    %1798 = vmatprep.subr.bf16.mxu0 0
    %1799 = vmatpush1.bf16.msra.mxu0 0
    %1800 = vmatprep.subr.bf16.mxu0 0
    %1801 = vmatpush1.bf16.msra.mxu0 0
    %1802 = vmatprep.mubr.bf16.mxu0 0
    %1803 = vmatmul.mubr.bf16.gmra.mrb[0].mxu0 %v1728
    %v1804 = vpop.f32.mrb[0].mxu0
    %v1805 = vadd.f32 %v574, %v1804
    %v1806 = vpop.f32.mrb[0].mxu0
    %v1807 = vpop.f32.mrb[0].mxu0
    %v1808 = vpop.f32.mrb[0].mxu0
    %1809 = vdwg.mxu0
    %v1811 = vrot.slane %v1764, 6
    %v1813 = vadd.f32 %v473, %v1811
    %v1814 = vxor.u32 %v1813, 2147483648
    %v1815 = vmul.f32 %v1814, 1.442695
    %v1816 = vpow.pop %v1815
    %v1817 = vadd.f32 %v1816, 1.0
    %v1818 = vrcp.pop %v1817
    %v1819 = vmul.f32 1.0, %v1818
    %v1821 = vrot.slane %v1766, 6
    %v1823 = vadd.f32 %v475, %v1821
    %v1824 = vxor.u32 %v1823, 2147483648
    %v1825 = vmul.f32 %v1824, 1.442695
    %v1826 = vpow.pop %v1825
    %v1827 = vadd.f32 %v1826, 1.0
    %v1828 = vrcp.pop %v1827
    %v1829 = vmul.f32 1.0, %v1828
    %v1831 = vrot.slane %v1805, 6
    %v1833 = vmul.f32 %v1819, %v1831
    %v1834 = vadd.f32 %v522, %v1833
    %v1835 = vtanh.pop %v1834
    %v1836 = vsub.f32 1.0, %v1829
    %v1837 = vmul.f32 %v1836, %v1835
    %v1839 = vrot.slane %v1727, 6
    %v1841 = vmul.f32 %v1829, %v1839
    %v1842 = vadd.f32 %v1837, %v1841
    %v1843 = vpack.c.bf16 %v1842, %v1842
    %v1845 = vrot.slane %v1843, 1
    %1847 = vmatprep.subr.bf16.mxu0 %v659
    %1848 = vmatpush1.bf16.msra.mxu0 %v658
    %1849 = vmatprep.subr.bf16.mxu0 %v662
    %1850 = vmatpush1.bf16.msra.mxu0 %v661
    %1851 = vmatprep.subr.bf16.mxu0 %v665
    %1852 = vmatpush1.bf16.msra.mxu0 %v664
    %1853 = vmatprep.subr.bf16.mxu0 %v668
    %1854 = vmatpush1.bf16.msra.mxu0 %v667
    %1855 = vmatprep.subr.bf16.mxu0 %v671
    %1856 = vmatpush1.bf16.msra.mxu0 %v670
    %1857 = vmatprep.subr.bf16.mxu0 %v674
    %1858 = vmatpush1.bf16.msra.mxu0 %v673
    %1859 = vmatprep.subr.bf16.mxu0 %v677
    %1860 = vmatpush1.bf16.msra.mxu0 %v676
    %1861 = vmatprep.subr.bf16.mxu0 %v680
    %1862 = vmatpush1.bf16.msra.mxu0 %v679
    %1863 = vmatprep.subr.bf16.mxu0 0
    %1864 = vmatpush1.bf16.msra.mxu0 0
    %1865 = vmatprep.subr.bf16.mxu0 0
    %1866 = vmatpush1.bf16.msra.mxu0 0
    %1867 = vmatprep.subr.bf16.mxu0 0
    %1868 = vmatpush1.bf16.msra.mxu0 0
    %1869 = vmatprep.subr.bf16.mxu0 0
    %1870 = vmatpush1.bf16.msra.mxu0 0
    %1871 = vmatprep.subr.bf16.mxu0 0
    %1872 = vmatpush1.bf16.msra.mxu0 0
    %1873 = vmatprep.subr.bf16.mxu0 0
    %1874 = vmatpush1.bf16.msra.mxu0 0
    %1875 = vmatprep.subr.bf16.mxu0 0
    %1876 = vmatpush1.bf16.msra.mxu0 0
    %1877 = vmatprep.subr.bf16.mxu0 0
    %1878 = vmatpush1.bf16.msra.mxu0 0
    %1879 = vmatprep.mubr.bf16.mxu0 0
    %1880 = vmatmul.mubr.bf16.gmra.mrb[0].mxu0 %v1845
    %v1881 = vpop.f32.mrb[0].mxu0
    %v1882 = vadd.f32 %v566, %v1881
    %v1883 = vpop.f32.mrb[0].mxu0
    %v1884 = vadd.f32 %v570, %v1883
    %v1885 = vpop.f32.mrb[0].mxu0
    %v1886 = vpop.f32.mrb[0].mxu0
    %1887 = vdwg.mxu0
    %1888 = vmatprep.subr.bf16.mxu0 0
    %1889 = vmatpush1.bf16.msra.mxu0 %v660
    %1890 = vmatprep.subr.bf16.mxu0 0
    %1891 = vmatpush1.bf16.msra.mxu0 %v663
    %1892 = vmatprep.subr.bf16.mxu0 0
    %1893 = vmatpush1.bf16.msra.mxu0 %v666
    %1894 = vmatprep.subr.bf16.mxu0 0
    %1895 = vmatpush1.bf16.msra.mxu0 %v669
    %1896 = vmatprep.subr.bf16.mxu0 0
    %1897 = vmatpush1.bf16.msra.mxu0 %v672
    %1898 = vmatprep.subr.bf16.mxu0 0
    %1899 = vmatpush1.bf16.msra.mxu0 %v675
    %1900 = vmatprep.subr.bf16.mxu0 0
    %1901 = vmatpush1.bf16.msra.mxu0 %v678
    %1902 = vmatprep.subr.bf16.mxu0 0
    %1903 = vmatpush1.bf16.msra.mxu0 %v681
    %1904 = vmatprep.subr.bf16.mxu0 0
    %1905 = vmatpush1.bf16.msra.mxu0 0
    %1906 = vmatprep.subr.bf16.mxu0 0
    %1907 = vmatpush1.bf16.msra.mxu0 0
    %1908 = vmatprep.subr.bf16.mxu0 0
    %1909 = vmatpush1.bf16.msra.mxu0 0
    %1910 = vmatprep.subr.bf16.mxu0 0
    %1911 = vmatpush1.bf16.msra.mxu0 0
    %1912 = vmatprep.subr.bf16.mxu0 0
    %1913 = vmatpush1.bf16.msra.mxu0 0
    %1914 = vmatprep.subr.bf16.mxu0 0
    %1915 = vmatpush1.bf16.msra.mxu0 0
    %1916 = vmatprep.subr.bf16.mxu0 0
    %1917 = vmatpush1.bf16.msra.mxu0 0
    %1918 = vmatprep.subr.bf16.mxu0 0
    %1919 = vmatpush1.bf16.msra.mxu0 0
    %1920 = vmatprep.mubr.bf16.mxu0 0
    %1921 = vmatmul.mubr.bf16.gmra.mrb[0].mxu0 %v1845
    %v1922 = vpop.f32.mrb[0].mxu0
    %v1923 = vadd.f32 %v574, %v1922
    %v1924 = vpop.f32.mrb[0].mxu0
    %v1925 = vpop.f32.mrb[0].mxu0
    %v1926 = vpop.f32.mrb[0].mxu0
    %1927 = vdwg.mxu0
    %v1929 = vrot.slane %v1882, 4
    %v1931 = vadd.f32 %v473, %v1929
    %v1932 = vxor.u32 %v1931, 2147483648
    %v1933 = vmul.f32 %v1932, 1.442695
    %v1934 = vpow.pop %v1933
    %v1935 = vadd.f32 %v1934, 1.0
    %v1936 = vrcp.pop %v1935
    %v1937 = vmul.f32 1.0, %v1936
    %v1939 = vrot.slane %v1884, 4
    %v1941 = vadd.f32 %v475, %v1939
    %v1942 = vxor.u32 %v1941, 2147483648
    %v1943 = vmul.f32 %v1942, 1.442695
    %v1944 = vpow.pop %v1943
    %v1945 = vadd.f32 %v1944, 1.0
    %v1946 = vrcp.pop %v1945
    %v1947 = vmul.f32 1.0, %v1946
    %v1949 = vrot.slane %v1923, 4
    %v1951 = vmul.f32 %v1937, %v1949
    %v1952 = vadd.f32 %v522, %v1951
    %v1953 = vtanh.pop %v1952
    %v1954 = vsub.f32 1.0, %v1947
    %v1955 = vmul.f32 %v1954, %v1953
    %v1957 = vrot.slane %v1842, 6
    %v1959 = vmul.f32 %v1947, %v1957
    %v1960 = vadd.f32 %v1955, %v1959
    %v1961 = vpack.c.bf16 %v1960, %v1960
    %v1963 = vrot.slane %v1961, 2
    %1965 = vmatprep.subr.bf16.mxu0 %v659
    %1966 = vmatpush1.bf16.msra.mxu0 %v658
    %1967 = vmatprep.subr.bf16.mxu0 %v662
    %1968 = vmatpush1.bf16.msra.mxu0 %v661
    %1969 = vmatprep.subr.bf16.mxu0 %v665
    %1970 = vmatpush1.bf16.msra.mxu0 %v664
    %1971 = vmatprep.subr.bf16.mxu0 %v668
    %1972 = vmatpush1.bf16.msra.mxu0 %v667
    %1973 = vmatprep.subr.bf16.mxu0 %v671
    %1974 = vmatpush1.bf16.msra.mxu0 %v670
    %1975 = vmatprep.subr.bf16.mxu0 %v674
    %1976 = vmatpush1.bf16.msra.mxu0 %v673
    %1977 = vmatprep.subr.bf16.mxu0 %v677
    %1978 = vmatpush1.bf16.msra.mxu0 %v676
    %1979 = vmatprep.subr.bf16.mxu0 %v680
    %1980 = vmatpush1.bf16.msra.mxu0 %v679
    %1981 = vmatprep.subr.bf16.mxu0 0
    %1982 = vmatpush1.bf16.msra.mxu0 0
    %1983 = vmatprep.subr.bf16.mxu0 0
    %1984 = vmatpush1.bf16.msra.mxu0 0
    %1985 = vmatprep.subr.bf16.mxu0 0
    %1986 = vmatpush1.bf16.msra.mxu0 0
    %1987 = vmatprep.subr.bf16.mxu0 0
    %1988 = vmatpush1.bf16.msra.mxu0 0
    %1989 = vmatprep.subr.bf16.mxu0 0
    %1990 = vmatpush1.bf16.msra.mxu0 0
    %1991 = vmatprep.subr.bf16.mxu0 0
    %1992 = vmatpush1.bf16.msra.mxu0 0
    %1993 = vmatprep.subr.bf16.mxu0 0
    %1994 = vmatpush1.bf16.msra.mxu0 0
    %1995 = vmatprep.subr.bf16.mxu0 0
    %1996 = vmatpush1.bf16.msra.mxu0 0
    %1997 = vmatprep.mubr.bf16.mxu0 0
    %1998 = vmatmul.mubr.bf16.gmra.mrb[0].mxu0 %v1963
    %v1999 = vpop.f32.mrb[0].mxu0
    %v2000 = vadd.f32 %v566, %v1999
    %v2001 = vpop.f32.mrb[0].mxu0
    %v2002 = vadd.f32 %v570, %v2001
    %v2003 = vpop.f32.mrb[0].mxu0
    %v2004 = vpop.f32.mrb[0].mxu0
    %2005 = vdwg.mxu0
    %2006 = vmatprep.subr.bf16.mxu0 0
    %2007 = vmatpush1.bf16.msra.mxu0 %v660
    %2008 = vmatprep.subr.bf16.mxu0 0
    %2009 = vmatpush1.bf16.msra.mxu0 %v663
    %2010 = vmatprep.subr.bf16.mxu0 0
    %2011 = vmatpush1.bf16.msra.mxu0 %v666
    %2012 = vmatprep.subr.bf16.mxu0 0
    %2013 = vmatpush1.bf16.msra.mxu0 %v669
    %2014 = vmatprep.subr.bf16.mxu0 0
    %2015 = vmatpush1.bf16.msra.mxu0 %v672
    %2016 = vmatprep.subr.bf16.mxu0 0
    %2017 = vmatpush1.bf16.msra.mxu0 %v675
    %2018 = vmatprep.subr.bf16.mxu0 0
    %2019 = vmatpush1.bf16.msra.mxu0 %v678
    %2020 = vmatprep.subr.bf16.mxu0 0
    %2021 = vmatpush1.bf16.msra.mxu0 %v681
    %2022 = vmatprep.subr.bf16.mxu0 0
    %2023 = vmatpush1.bf16.msra.mxu0 0
    %2024 = vmatprep.subr.bf16.mxu0 0
    %2025 = vmatpush1.bf16.msra.mxu0 0
    %2026 = vmatprep.subr.bf16.mxu0 0
    %2027 = vmatpush1.bf16.msra.mxu0 0
    %2028 = vmatprep.subr.bf16.mxu0 0
    %2029 = vmatpush1.bf16.msra.mxu0 0
    %2030 = vmatprep.subr.bf16.mxu0 0
    %2031 = vmatpush1.bf16.msra.mxu0 0
    %2032 = vmatprep.subr.bf16.mxu0 0
    %2033 = vmatpush1.bf16.msra.mxu0 0
    %2034 = vmatprep.subr.bf16.mxu0 0
    %2035 = vmatpush1.bf16.msra.mxu0 0
    %2036 = vmatprep.subr.bf16.mxu0 0
    %2037 = vmatpush1.bf16.msra.mxu0 0
    %2038 = vmatprep.mubr.bf16.mxu0 0
    %2039 = vmatmul.mubr.bf16.gmra.mrb[0].mxu0 %v1963
    %v2040 = vpop.f32.mrb[0].mxu0
    %v2041 = vadd.f32 %v574, %v2040
    %v2042 = vpop.f32.mrb[0].mxu0
    %v2043 = vpop.f32.mrb[0].mxu0
    %v2044 = vpop.f32.mrb[0].mxu0
    %2045 = vdwg.mxu0
    %v2047 = vrot.slane %v2000, 2
    %v2049 = vadd.f32 %v473, %v2047
    %v2050 = vxor.u32 %v2049, 2147483648
    %v2051 = vmul.f32 %v2050, 1.442695
    %v2052 = vpow.pop %v2051
    %v2053 = vadd.f32 %v2052, 1.0
    %v2054 = vrcp.pop %v2053
    %v2055 = vmul.f32 1.0, %v2054
    %v2057 = vrot.slane %v2002, 2
    %v2059 = vadd.f32 %v475, %v2057
    %v2060 = vxor.u32 %v2059, 2147483648
    %v2061 = vmul.f32 %v2060, 1.442695
    %v2062 = vpow.pop %v2061
    %v2063 = vadd.f32 %v2062, 1.0
    %v2064 = vrcp.pop %v2063
    %v2065 = vmul.f32 1.0, %v2064
    %v2067 = vrot.slane %v2041, 2
    %v2069 = vmul.f32 %v2055, %v2067
    %v2070 = vadd.f32 %v522, %v2069
    %v2071 = vtanh.pop %v2070
    %v2072 = vsub.f32 1.0, %v2065
    %v2073 = vmul.f32 %v2072, %v2071
    %v2075 = vrot.slane %v1960, 6
    %v2077 = vmul.f32 %v2065, %v2075
    %v2078 = vadd.f32 %v2073, %v2077
    %2079 = vst [vmem:[#allocation7 - $0x6] sm:$0xc0] %v2078
    %v2080 = vld [vmem:[%s5] sm:$0x3]
    %v2082 = vrot.slane %v2080, 2
    %v2083 = vld [vmem:[%s11] sm:$0xff]
    %v2084 = vld [vmem:[%s11 + $0x8] sm:$0xff]
    %v2085 = vld [vmem:[%s11 + $0x10] sm:$0xff]
    %v2086 = vld [vmem:[%s11 + $0x18] sm:$0xff]
    %v2087 = vld [vmem:[%s11 + $0x20] sm:$0xff]
    %v2088 = vld [vmem:[%s11 + $0x28] sm:$0xff]
    %v2089 = vld [vmem:[%s11 + $0x30] sm:$0xff]
    %v2090 = vld [vmem:[%s11 + $0x38] sm:$0xff]
    %v2091 = vld [vmem:[%s11 + $0x40] sm:$0xff]
    %v2092 = vld [vmem:[%s11 + $0x48] sm:$0xff]
    %v2093 = vld [vmem:[%s11 + $0x50] sm:$0xff]
    %v2094 = vld [vmem:[%s11 + $0x58] sm:$0xff]
    %v2095 = vld [vmem:[%s11 + $0x60] sm:$0xff]
    %v2096 = vld [vmem:[%s11 + $0x68] sm:$0xff]
    %v2097 = vld [vmem:[%s11 + $0x70] sm:$0xff]
    %v2098 = vld [vmem:[%s11 + $0x78] sm:$0xff]
    %v2099 = vld [vmem:[%s12] sm:$0xff]
    %v2100 = vld [vmem:[%s12 + $0x8] sm:$0xff]
    %v2101 = vld [vmem:[%s12 + $0x10] sm:$0xff]
    %v2102 = vld [vmem:[%s12 + $0x18] sm:$0xff]
    %v2103 = vld [vmem:[%s12 + $0x20] sm:$0xff]
    %v2104 = vld [vmem:[%s12 + $0x28] sm:$0xff]
    %v2105 = vld [vmem:[%s12 + $0x30] sm:$0xff]
    %v2106 = vld [vmem:[%s12 + $0x38] sm:$0xff]
    %2108 = vset.pattern.permute.xlu0 0
    %2109 = vperm.xlu0 %2108, %v2099
    %v2110 = vpop.permute.xlu0 %2109
    %2113 = vset.pattern.permute.xlu0 0
    %2114 = vperm.xlu0 %2113, %v2100
    %v2115 = vpop.permute.xlu0 %2114
    %2118 = vset.pattern.permute.xlu0 0
    %2119 = vperm.xlu0 %2118, %v2101
    %v2120 = vpop.permute.xlu0 %2119
    %2123 = vset.pattern.permute.xlu0 0
    %2124 = vperm.xlu0 %2123, %v2102
    %v2125 = vpop.permute.xlu0 %2124
    %2128 = vset.pattern.permute.xlu0 0
    %2129 = vperm.xlu0 %2128, %v2103
    %v2130 = vpop.permute.xlu0 %2129
    %2133 = vset.pattern.permute.xlu0 0
    %2134 = vperm.xlu0 %2133, %v2104
    %v2135 = vpop.permute.xlu0 %2134
    %2138 = vset.pattern.permute.xlu0 0
    %2139 = vperm.xlu0 %2138, %v2105
    %v2140 = vpop.permute.xlu0 %2139
    %2143 = vset.pattern.permute.xlu0 0
    %2144 = vperm.xlu0 %2143, %v2106
    %v2145 = vpop.permute.xlu0 %2144
    %v2148 = vrot.slane %v2078, 6
    %v2149 = vrot.slane %v2082, 6
    %vm2151 = vcmask 80896
    %v2153 = vsel %vm2151, %v2084, 0
    %v2156 = vsel %vm2151, %v2086, 0
    %v2159 = vsel %vm2151, %v2088, 0
    %v2162 = vsel %vm2151, %v2090, 0
    %v2165 = vsel %vm2151, %v2092, 0
    %v2168 = vsel %vm2151, %v2094, 0
    %v2171 = vsel %vm2151, %v2096, 0
    %v2174 = vsel %vm2151, %v2098, 0
    %v2176 = vsel %vm2151, %v2149, 0
    %2178 = vmatprep.subr.mxu0 %v2176
    %2179 = vmatpush1.xpose.msra.mxu0 %v2148
    %2180 = vmatprep.subr.mxu0 0.0
    %2181 = vmatpush1.xpose.msra.mxu0 0.0
    %2182 = vmatprep.subr.mxu0 0.0
    %2183 = vmatpush1.xpose.msra.mxu0 0.0
    %2184 = vmatprep.subr.mxu0 0.0
    %2185 = vmatpush1.xpose.msra.mxu0 0.0
    %2186 = vmatprep.subr.mxu0 0.0
    %2187 = vmatpush1.xpose.msra.mxu0 0.0
    %2188 = vmatprep.subr.mxu0 0.0
    %2189 = vmatpush1.xpose.msra.mxu0 0.0
    %2190 = vmatprep.subr.mxu0 0.0
    %2191 = vmatpush1.xpose.msra.mxu0 0.0
    %2192 = vmatprep.subr.mxu0 0.0
    %2193 = vmatpush1.xpose.msra.mxu0 0.0
    %2194 = vmatprep.subr.mxu0 0.0
    %2195 = vmatpush1.xpose.msra.mxu0 0.0
    %2196 = vmatprep.subr.mxu0 0.0
    %2197 = vmatpush1.xpose.msra.mxu0 0.0
    %2198 = vmatprep.subr.mxu0 0.0
    %2199 = vmatpush1.xpose.msra.mxu0 0.0
    %2200 = vmatprep.subr.mxu0 0.0
    %2201 = vmatpush1.xpose.msra.mxu0 0.0
    %2202 = vmatprep.subr.mxu0 0.0
    %2203 = vmatpush1.xpose.msra.mxu0 0.0
    %2204 = vmatprep.subr.mxu0 0.0
    %2205 = vmatpush1.xpose.msra.mxu0 0.0
    %2206 = vmatprep.subr.mxu0 0.0
    %2207 = vmatpush1.xpose.msra.mxu0 0.0
    %2208 = vmatprep.subr.mxu0 0.0
    %2209 = vmatpush1.xpose.msra.mxu0 0.0
    %2210 = vmatprep.subr.mxu0 0.0
    %2211 = vmatpush1.xpose.msra.mxu0 0.0
    %2212 = vmatprep.subr.mxu0 0.0
    %2213 = vmatpush1.xpose.msra.mxu0 0.0
    %2214 = vmatprep.subr.mxu0 0.0
    %2215 = vmatpush1.xpose.msra.mxu0 0.0
    %2216 = vmatprep.subr.mxu0 0.0
    %2217 = vmatpush1.xpose.msra.mxu0 0.0
    %2218 = vmatprep.subr.mxu0 0.0
    %2219 = vmatpush1.xpose.msra.mxu0 0.0
    %2220 = vmatprep.subr.mxu0 0.0
    %2221 = vmatpush1.xpose.msra.mxu0 0.0
    %2222 = vmatprep.subr.mxu0 0.0
    %2223 = vmatpush1.xpose.msra.mxu0 0.0
    %2224 = vmatprep.subr.mxu0 0.0
    %2225 = vmatpush1.xpose.msra.mxu0 0.0
    %2226 = vmatprep.subr.mxu0 0.0
    %2227 = vmatpush1.xpose.msra.mxu0 0.0
    %2228 = vmatprep.subr.mxu0 0.0
    %2229 = vmatpush1.xpose.msra.mxu0 0.0
    %2230 = vmatprep.subr.mxu0 0.0
    %2231 = vmatpush1.xpose.msra.mxu0 0.0
    %2232 = vmatprep.subr.mxu0 0.0
    %2233 = vmatpush1.xpose.msra.mxu0 0.0
    %2234 = vmatprep.subr.mxu0 0.0
    %2235 = vmatpush1.xpose.msra.mxu0 0.0
    %2236 = vmatprep.subr.mxu0 0.0
    %2237 = vmatpush1.xpose.msra.mxu0 0.0
    %2238 = vmatprep.subr.mxu0 0.0
    %2239 = vmatpush1.xpose.msra.mxu0 0.0
    %2240 = vmatprep.subr.mxu0 0.0
    %2241 = vmatpush1.xpose.msra.mxu0 0.0
    %2242 = vmatprep.mubr.f32.mxu0 %v2153
    %2243 = vmatmul.mubr.f32.gmra.mrb[0].mxu0 %v2083
    %v2244 = vpop.f32.mrb[0].mxu0
    %v2245 = vadd.f32 %v2110, %v2244
    %v2246 = vpop.f32.mrb[0].mxu0
    %2247 = vmatprep.mubr.f32.mxu0 %v2156
    %2248 = vmatmul.mubr.f32.gmra.mrb[0].mxu0 %v2085
    %v2249 = vpop.f32.mrb[0].mxu0
    %v2250 = vadd.f32 %v2115, %v2249
    %v2251 = vpop.f32.mrb[0].mxu0
    %2252 = vmatprep.mubr.f32.mxu0 %v2159
    %2253 = vmatmul.mubr.f32.gmra.mrb[0].mxu0 %v2087
    %v2254 = vpop.f32.mrb[0].mxu0
    %v2255 = vadd.f32 %v2120, %v2254
    %v2256 = vpop.f32.mrb[0].mxu0
    %2257 = vmatprep.mubr.f32.mxu0 %v2162
    %2258 = vmatmul.mubr.f32.gmra.mrb[0].mxu0 %v2089
    %v2259 = vpop.f32.mrb[0].mxu0
    %v2260 = vadd.f32 %v2125, %v2259
    %v2261 = vpop.f32.mrb[0].mxu0
    %2262 = vmatprep.mubr.f32.mxu0 %v2165
    %2263 = vmatmul.mubr.f32.gmra.mrb[0].mxu0 %v2091
    %v2264 = vpop.f32.mrb[0].mxu0
    %v2265 = vadd.f32 %v2130, %v2264
    %v2266 = vpop.f32.mrb[0].mxu0
    %2267 = vmatprep.mubr.f32.mxu0 %v2168
    %2268 = vmatmul.mubr.f32.gmra.mrb[0].mxu0 %v2093
    %v2269 = vpop.f32.mrb[0].mxu0
    %v2270 = vadd.f32 %v2135, %v2269
    %v2271 = vpop.f32.mrb[0].mxu0
    %2272 = vmatprep.mubr.f32.mxu0 %v2171
    %2273 = vmatmul.mubr.f32.gmra.mrb[0].mxu0 %v2095
    %v2274 = vpop.f32.mrb[0].mxu0
    %v2275 = vadd.f32 %v2140, %v2274
    %v2276 = vpop.f32.mrb[0].mxu0
    %2277 = vmatprep.mubr.f32.mxu0 %v2174
    %2278 = vmatmul.mubr.f32.gmra.mrb[0].mxu0 %v2097
    %v2279 = vpop.f32.mrb[0].mxu0
    %v2280 = vadd.f32 %v2145, %v2279
    %v2281 = vpop.f32.mrb[0].mxu0
    %2282 = vdwg.mxu0
    %s2283 = sld [smem:[#allocation2]]
    %v2284 = vld [vmem:[%s1] sm:$0xff]
    %v2285 = vld [vmem:[%s1 + $0x8] sm:$0xff]
    %v2286 = vld [vmem:[%s1 + $0x10] sm:$0xf]
    %v2287 = vld [vmem:[%s1 + $0x18] sm:$0xf]
    %v2288 = vld [vmem:[%s2] sm:$0xff]
    %v2289 = vld [vmem:[%s2 + $0x8] sm:$0xff]
    %v2290 = vld [vmem:[%s2 + $0x10] sm:$0xf]
    %v2291 = vld [vmem:[%s2 + $0x18] sm:$0xf]
    %v2292 = vsub.f32 %v2284, %v2288
    %v2293 = vsub.f32 %v2285, %v2289
    %v2294 = vsub.f32 %v2286, %v2290
    %v2295 = vsub.f32 %v2287, %v2291
    %v2296 = vstv %s2283
    %v2297 = vmul.f32 %v2296, %v2292
    %v2298 = vmul.f32 %v2296, %v2293
    %v2299 = vmul.f32 %v2296, %v2294
    %v2300 = vmul.f32 %v2296, %v2295
    %v2301 = vadd.f32 %v2288, %v2297
    %v2302 = vadd.f32 %v2289, %v2298
    %v2303 = vadd.f32 %v2290, %v2299
    %v2304 = vadd.f32 %v2291, %v2300
    %v2305 = vld [vmem:[%s10] sm:$0xff]
    %v2306 = vld [vmem:[%s10 + $0x8] sm:$0xff]
    %v2307 = vld [vmem:[%s10 + $0x10] sm:$0xff]
    %v2308 = vld [vmem:[%s10 + $0x18] sm:$0xff]
    %v2309 = vld [vmem:[%s10 + $0x20] sm:$0xff]
    %v2310 = vld [vmem:[%s10 + $0x28] sm:$0xff]
    %v2311 = vld [vmem:[%s10 + $0x30] sm:$0xff]
    %v2312 = vld [vmem:[%s10 + $0x38] sm:$0xff]
    %v2313 = vmul.f32 %v2296, %v2305
    %v2314 = vmul.f32 %v2296, %v2306
    %v2315 = vmul.f32 %v2296, %v2307
    %v2316 = vmul.f32 %v2296, %v2308
    %v2317 = vmul.f32 %v2296, %v2309
    %v2318 = vmul.f32 %v2296, %v2310
    %v2319 = vmul.f32 %v2296, %v2311
    %v2320 = vmul.f32 %v2296, %v2312
    %v2321 = vadd.f32 %v2313, %v2245
    %v2322 = vadd.f32 %v2314, %v2250
    %v2323 = vadd.f32 %v2315, %v2255
    %v2324 = vadd.f32 %v2316, %v2260
    %v2325 = vadd.f32 %v2317, %v2265
    %v2326 = vadd.f32 %v2318, %v2270
    %v2327 = vadd.f32 %v2319, %v2275
    %v2328 = vadd.f32 %v2320, %v2280
    %v2329 = vld [vmem:[%s13] sm:$0xf]
    %v2330 = vld [vmem:[%s13 + $0x4] sm:$0xf]
    %v2331 = vld [vmem:[%s13 + $0x8] sm:$0xf]
    %v2332 = vld [vmem:[%s13 + $0xc] sm:$0xf]
    %v2333 = vld [vmem:[%s13 + $0x10] sm:$0xf]
    %v2334 = vld [vmem:[%s13 + $0x14] sm:$0xf]
    %v2335 = vld [vmem:[%s13 + $0x18] sm:$0xf]
    %v2336 = vld [vmem:[%s13 + $0x1c] sm:$0xf]
    %v2337 = vpack.c.bf16 %v2303, %v2301
    %v2338 = vpack.c.bf16 %v2304, %v2302
    %2340 = vset.pattern.permute.xlu0 0
    %2341 = vperm.xlu0 %2340, %v2321
    %v2342 = vpop.permute.xlu0 %2341
    %2345 = vset.pattern.permute.xlu0 0
    %2346 = vperm.xlu0 %2345, %v2322
    %v2347 = vpop.permute.xlu0 %2346
    %2350 = vset.pattern.permute.xlu0 0
    %2351 = vperm.xlu0 %2350, %v2323
    %v2352 = vpop.permute.xlu0 %2351
    %2355 = vset.pattern.permute.xlu0 0
    %2356 = vperm.xlu0 %2355, %v2324
    %v2357 = vpop.permute.xlu0 %2356
    %2360 = vset.pattern.permute.xlu0 0
    %2361 = vperm.xlu0 %2360, %v2325
    %v2362 = vpop.permute.xlu0 %2361
    %2365 = vset.pattern.permute.xlu0 0
    %2366 = vperm.xlu0 %2365, %v2326
    %v2367 = vpop.permute.xlu0 %2366
    %2370 = vset.pattern.permute.xlu0 0
    %2371 = vperm.xlu0 %2370, %v2327
    %v2372 = vpop.permute.xlu0 %2371
    %2375 = vset.pattern.permute.xlu0 0
    %2376 = vperm.xlu0 %2375, %v2328
    %v2377 = vpop.permute.xlu0 %2376
    %v2387 = vunpack.c.l.b16 %v2329
    %v2388 = vunpack.c.l.b16 %v2330
    %v2389 = vunpack.c.l.b16 %v2331
    %v2390 = vunpack.c.l.b16 %v2332
    %v2391 = vunpack.c.l.b16 %v2333
    %v2392 = vunpack.c.l.b16 %v2334
    %v2393 = vunpack.c.l.b16 %v2335
    %v2394 = vunpack.c.l.b16 %v2336
    %v2395 = vpack.c.b16 %v2388, %v2387
    %v2396 = vpack.c.b16 %v2390, %v2389
    %v2397 = vpack.c.b16 %v2392, %v2391
    %v2398 = vpack.c.b16 %v2394, %v2393
    %vm2399 = vcmask 97280
    %v2401 = vsel %vm2399, %v2395, 0
    %v2404 = vsel %vm2399, %v2396, 0
    %v2407 = vsel %vm2399, %v2397, 0
    %v2410 = vsel %vm2399, %v2398, 0
    %vm2412 = vcmask 1045504
    %v2414 = vsel %vm2412, %v2337, 0
    %v2417 = vsel %vm2412, %v2338, 0
    %2419 = vmatprep.subr.bf16.mxu0 %v2417
    %2420 = vmatpush1.bf16.msra.mxu0 %v2414
    %2421 = vmatprep.subr.bf16.mxu0 0
    %2422 = vmatpush1.bf16.msra.mxu0 0
    %2423 = vmatprep.subr.bf16.mxu0 0
    %2424 = vmatpush1.bf16.msra.mxu0 0
    %2425 = vmatprep.subr.bf16.mxu0 0
    %2426 = vmatpush1.bf16.msra.mxu0 0
    %2427 = vmatprep.subr.bf16.mxu0 0
    %2428 = vmatpush1.bf16.msra.mxu0 0
    %2429 = vmatprep.subr.bf16.mxu0 0
    %2430 = vmatpush1.bf16.msra.mxu0 0
    %2431 = vmatprep.subr.bf16.mxu0 0
    %2432 = vmatpush1.bf16.msra.mxu0 0
    %2433 = vmatprep.subr.bf16.mxu0 0
    %2434 = vmatpush1.bf16.msra.mxu0 0
    %2435 = vmatprep.subr.bf16.mxu0 0
    %2436 = vmatpush1.bf16.msra.mxu0 0
    %2437 = vmatprep.subr.bf16.mxu0 0
    %2438 = vmatpush1.bf16.msra.mxu0 0
    %2439 = vmatprep.subr.bf16.mxu0 0
    %2440 = vmatpush1.bf16.msra.mxu0 0
    %2441 = vmatprep.subr.bf16.mxu0 0
    %2442 = vmatpush1.bf16.msra.mxu0 0
    %2443 = vmatprep.subr.bf16.mxu0 0
    %2444 = vmatpush1.bf16.msra.mxu0 0
    %2445 = vmatprep.subr.bf16.mxu0 0
    %2446 = vmatpush1.bf16.msra.mxu0 0
    %2447 = vmatprep.subr.bf16.mxu0 0
    %2448 = vmatpush1.bf16.msra.mxu0 0
    %2449 = vmatprep.subr.bf16.mxu0 0
    %2450 = vmatpush1.bf16.msra.mxu0 0
    %2451 = vmatprep.mubr.bf16.mxu0 0
    %2452 = vmatmul.mubr.bf16.gmra.mrb[0].mxu0 %v2401
    %v2453 = vpop.f32.mrb[0].mxu0
    %v2454 = vadd.f32 %v2342, %v2453
    %v2455 = vpop.f32.mrb[0].mxu0
    %v2456 = vadd.f32 %v2342, %v2455
    %v2457 = vpop.f32.mrb[0].mxu0
    %v2458 = vadd.f32 %v2347, %v2457
    %v2459 = vpop.f32.mrb[0].mxu0
    %v2460 = vadd.f32 %v2347, %v2459
    %2461 = vmatprep.mubr.bf16.mxu0 0
    %2462 = vmatmul.mubr.bf16.gmra.mrb[0].mxu0 %v2404
    %v2463 = vpop.f32.mrb[0].mxu0
    %v2464 = vadd.f32 %v2352, %v2463
    %v2465 = vpop.f32.mrb[0].mxu0
    %v2466 = vadd.f32 %v2352, %v2465
    %v2467 = vpop.f32.mrb[0].mxu0
    %v2468 = vadd.f32 %v2357, %v2467
    %v2469 = vpop.f32.mrb[0].mxu0
    %v2470 = vadd.f32 %v2357, %v2469
    %2471 = vmatprep.mubr.bf16.mxu0 0
    %2472 = vmatmul.mubr.bf16.gmra.mrb[0].mxu0 %v2407
    %v2473 = vpop.f32.mrb[0].mxu0
    %v2474 = vadd.f32 %v2362, %v2473
    %v2475 = vpop.f32.mrb[0].mxu0
    %v2476 = vadd.f32 %v2362, %v2475
    %v2477 = vpop.f32.mrb[0].mxu0
    %v2478 = vadd.f32 %v2367, %v2477
    %v2479 = vpop.f32.mrb[0].mxu0
    %v2480 = vadd.f32 %v2367, %v2479
    %2481 = vmatprep.mubr.bf16.mxu0 0
    %2482 = vmatmul.mubr.bf16.gmra.mrb[0].mxu0 %v2410
    %v2483 = vpop.f32.mrb[0].mxu0
    %v2484 = vadd.f32 %v2372, %v2483
    %v2485 = vpop.f32.mrb[0].mxu0
    %v2486 = vadd.f32 %v2372, %v2485
    %v2487 = vpop.f32.mrb[0].mxu0
    %v2488 = vadd.f32 %v2377, %v2487
    %v2489 = vpop.f32.mrb[0].mxu0
    %v2490 = vadd.f32 %v2377, %v2489
    %2491 = vdwg.mxu0
    %v2492 = vmax.f32 %v2454, 0.0
    %v2493 = vmax.f32 %v2456, 0.0
    %v2494 = vmax.f32 %v2458, 0.0
    %v2495 = vmax.f32 %v2460, 0.0
    %v2496 = vmax.f32 %v2464, 0.0
    %v2497 = vmax.f32 %v2466, 0.0
    %v2498 = vmax.f32 %v2468, 0.0
    %v2499 = vmax.f32 %v2470, 0.0
    %v2500 = vmax.f32 %v2474, 0.0
    %v2501 = vmax.f32 %v2476, 0.0
    %v2502 = vmax.f32 %v2478, 0.0
    %v2503 = vmax.f32 %v2480, 0.0
    %v2504 = vmax.f32 %v2484, 0.0
    %v2505 = vmax.f32 %v2486, 0.0
    %v2506 = vmax.f32 %v2488, 0.0
    %v2507 = vmax.f32 %v2490, 0.0
    %v2508 = vld [vmem:[%s14] sm:$0xf]
    %v2509 = vld [vmem:[%s14 + $0x4] sm:$0x3]
    %v2510 = vpack.c.bf16 %v2494, %v2492
    %v2511 = vpack.c.bf16 %v2495, %v2493
    %v2512 = vpack.c.bf16 %v2498, %v2496
    %v2513 = vpack.c.bf16 %v2499, %v2497
    %v2514 = vpack.c.bf16 %v2502, %v2500
    %v2515 = vpack.c.bf16 %v2503, %v2501
    %v2516 = vpack.c.bf16 %v2506, %v2504
    %v2517 = vpack.c.bf16 %v2507, %v2505
    %v2518 = vld [vmem:[%s15] sm:$0xff]
    %v2519 = vld [vmem:[%s15 + $0x8] sm:$0xf]
    %2521 = vset.pattern.permute.xlu0 0
    %2522 = vperm.xlu0 %2521, %v2518
    %v2523 = vpop.permute.xlu0 %2522
    %2526 = vset.pattern.permute.xlu0 0
    %2527 = vperm.xlu0 %2526, %v2519
    %v2528 = vpop.permute.xlu0 %2527
    %v2532 = vunpack.c.l.b16 %v2508
    %v2533 = vunpack.c.l.b16 %v2509
    %v2534 = vpack.c.b16 %v2533, %v2532
    %vm2535 = vcmask 523264
    %v2537 = vsel %vm2535, %v2534, 0
    %2539 = vmatprep.subr.bf16.mxu0 %v2511
    %2540 = vmatpush1.bf16.msra.mxu0 %v2510
    %2541 = vmatprep.subr.bf16.mxu0 %v2513
    %2542 = vmatpush1.bf16.msra.mxu0 %v2512
    %2543 = vmatprep.subr.bf16.mxu0 %v2515
    %2544 = vmatpush1.bf16.msra.mxu0 %v2514
    %2545 = vmatprep.subr.bf16.mxu0 %v2517
    %2546 = vmatpush1.bf16.msra.mxu0 %v2516
    %2547 = vmatprep.subr.bf16.mxu0 0
    %2548 = vmatpush1.bf16.msra.mxu0 0
    %2549 = vmatprep.subr.bf16.mxu0 0
    %2550 = vmatpush1.bf16.msra.mxu0 0
    %2551 = vmatprep.subr.bf16.mxu0 0
    %2552 = vmatpush1.bf16.msra.mxu0 0
    %2553 = vmatprep.subr.bf16.mxu0 0
    %2554 = vmatpush1.bf16.msra.mxu0 0
    %2555 = vmatprep.subr.bf16.mxu0 0
    %2556 = vmatpush1.bf16.msra.mxu0 0
    %2557 = vmatprep.subr.bf16.mxu0 0
    %2558 = vmatpush1.bf16.msra.mxu0 0
    %2559 = vmatprep.subr.bf16.mxu0 0
    %2560 = vmatpush1.bf16.msra.mxu0 0
    %2561 = vmatprep.subr.bf16.mxu0 0
    %2562 = vmatpush1.bf16.msra.mxu0 0
    %2563 = vmatprep.subr.bf16.mxu0 0
    %2564 = vmatpush1.bf16.msra.mxu0 0
    %2565 = vmatprep.subr.bf16.mxu0 0
    %2566 = vmatpush1.bf16.msra.mxu0 0
    %2567 = vmatprep.subr.bf16.mxu0 0
    %2568 = vmatpush1.bf16.msra.mxu0 0
    %2569 = vmatprep.subr.bf16.mxu0 0
    %2570 = vmatpush1.bf16.msra.mxu0 0
    %2571 = vmatprep.mubr.bf16.mxu0 0
    %2572 = vmatmul.mubr.bf16.gmra.mrb[0].mxu0 %v2537
    %v2573 = vpop.f32.mrb[0].mxu0
    %v2574 = vadd.f32 %v2523, %v2573
    %v2575 = vpop.f32.mrb[0].mxu0
    %v2576 = vadd.f32 %v2523, %v2575
    %v2577 = vpop.f32.mrb[0].mxu0
    %v2578 = vadd.f32 %v2528, %v2577
    %v2579 = vpop.f32.mrb[0].mxu0
    %v2580 = vadd.f32 %v2528, %v2579
    %2581 = vdwg.mxu0
    %v2582 = vsub.f32 %v2574, %v2292
    %v2583 = vsub.f32 %v2576, %v2293
    %v2584 = vsub.f32 %v2578, %v2294
    %v2585 = vsub.f32 %v2580, %v2295
    %v2586 = vmul.f32 %v2582, %v2582
    %v2587 = vmul.f32 %v2583, %v2583
    %v2588 = vmul.f32 %v2584, %v2584
    %v2589 = vmul.f32 %v2585, %v2585
    %v2590 = vadd.f32 %v2586, 0.0
    %v2591 = vadd.f32 %v2587, 0.0
    %v2592 = vadd.f32 %v2588, 0.0
    %v2593 = vadd.f32 %v2589, 0.0
    %s2594 = sld [smem:[#allocation2 + $0x80]]
    %s2595 = scalar_lea.vmem %s1, 32
    %v2596 = vld [vmem:[%s2595] sm:$0xff]
    %v2597 = vld [vmem:[%s2595 + $0x8] sm:$0xff]
    %v2598 = vld [vmem:[%s2595 + $0x10] sm:$0xf]
    %v2599 = vld [vmem:[%s2595 + $0x18] sm:$0xf]
    %s2600 = scalar_lea.vmem %s2, 32
    %v2601 = vld [vmem:[%s2600] sm:$0xff]
    %v2602 = vld [vmem:[%s2600 + $0x8] sm:$0xff]
    %v2603 = vld [vmem:[%s2600 + $0x10] sm:$0xf]
    %v2604 = vld [vmem:[%s2600 + $0x18] sm:$0xf]
    %v2605 = vsub.f32 %v2596, %v2601
    %v2606 = vsub.f32 %v2597, %v2602
    %v2607 = vsub.f32 %v2598, %v2603
    %v2608 = vsub.f32 %v2599, %v2604
    %v2609 = vstv %s2594
    %v2610 = vmul.f32 %v2609, %v2605
    %v2611 = vmul.f32 %v2609, %v2606
    %v2612 = vmul.f32 %v2609, %v2607
    %v2613 = vmul.f32 %v2609, %v2608
    %v2614 = vadd.f32 %v2601, %v2610
    %v2615 = vadd.f32 %v2602, %v2611
    %v2616 = vadd.f32 %v2603, %v2612
    %v2617 = vadd.f32 %v2604, %v2613
    %v2618 = vmul.f32 %v2609, %v2305
    %v2619 = vmul.f32 %v2609, %v2306
    %v2620 = vmul.f32 %v2609, %v2307
    %v2621 = vmul.f32 %v2609, %v2308
    %v2622 = vmul.f32 %v2609, %v2309
    %v2623 = vmul.f32 %v2609, %v2310
    %v2624 = vmul.f32 %v2609, %v2311
    %v2625 = vmul.f32 %v2609, %v2312
    %2634 = vrot.lane.b32.xlu0 %v2245, 127
    %v2635 = vpop.permute.xlu0 %2634
    %2636 = vrot.lane.b32.xlu0 %v2250, 127
    %v2637 = vpop.permute.xlu0 %2636
    %2638 = vrot.lane.b32.xlu0 %v2255, 127
    %v2639 = vpop.permute.xlu0 %2638
    %2640 = vrot.lane.b32.xlu0 %v2260, 127
    %v2641 = vpop.permute.xlu0 %2640
    %2642 = vrot.lane.b32.xlu0 %v2265, 127
    %v2643 = vpop.permute.xlu0 %2642
    %2644 = vrot.lane.b32.xlu0 %v2270, 127
    %v2645 = vpop.permute.xlu0 %2644
    %2646 = vrot.lane.b32.xlu0 %v2275, 127
    %v2647 = vpop.permute.xlu0 %2646
    %2648 = vrot.lane.b32.xlu0 %v2280, 127
    %v2649 = vpop.permute.xlu0 %2648
    %v2658 = vadd.f32 %v2618, %v2635
    %v2659 = vadd.f32 %v2619, %v2637
    %v2660 = vadd.f32 %v2620, %v2639
    %v2661 = vadd.f32 %v2621, %v2641
    %v2662 = vadd.f32 %v2622, %v2643
    %v2663 = vadd.f32 %v2623, %v2645
    %v2664 = vadd.f32 %v2624, %v2647
    %v2665 = vadd.f32 %v2625, %v2649
    %v2666 = vpack.c.bf16 %v2616, %v2614
    %v2667 = vpack.c.bf16 %v2617, %v2615
    %2669 = vset.pattern.permute.xlu0 0
    %2670 = vperm.xlu0 %2669, %v2658
    %v2671 = vpop.permute.xlu0 %2670
    %2674 = vset.pattern.permute.xlu0 0
    %2675 = vperm.xlu0 %2674, %v2659
    %v2676 = vpop.permute.xlu0 %2675
    %2679 = vset.pattern.permute.xlu0 0
    %2680 = vperm.xlu0 %2679, %v2660
    %v2681 = vpop.permute.xlu0 %2680
    %2684 = vset.pattern.permute.xlu0 0
    %2685 = vperm.xlu0 %2684, %v2661
    %v2686 = vpop.permute.xlu0 %2685
    %2689 = vset.pattern.permute.xlu0 0
    %2690 = vperm.xlu0 %2689, %v2662
    %v2691 = vpop.permute.xlu0 %2690
    %2694 = vset.pattern.permute.xlu0 0
    %2695 = vperm.xlu0 %2694, %v2663
    %v2696 = vpop.permute.xlu0 %2695
    %2699 = vset.pattern.permute.xlu0 0
    %2700 = vperm.xlu0 %2699, %v2664
    %v2701 = vpop.permute.xlu0 %2700
    %2704 = vset.pattern.permute.xlu0 0
    %2705 = vperm.xlu0 %2704, %v2665
    %v2706 = vpop.permute.xlu0 %2705
    %v2709 = vsel %vm2412, %v2666, 0
    %v2712 = vsel %vm2412, %v2667, 0
    %2714 = vmatprep.subr.bf16.mxu0 %v2712
    %2715 = vmatpush1.bf16.msra.mxu0 %v2709
    %2716 = vmatprep.subr.bf16.mxu0 0
    %2717 = vmatpush1.bf16.msra.mxu0 0
    %2718 = vmatprep.subr.bf16.mxu0 0
    %2719 = vmatpush1.bf16.msra.mxu0 0
    %2720 = vmatprep.subr.bf16.mxu0 0
    %2721 = vmatpush1.bf16.msra.mxu0 0
    %2722 = vmatprep.subr.bf16.mxu0 0
    %2723 = vmatpush1.bf16.msra.mxu0 0
    %2724 = vmatprep.subr.bf16.mxu0 0
    %2725 = vmatpush1.bf16.msra.mxu0 0
    %2726 = vmatprep.subr.bf16.mxu0 0
    %2727 = vmatpush1.bf16.msra.mxu0 0
    %2728 = vmatprep.subr.bf16.mxu0 0
    %2729 = vmatpush1.bf16.msra.mxu0 0
    %2730 = vmatprep.subr.bf16.mxu0 0
    %2731 = vmatpush1.bf16.msra.mxu0 0
    %2732 = vmatprep.subr.bf16.mxu0 0
    %2733 = vmatpush1.bf16.msra.mxu0 0
    %2734 = vmatprep.subr.bf16.mxu0 0
    %2735 = vmatpush1.bf16.msra.mxu0 0
    %2736 = vmatprep.subr.bf16.mxu0 0
    %2737 = vmatpush1.bf16.msra.mxu0 0
    %2738 = vmatprep.subr.bf16.mxu0 0
    %2739 = vmatpush1.bf16.msra.mxu0 0
    %2740 = vmatprep.subr.bf16.mxu0 0
    %2741 = vmatpush1.bf16.msra.mxu0 0
    %2742 = vmatprep.subr.bf16.mxu0 0
    %2743 = vmatpush1.bf16.msra.mxu0 0
    %2744 = vmatprep.subr.bf16.mxu0 0
    %2745 = vmatpush1.bf16.msra.mxu0 0
    %2746 = vmatprep.mubr.bf16.mxu0 0
    %2747 = vmatmul.mubr.bf16.gmra.mrb[0].mxu0 %v2401
    %v2748 = vpop.f32.mrb[0].mxu0
    %v2749 = vadd.f32 %v2671, %v2748
    %v2750 = vpop.f32.mrb[0].mxu0
    %v2751 = vadd.f32 %v2671, %v2750
    %v2752 = vpop.f32.mrb[0].mxu0
    %v2753 = vadd.f32 %v2676, %v2752
    %v2754 = vpop.f32.mrb[0].mxu0
    %v2755 = vadd.f32 %v2676, %v2754
    %2756 = vmatprep.mubr.bf16.mxu0 0
    %2757 = vmatmul.mubr.bf16.gmra.mrb[0].mxu0 %v2404
    %v2758 = vpop.f32.mrb[0].mxu0
    %v2759 = vadd.f32 %v2681, %v2758
    %v2760 = vpop.f32.mrb[0].mxu0
    %v2761 = vadd.f32 %v2681, %v2760
    %v2762 = vpop.f32.mrb[0].mxu0
    %v2763 = vadd.f32 %v2686, %v2762
    %v2764 = vpop.f32.mrb[0].mxu0
    %v2765 = vadd.f32 %v2686, %v2764
    %2766 = vmatprep.mubr.bf16.mxu0 0
    %2767 = vmatmul.mubr.bf16.gmra.mrb[0].mxu0 %v2407
    %v2768 = vpop.f32.mrb[0].mxu0
    %v2769 = vadd.f32 %v2691, %v2768
    %v2770 = vpop.f32.mrb[0].mxu0
    %v2771 = vadd.f32 %v2691, %v2770
    %v2772 = vpop.f32.mrb[0].mxu0
    %v2773 = vadd.f32 %v2696, %v2772
    %v2774 = vpop.f32.mrb[0].mxu0
    %v2775 = vadd.f32 %v2696, %v2774
    %2776 = vmatprep.mubr.bf16.mxu0 0
    %2777 = vmatmul.mubr.bf16.gmra.mrb[0].mxu0 %v2410
    %v2778 = vpop.f32.mrb[0].mxu0
    %v2779 = vadd.f32 %v2701, %v2778
    %v2780 = vpop.f32.mrb[0].mxu0
    %v2781 = vadd.f32 %v2701, %v2780
    %v2782 = vpop.f32.mrb[0].mxu0
    %v2783 = vadd.f32 %v2706, %v2782
    %v2784 = vpop.f32.mrb[0].mxu0
    %v2785 = vadd.f32 %v2706, %v2784
    %2786 = vdwg.mxu0
    %v2787 = vmax.f32 %v2749, 0.0
    %v2788 = vmax.f32 %v2751, 0.0
    %v2789 = vmax.f32 %v2753, 0.0
    %v2790 = vmax.f32 %v2755, 0.0
    %v2791 = vmax.f32 %v2759, 0.0
    %v2792 = vmax.f32 %v2761, 0.0
    %v2793 = vmax.f32 %v2763, 0.0
    %v2794 = vmax.f32 %v2765, 0.0
    %v2795 = vmax.f32 %v2769, 0.0
    %v2796 = vmax.f32 %v2771, 0.0
    %v2797 = vmax.f32 %v2773, 0.0
    %v2798 = vmax.f32 %v2775, 0.0
    %v2799 = vmax.f32 %v2779, 0.0
    %v2800 = vmax.f32 %v2781, 0.0
    %v2801 = vmax.f32 %v2783, 0.0
    %v2802 = vmax.f32 %v2785, 0.0
    %v2803 = vpack.c.bf16 %v2789, %v2787
    %v2804 = vpack.c.bf16 %v2790, %v2788
    %v2805 = vpack.c.bf16 %v2793, %v2791
    %v2806 = vpack.c.bf16 %v2794, %v2792
    %v2807 = vpack.c.bf16 %v2797, %v2795
    %v2808 = vpack.c.bf16 %v2798, %v2796
    %v2809 = vpack.c.bf16 %v2801, %v2799
    %v2810 = vpack.c.bf16 %v2802, %v2800
    %2811 = vmatprep.subr.bf16.mxu0 %v2804
    %2812 = vmatpush1.bf16.msra.mxu0 %v2803
    %2813 = vmatprep.subr.bf16.mxu0 %v2806
    %2814 = vmatpush1.bf16.msra.mxu0 %v2805
    %2815 = vmatprep.subr.bf16.mxu0 %v2808
    %2816 = vmatpush1.bf16.msra.mxu0 %v2807
    %2817 = vmatprep.subr.bf16.mxu0 %v2810
    %2818 = vmatpush1.bf16.msra.mxu0 %v2809
    %2819 = vmatprep.subr.bf16.mxu0 0
    %2820 = vmatpush1.bf16.msra.mxu0 0
    %2821 = vmatprep.subr.bf16.mxu0 0
    %2822 = vmatpush1.bf16.msra.mxu0 0
    %2823 = vmatprep.subr.bf16.mxu0 0
    %2824 = vmatpush1.bf16.msra.mxu0 0
    %2825 = vmatprep.subr.bf16.mxu0 0
    %2826 = vmatpush1.bf16.msra.mxu0 0
    %2827 = vmatprep.subr.bf16.mxu0 0
    %2828 = vmatpush1.bf16.msra.mxu0 0
    %2829 = vmatprep.subr.bf16.mxu0 0
    %2830 = vmatpush1.bf16.msra.mxu0 0
    %2831 = vmatprep.subr.bf16.mxu0 0
    %2832 = vmatpush1.bf16.msra.mxu0 0
    %2833 = vmatprep.subr.bf16.mxu0 0
    %2834 = vmatpush1.bf16.msra.mxu0 0
    %2835 = vmatprep.subr.bf16.mxu0 0
    %2836 = vmatpush1.bf16.msra.mxu0 0
    %2837 = vmatprep.subr.bf16.mxu0 0
    %2838 = vmatpush1.bf16.msra.mxu0 0
    %2839 = vmatprep.subr.bf16.mxu0 0
    %2840 = vmatpush1.bf16.msra.mxu0 0
    %2841 = vmatprep.subr.bf16.mxu0 0
    %2842 = vmatpush1.bf16.msra.mxu0 0
    %2843 = vmatprep.mubr.bf16.mxu0 0
    %2844 = vmatmul.mubr.bf16.gmra.mrb[0].mxu0 %v2537
    %v2845 = vpop.f32.mrb[0].mxu0
    %v2846 = vadd.f32 %v2523, %v2845
    %v2847 = vpop.f32.mrb[0].mxu0
    %v2848 = vadd.f32 %v2523, %v2847
    %v2849 = vpop.f32.mrb[0].mxu0
    %v2850 = vadd.f32 %v2528, %v2849
    %v2851 = vpop.f32.mrb[0].mxu0
    %v2852 = vadd.f32 %v2528, %v2851
    %2853 = vdwg.mxu0
    %v2854 = vsub.f32 %v2846, %v2605
    %v2855 = vsub.f32 %v2848, %v2606
    %v2856 = vsub.f32 %v2850, %v2607
    %v2857 = vsub.f32 %v2852, %v2608
    %v2858 = vmul.f32 %v2854, %v2854
    %v2859 = vmul.f32 %v2855, %v2855
    %v2860 = vmul.f32 %v2856, %v2856
    %v2861 = vmul.f32 %v2857, %v2857
    %v2862 = vadd.f32 %v2590, %v2858
    %v2863 = vadd.f32 %v2591, %v2859
    %v2864 = vadd.f32 %v2592, %v2860
    %v2865 = vadd.f32 %v2593, %v2861
    %v2866 = vadd.f32 %v2862, %v2863
    %vm2867 = vcmask 1043456
    %v2868 = vsel %vm2867, %v2864, 0.0
    %v2869 = vadd.f32 %v2866, %v2868
    %v2870 = vsel %vm2867, %v2865, 0.0
    %v2871 = vadd.f32 %v2869, %v2870
    %2872 = vadd.xlane.f32.xlu0 %v2871
    %v2873 = vpop.xlane.xlu0 %2872
    %v2874 = vrot.slane %v2873, 4
    %v2875 = vadd.f32 %v2873, %v2874
    %v2876 = vrot.slane %v2875, 2
    %v2877 = vadd.f32 %v2875, %v2876
    %v2878 = vrot.slane %v2877, 1
    %v2879 = vadd.f32 %v2877, %v2878
    %s2880 = vtos %v2879
    %s2881 = smul.f32 %s2880, 0.00016276042
    %s2882 = scalar_lea.smem [#allocation6], 0
    %2883 = sst [smem:[%s2882]] %s2881
    // Predicated region
    $region70: #{flow_matching_forward.3} parent=1 // pred_check
      _
    $region71: #{flow_matching_forward.3} parent=1 // pred_check_branch
      %2885 = sbr.rel (0) target = $region73
    $region72: #{flow_matching_forward.3} parent=1 // pred_region
      %s2887 = ssub.s32 16, 16
      %2888 = vsyncadd [#allocation4], %s2887
      %2891 = dma.smem_to_hbm [#allocation6], 16, %s16, [#allocation4]
    $region73: #{flow_matching_forward.3} parent=1 // pred_fallthru
      _
    // Predicated region
    $region74: #{flow_matching_forward.3} parent=1 // pred_check
      _
    $region75: #{flow_matching_forward.3} parent=1 // pred_check_branch
      %2893 = sbr.rel (0) target = $region77
    $region76: #{flow_matching_forward.3} parent=1 // pred_region
      %s2895 = ssub.s32 32, 32
      %2896 = vsyncadd [#allocation3], %s2895
      %s2898 = sshll.u32 [#allocation7], 4
      %s2899 = int_to_ptr.vmem [resolvable:$true] %s2898
      %2901 = dma.vmem_to_hbm [thread:$0]  %s2899, 32, %s17, [#allocation3]
    $region77: #{flow_matching_forward.3} parent=1 // pred_fallthru
      _
    // Predicated region
    $region78: #{flow_matching_forward.3} parent=1 // pred_check
      _
    $region79: #{flow_matching_forward.3} parent=1 // pred_check_branch
      %2903 = sbr.rel (0) target = $region81
    $region80: #{flow_matching_forward.3} parent=1 // pred_region
      %2904 = dma.done [#allocation4], 16
    $region81: #{flow_matching_forward.3} parent=1 // pred_fallthru
      _
    // Predicated region
    $region82: #{flow_matching_forward.3} parent=1 // pred_check
      _
    $region83: #{flow_matching_forward.3} parent=1 // pred_check_branch
      %2906 = sbr.rel (0) target = $region85
    $region84: #{flow_matching_forward.3} parent=1 // pred_region
      %2907 = dma.done [#allocation3], 32
    $region85: #{flow_matching_forward.3} parent=1 // pred_fallthru
      _
    %2908 = sfence
    %2909 = vsyncpa [#allocation3], 1
    %2910 = vsyncpa [#allocation4], 1
    %2911 = vsyncpa [#allocation5], 1

</llo_original>
